<compile_context>
chip_gen: v6e
topology: v6e:2x2x1
jax: 0.10.0
libtpu: 0.0.40
codegen_flags: <defaults>
</compile_context>

<pallas_src>
import functools

import jax
import jax.numpy as jnp
from jax.experimental import pallas as pl
from jax.experimental.pallas import tpu as pltpu

F32 = jnp.float32
BF16 = jnp.bfloat16

_VMEM_LIMIT = 48 * 1024 * 1024  # > 32 MiB default, < 64 MiB physical on v7x


# ---------------------------------------------------------------------------
# small helpers
# ---------------------------------------------------------------------------

def _round_up(x, m):
    return (x + m - 1) // m * m


def _pad2(a, rows, cols):
    pr, pc = rows - a.shape[0], cols - a.shape[1]
    if pr == 0 and pc == 0:
        return a
    return jnp.pad(a, ((0, pr), (0, pc)))


def _pick_tile(dim, max_tile, align):
    """Pick a tile size (multiple of `align`) and the padded dim it divides."""
    if dim >= max_tile:
        tile = max_tile
    else:
        tile = _round_up(dim, align)
    return tile, _round_up(dim, tile)


def _cparams(*sems):
    return pltpu.CompilerParams(dimension_semantics=sems,
                                vmem_limit_bytes=_VMEM_LIMIT)


def _apply_act(r, act):
    if act == "relu":
        return jnp.maximum(r, 0.0)
    if act == "gelu":
        # TODO(synk): PyTorch/BERT default to exact erf GELU; tanh approximation
        # is used here for guaranteed Mosaic lowering via the EUP.
        return jax.nn.gelu(r, approximate=True)
    return r


# ---------------------------------------------------------------------------
# Kernel 1: tiled matmul  o = act(x @ w [+ b])   (bf16 operands, f32 acc)
#   nk == 1  -> direct write, no accumulator scratch
#   nk  > 1  -> f32 VMEM accumulator with pl.when init/finalize on the K axis
# ---------------------------------------------------------------------------

def _mm_kernel_k1(x_ref, w_ref, *rest, act, has_bias):
    if has_bias:
        b_ref, o_ref = rest
    else:
        (o_ref,) = rest
    r = jnp.dot(x_ref[...], w_ref[...], preferred_element_type=jnp.float32)
    if has_bias:
        r = r + b_ref[...]
    o_ref[...] = _apply_act(r, act).astype(o_ref.dtype)


def _mm_kernel(x_ref, w_ref, *rest, act, has_bias):
    if has_bias:
        b_ref, o_ref, acc_ref = rest
    else:
        o_ref, acc_ref = rest
        b_ref = None
    k = pl.program_id(2)

    @pl.when(k == 0)
    def _():
        acc_ref[...] = jnp.zeros_like(acc_ref)

    acc_ref[...] += jnp.dot(x_ref[...], w_ref[...],
                            preferred_element_type=jnp.float32)

    @pl.when(k == pl.num_programs(2) - 1)
    def _():
        r = acc_ref[...]
        if b_ref is not None:
            r = r + b_ref[...]
        o_ref[...] = _apply_act(r, act).astype(o_ref.dtype)


def matmul(x, w, b=None, act=None, out_dtype=BF16,
           tm_max=512, tn_max=512, tk_max=512):
    M, K = x.shape
    K2, N = w.shape
    assert K == K2
    tm, Mp = _pick_tile(M, tm_max, 8)
    tn, Np = _pick_tile(N, tn_max, 128)
    if K <= tk_max:
        tk, Kp = K, K          # single K tile == full dim (no K padding needed)
    else:
        tk, Kp = tk_max, _round_up(K, tk_max)

    xp = x if (Mp, Kp) == (M, K) else _pad2(x, Mp, Kp)
    if xp.dtype != BF16:
        xp = xp.astype(BF16)
    wp = w if (Kp, Np) == (K, N) else _pad2(w, Kp, Np)
    if wp.dtype != BF16:
        wp = wp.astype(BF16)

    args = [xp, wp]
    has_bias = b is not None
    if has_bias:
        bp = jnp.reshape(b, (1, -1)).astype(F32)
        if bp.shape[1] != Np:
            bp = _pad2(bp, 1, Np)
        args.append(bp)

    nk = Kp // tk
    if nk == 1:
        in_specs = [pl.BlockSpec((tm, tk), lambda i, j: (i, 0)),
                    pl.BlockSpec((tk, tn), lambda i, j: (0, j))]
        if has_bias:
            in_specs.append(pl.BlockSpec((1, tn), lambda i, j: (0, j)))
        out = pl.pallas_call(
            functools.partial(_mm_kernel_k1, act=act, has_bias=has_bias),
            out_shape=jax.ShapeDtypeStruct((Mp, Np), out_dtype),
            grid_spec=pltpu.PrefetchScalarGridSpec(
                num_scalar_prefetch=0, grid=(Mp // tm, Np // tn),
                in_specs=in_specs,
                out_specs=pl.BlockSpec((tm, tn), lambda i, j: (i, j))),
            compiler_params=_cparams("parallel", "parallel"),
        )(*args)
    else:
        in_specs = [pl.BlockSpec((tm, tk), lambda i, j, k: (i, k)),
                    pl.BlockSpec((tk, tn), lambda i, j, k: (k, j))]
        if has_bias:
            in_specs.append(pl.BlockSpec((1, tn), lambda i, j, k: (0, j)))
        out = pl.pallas_call(
            functools.partial(_mm_kernel, act=act, has_bias=has_bias),
            out_shape=jax.ShapeDtypeStruct((Mp, Np), out_dtype),
            grid_spec=pltpu.PrefetchScalarGridSpec(
                num_scalar_prefetch=0, grid=(Mp // tm, Np // tn, nk),
                in_specs=in_specs,
                out_specs=pl.BlockSpec((tm, tn), lambda i, j, k: (i, j)),
                scratch_shapes=[pltpu.VMEM((tm, tn), jnp.float32)]),
            compiler_params=_cparams("parallel", "parallel", "arbitrary"),
        )(*args)
    if (Mp, Np) != (M, N):
        out = out[:M, :N]
    return out


# ---------------------------------------------------------------------------
# Kernel 2: GCN aggregation  o = act(Ahat @ XW + b)
#   XW is precomputed once (kernel 1) and kept fully resident in VMEM;
#   Ahat is K-tiled over node column tiles (reduction axis 'arbitrary').
# ---------------------------------------------------------------------------

def _gcn_ax_kernel(a_ref, xw_ref, b_ref, o_ref, acc_ref, *, act, t):
    k = pl.program_id(1)

    @pl.when(k == 0)
    def _():
        acc_ref[...] = jnp.zeros_like(acc_ref)

    start = pl.multiple_of(k * t, t)
    acc_ref[...] += jnp.dot(a_ref[...], xw_ref[pl.ds(start, t), :],
                            preferred_element_type=jnp.float32)

    @pl.when(k == pl.num_programs(1) - 1)
    def _():
        r = acc_ref[...] + b_ref[...]
        if act == "relu":
            r = jnp.maximum(r, 0.0)
        o_ref[...] = r.astype(o_ref.dtype)


def gcn_ax(ahat_p, xw_p, b_p, act, t):
    """ahat_p: (Np,Np) bf16 padded; xw_p: (Np,Gp) bf16 (resident); b_p: (1,Gp) f32."""
    Np = ahat_p.shape[0]
    Gp = xw_p.shape[1]
    # TODO(synk): a 3-layer fused variant with H kept in VMEM scratch would
    # also remove the intermediate (Np,Gp) HBM round trips between layers.
    return pl.pallas_call(
        functools.partial(_gcn_ax_kernel, act=act, t=t),
        out_shape=jax.ShapeDtypeStruct((Np, Gp), BF16),
        grid_spec=pltpu.PrefetchScalarGridSpec(
            num_scalar_prefetch=0, grid=(Np // t, Np // t),
            in_specs=[pl.BlockSpec((t, t), lambda i, k: (i, k)),      # Ahat tile
                      pl.BlockSpec((Np, Gp), lambda i, k: (0, 0)),    # XW resident
                      pl.BlockSpec((1, Gp), lambda i, k: (0, 0))],    # bias
            out_specs=pl.BlockSpec((t, Gp), lambda i, k: (i, 0)),
            scratch_shapes=[pltpu.VMEM((t, Gp), jnp.float32)]),
        compiler_params=_cparams("parallel", "arbitrary"),
    )(ahat_p, xw_p, b_p)


# ---------------------------------------------------------------------------
# Kernel 3: fused graph head  o = relu(pool @ h @ W1 + b1) @ W2 + b2
# ---------------------------------------------------------------------------

def _graph_head_kernel(p_ref, h_ref, w1_ref, b1_ref, w2_ref, b2_ref,
                       o_ref, acc_ref):
    k = pl.program_id(0)

    @pl.when(k == 0)
    def _():
        acc_ref[...] = jnp.zeros_like(acc_ref)

    acc_ref[...] += jnp.dot(p_ref[...], h_ref[...],
                            preferred_element_type=jnp.float32)

    @pl.when(k == pl.num_programs(0) - 1)
    def _():
        pooled = acc_ref[...].astype(BF16)
        z = jnp.dot(pooled, w1_ref[...], preferred_element_type=jnp.float32)
        z = jnp.maximum(z + b1_ref[...], 0.0).astype(BF16)
        o = jnp.dot(z, w2_ref[...], preferred_element_type=jnp.float32)
        o_ref[...] = (o + b2_ref[...]).astype(o_ref.dtype)


def graph_head(pool_p, h_p, w1_p, b1_p, w2_p, b2_p, t):
    Bp, Np = pool_p.shape
    Gp = h_p.shape[1]
    Hp = w1_p.shape[1]
    Op = w2_p.shape[1]
    # TODO(synk): single 'arbitrary' reduction grid keeps this on one TensorCore
    # on v7x; fine at these sizes.
    return pl.pallas_call(
        _graph_head_kernel,
        out_shape=jax.ShapeDtypeStruct((Bp, Op), F32),
        grid_spec=pltpu.PrefetchScalarGridSpec(
            num_scalar_prefetch=0, grid=(Np // t,),
            in_specs=[pl.BlockSpec((Bp, t), lambda k: (0, k)),
                      pl.BlockSpec((t, Gp), lambda k: (k, 0)),
                      pl.BlockSpec((Gp, Hp), lambda k: (0, 0)),
                      pl.BlockSpec((1, Hp), lambda k: (0, 0)),
                      pl.BlockSpec((Hp, Op), lambda k: (0, 0)),
                      pl.BlockSpec((1, Op), lambda k: (0, 0))],
            out_specs=pl.BlockSpec((Bp, Op), lambda k: (0, 0)),
            scratch_shapes=[pltpu.VMEM((Bp, Gp), jnp.float32)]),
        compiler_params=_cparams("arbitrary"),
    )(pool_p, h_p, w1_p, b1_p, w2_p, b2_p)


# ---------------------------------------------------------------------------
# Kernel 4: row-tiled LayerNorm (true feature width in the lane dim)
# ---------------------------------------------------------------------------

def _ln_kernel(x_ref, g_ref, b_ref, o_ref, *, eps):
    x = x_ref[...].astype(jnp.float32)
    mu = jnp.mean(x, axis=-1, keepdims=True)
    var = jnp.mean(jnp.square(x - mu), axis=-1, keepdims=True)
    y = (x - mu) * jax.lax.rsqrt(var + eps)
    o_ref[...] = (y * g_ref[...] + b_ref[...]).astype(o_ref.dtype)


def layernorm(x, gamma, beta, eps=1e-5, out_dtype=BF16, tr_max=512):
    R, D = x.shape
    tr, Rp = _pick_tile(R, tr_max, 8)
    xp = x if Rp == R else _pad2(x, Rp, D)
    g = jnp.reshape(gamma, (1, D)).astype(F32)
    b = jnp.reshape(beta, (1, D)).astype(F32)
    out = pl.pallas_call(
        functools.partial(_ln_kernel, eps=eps),
        out_shape=jax.ShapeDtypeStruct((Rp, D), out_dtype),
        grid_spec=pltpu.PrefetchScalarGridSpec(
            num_scalar_prefetch=0, grid=(Rp // tr,),
            in_specs=[pl.BlockSpec((tr, D), lambda i: (i, 0)),
                      pl.BlockSpec((1, D), lambda i: (0, 0)),
                      pl.BlockSpec((1, D), lambda i: (0, 0))],
            out_specs=pl.BlockSpec((tr, D), lambda i: (i, 0))),
        compiler_params=_cparams("parallel"),
    )(xp, g, b)
    return out[:R] if Rp != R else out


# ---------------------------------------------------------------------------
# Kernel 5: fused (matmul + bias + residual + LayerNorm)
#   o = LN(res + x @ w + b) ; residual is bf16 and upcast inside the kernel.
# ---------------------------------------------------------------------------

def _mm_res_ln_kernel_k1(x_ref, w_ref, b_ref, r_ref, g_ref, be_ref, o_ref,
                         *, eps):
    y = jnp.dot(x_ref[...], w_ref[...], preferred_element_type=jnp.float32)
    y = y + b_ref[...] + r_ref[...].astype(jnp.float32)
    mu = jnp.mean(y, axis=-1, keepdims=True)
    var = jnp.mean(jnp.square(y - mu), axis=-1, keepdims=True)
    y = (y - mu) * jax.lax.rsqrt(var + eps)
    o_ref[...] = (y * g_ref[...] + be_ref[...]).astype(o_ref.dtype)


def _mm_res_ln_kernel(x_ref, w_ref, b_ref, r_ref, g_ref, be_ref, o_ref,
                      acc_ref, *, eps):
    k = pl.program_id(1)

    @pl.when(k == 0)
    def _():
        acc_ref[...] = jnp.zeros_like(acc_ref)

    acc_ref[...] += jnp.dot(x_ref[...], w_ref[...],
                            preferred_element_type=jnp.float32)

    @pl.when(k == pl.num_programs(1) - 1)
    def _():
        y = acc_ref[...] + b_ref[...] + r_ref[...].astype(jnp.float32)
        mu = jnp.mean(y, axis=-1, keepdims=True)
        var = jnp.mean(jnp.square(y - mu), axis=-1, keepdims=True)
        y = (y - mu) * jax.lax.rsqrt(var + eps)
        o_ref[...] = (y * g_ref[...] + be_ref[...]).astype(o_ref.dtype)


def matmul_residual_layernorm(x, w, b, res, gamma, beta, eps=1e-5,
                              out_dtype=F32, tm_max=512, tk_max=512):
    M, K = x.shape
    K2, N = w.shape
    assert K == K2 and res.shape == (M, N)
    tm, Mp = _pick_tile(M, tm_max, 8)
    if K <= tk_max:
        tk, Kp = K, K
    else:
        tk, Kp = tk_max, _round_up(K, tk_max)
    xp = x if (Mp, Kp) == (M, K) else _pad2(x, Mp, Kp)
    if xp.dtype != BF16:
        xp = xp.astype(BF16)
    wp = w if Kp == K else _pad2(w, Kp, N)
    if wp.dtype != BF16:
        wp = wp.astype(BF16)
    rp = res if Mp == M else _pad2(res, Mp, N)   # stays bf16, upcast in kernel
    bv = jnp.reshape(b, (1, N)).astype(F32)
    gv = jnp.reshape(gamma, (1, N)).astype(F32)
    ev = jnp.reshape(beta, (1, N)).astype(F32)
    nk = Kp // tk
    if nk == 1:
        out = pl.pallas_call(
            functools.partial(_mm_res_ln_kernel_k1, eps=eps),
            out_shape=jax.ShapeDtypeStruct((Mp, N), out_dtype),
            grid_spec=pltpu.PrefetchScalarGridSpec(
                num_scalar_prefetch=0, grid=(Mp // tm,),
                in_specs=[pl.BlockSpec((tm, tk), lambda i: (i, 0)),
                          pl.BlockSpec((tk, N), lambda i: (0, 0)),
                          pl.BlockSpec((1, N), lambda i: (0, 0)),
                          pl.BlockSpec((tm, N), lambda i: (i, 0)),
                          pl.BlockSpec((1, N), lambda i: (0, 0)),
                          pl.BlockSpec((1, N), lambda i: (0, 0))],
                out_specs=pl.BlockSpec((tm, N), lambda i: (i, 0))),
            compiler_params=_cparams("parallel"),
        )(xp, wp, bv, rp, gv, ev)
    else:
        out = pl.pallas_call(
            functools.partial(_mm_res_ln_kernel, eps=eps),
            out_shape=jax.ShapeDtypeStruct((Mp, N), out_dtype),
            grid_spec=pltpu.PrefetchScalarGridSpec(
                num_scalar_prefetch=0, grid=(Mp // tm, nk),
                in_specs=[pl.BlockSpec((tm, tk), lambda i, k: (i, k)),
                          pl.BlockSpec((tk, N), lambda i, k: (k, 0)),
                          pl.BlockSpec((1, N), lambda i, k: (0, 0)),
                          pl.BlockSpec((tm, N), lambda i, k: (i, 0)),
                          pl.BlockSpec((1, N), lambda i, k: (0, 0)),
                          pl.BlockSpec((1, N), lambda i, k: (0, 0))],
                out_specs=pl.BlockSpec((tm, N), lambda i, k: (i, 0)),
                scratch_shapes=[pltpu.VMEM((tm, N), jnp.float32)]),
            compiler_params=_cparams("parallel", "arbitrary"),
        )(xp, wp, bv, rp, gv, ev)
    return out[:M] if Mp != M else out


# ---------------------------------------------------------------------------
# Kernel 6: flash-style single-head attention (S-tiled online softmax)
#   q/k/v are lane-block slices of the fused (B, Sp, 3*dp) QKV buffer.
# ---------------------------------------------------------------------------

def _flash_kernel(mb_ref, q_ref, k_ref, v_ref, o_ref, m_sc, l_sc, acc_sc,
                  *, scale):
    ki = pl.program_id(1)

    @pl.when(ki == 0)
    def _():
        m_sc[...] = jnp.full_like(m_sc, -1e30)
        l_sc[...] = jnp.zeros_like(l_sc)
        acc_sc[...] = jnp.zeros_like(acc_sc)

    q, k, v = q_ref[...], k_ref[...], v_ref[...]
    # TODO(synk): with a single head of width dp the contraction is narrow;
    # folding heads into the lane dim would raise MXU utilization for real BERT.
    s = jnp.einsum("bqd,bkd->bqk", q, k,
                   preferred_element_type=jnp.float32) * scale
    s = s + mb_ref[...][:, None, :]
    m_prev = m_sc[...]
    m_new = jnp.maximum(m_prev, jnp.max(s, axis=-1, keepdims=True))
    alpha = jnp.exp(m_prev - m_new)
    p = jnp.exp(s - m_new)
    l_sc[...] = alpha * l_sc[...] + jnp.sum(p, axis=-1, keepdims=True)
    acc_sc[...] = alpha * acc_sc[...] + jnp.einsum(
        "bqk,bkd->bqd", p.astype(v.dtype), v,
        preferred_element_type=jnp.float32)
    m_sc[...] = m_new

    @pl.when(ki == pl.num_programs(1) - 1)
    def _():
        o_ref[...] = (acc_sc[...] / l_sc[...]).astype(o_ref.dtype)


def flash_attention(qkv, mask_bias, dp, scale, tile):
    """qkv: (B, Sp, 3*dp) bf16; mask_bias: (B, Sp) f32 additive bias."""
    B, Sp, _ = qkv.shape
    n = Sp // tile
    return pl.pallas_call(
        functools.partial(_flash_kernel, scale=scale),
        out_shape=jax.ShapeDtypeStruct((B, Sp, dp), BF16),
        grid_spec=pltpu.PrefetchScalarGridSpec(
            num_scalar_prefetch=0, grid=(n, n),
            in_specs=[pl.BlockSpec((B, tile), lambda qi, ki: (0, ki)),
                      pl.BlockSpec((B, tile, dp), lambda qi, ki: (0, qi, 0)),
                      pl.BlockSpec((B, tile, dp), lambda qi, ki: (0, ki, 1)),
                      pl.BlockSpec((B, tile, dp), lambda qi, ki: (0, ki, 2))],
            out_specs=pl.BlockSpec((B, tile, dp), lambda qi, ki: (0, qi, 0)),
            scratch_shapes=[pltpu.VMEM((B, tile, 1), jnp.float32),
                            pltpu.VMEM((B, tile, 1), jnp.float32),
                            pltpu.VMEM((B, tile, dp), jnp.float32)]),
        compiler_params=_cparams("parallel", "arbitrary"),
    )(mask_bias, qkv, qkv, qkv)


# ---------------------------------------------------------------------------
# Model glue: params (pre-padded, pre-cast), dense GCN adjacency, pooling
# ---------------------------------------------------------------------------

def _glorot(key, shape):
    fan_in, fan_out = shape[0], shape[-1]
    lim = (6.0 / (fan_in + fan_out)) ** 0.5
    return jax.random.uniform(key, shape, F32, -lim, lim)


def _padded_weight(key, k_true, n_true, k_pad, n_pad):
    return _pad2(_glorot(key, (k_true, n_true)), k_pad, n_pad).astype(BF16)


def init_params(key, num_node_features, nout, nhid, graph_hidden_channels,
                vocab, seq_len, d_model):
    ks = jax.random.split(key, 16)
    f, g, h, o, d = num_node_features, graph_hidden_channels, nhid, nout, d_model
    fp, gp, hp, op = (_round_up(v, 128) for v in (f, g, h, o))
    dp = _round_up(d, 128)
    ffd = 4 * d
    ffp = _round_up(ffd, 128)
    p = {}
    # Graph encoder: weights pre-padded + pre-cast to bf16 ONCE; biases f32.
    p["gcn1_w"] = _padded_weight(ks[0], f, g, fp, gp)
    p["gcn1_b"] = jnp.zeros((1, gp), F32)
    p["gcn2_w"] = _padded_weight(ks[1], g, g, gp, gp)
    p["gcn2_b"] = jnp.zeros((1, gp), F32)
    p["gcn3_w"] = _padded_weight(ks[2], g, g, gp, gp)
    p["gcn3_b"] = jnp.zeros((1, gp), F32)
    p["mol1_w"] = _padded_weight(ks[3], g, h, gp, hp)
    p["mol1_b"] = jnp.zeros((1, hp), F32)
    p["mol2_w"] = _padded_weight(ks[4], h, o, hp, op)
    p["mol2_b"] = jnp.zeros((1, op), F32)
    # Text encoder stand-in.
    # TODO(synk): pretrained RobertaModel/DistilBERT/SciBERT weights cannot be
    # loaded here; a structurally equivalent 1-layer transformer encoder with
    # deterministic random weights stands in for `self.bert`.
    p["word_emb"] = 0.02 * jax.random.normal(ks[5], (vocab, d), F32)
    p["pos_emb"] = 0.02 * jax.random.normal(ks[6], (seq_len, d), F32)
    p["ln0_g"] = jnp.ones((d,), F32)
    p["ln0_b"] = jnp.zeros((d,), F32)
    # Fused QKV with each section padded to dp lanes (flash kernel slices by
    # lane-block index, so no jnp.split is needed downstream).
    wq = _glorot(ks[7], (d, d))
    wk = _glorot(ks[8], (d, d))
    wv = _glorot(ks[9], (d, d))
    wqkv = jnp.zeros((d, 3 * dp), F32)
    wqkv = wqkv.at[:, 0:d].set(wq)
    wqkv = wqkv.at[:, dp:dp + d].set(wk)
    wqkv = wqkv.at[:, 2 * dp:2 * dp + d].set(wv)
    p["wqkv"] = wqkv.astype(BF16)
    p["bqkv"] = jnp.zeros((1, 3 * dp), F32)
    p["wo"] = _pad2(_glorot(ks[10], (d, d)), dp, d).astype(BF16)
    p["bo"] = jnp.zeros((1, d), F32)
    p["ln1_g"] = jnp.ones((d,), F32)
    p["ln1_b"] = jnp.zeros((d,), F32)
    p["ff1_w"] = _pad2(_glorot(ks[11], (d, ffd)), d, ffp).astype(BF16)
    p["ff1_b"] = jnp.zeros((1, ffp), F32)
    p["ff2_w"] = _pad2(_glorot(ks[12], (ffd, d)), ffp, d).astype(BF16)
    p["ff2_b"] = jnp.zeros((1, d), F32)
    p["ln2_g"] = jnp.ones((d,), F32)
    p["ln2_b"] = jnp.zeros((d,), F32)
    return p


def dense_gcn_adj(edge_index, num_nodes, n_pad):
    """D^-1/2 (A + I) D^-1/2 built directly at padded size, bf16 (one pass)."""
    # TODO(synk): for large sparse graphs, replace dense Ahat with a blocked
    # sparse formulation via PrefetchScalarGridSpec (neighbor lists in SMEM).
    src, dst = edge_index[0], edge_index[1]
    a = jnp.zeros((n_pad, n_pad), F32)
    a = a.at[dst, src].add(1.0)
    self_loop = (jnp.arange(n_pad) < num_nodes).astype(F32)
    a = a + jnp.diag(self_loop)
    deg = jnp.sum(a, axis=1)
    d_inv_sqrt = jnp.where(deg > 0, jax.lax.rsqrt(deg), 0.0)
    return (a * d_inv_sqrt[:, None] * d_inv_sqrt[None, :]).astype(BF16)


def mean_pool_matrix(batch, num_graphs, n_cols_padded):
    onehot = (batch[None, :] == jnp.arange(num_graphs)[:, None]).astype(F32)
    counts = jnp.maximum(jnp.sum(onehot, axis=1, keepdims=True), 1.0)
    pool = onehot / counts
    return _pad2(pool, _round_up(num_graphs, 8), n_cols_padded).astype(BF16)


# ---------------------------------------------------------------------------
# Forward passes (dropout=0 -> identity, matching the module default)
# ---------------------------------------------------------------------------

def graph_encoder_forward(p, x, edge_index, batch, num_graphs, nout):
    n = x.shape[0]
    t, n_pad = _pick_tile(n, 256, 128)
    fp = p["gcn1_w"].shape[0]
    gp = p["mol1_w"].shape[0]
    x_p = _pad2(x, n_pad, fp).astype(BF16)
    if edge_index.size > 0:
        ahat_p = dense_gcn_adj(edge_index, n, n_pad)         # (n_pad, n_pad) bf16
        # per layer: XW computed once (small matmul), then Ahat-tiled aggregation
        xw = matmul(x_p, p["gcn1_w"], out_dtype=BF16)
        h = gcn_ax(ahat_p, xw, p["gcn1_b"], "relu", t)
        xw = matmul(h, p["gcn2_w"], out_dtype=BF16)
        h = gcn_ax(ahat_p, xw, p["gcn2_b"], "relu", t)
        xw = matmul(h, p["gcn3_w"], out_dtype=BF16)
        h = gcn_ax(ahat_p, xw, p["gcn3_b"], None, t)
    else:
        # TODO(synk): PyG GCNConv with empty edge_index still applies W,b; this
        # skip path (as in the original forward) requires F == hidden width.
        h = x_p[:, :gp] if fp >= gp else _pad2(x_p, n_pad, gp)
    pool = mean_pool_matrix(batch, num_graphs, n_pad)        # (Bp, n_pad) bf16
    out = graph_head(pool, h, p["mol1_w"], p["mol1_b"],
                     p["mol2_w"], p["mol2_b"], t)            # pool->mol1->mol2 fused
    return out[:num_graphs, :nout]


def text_encoder_forward(p, input_ids, attention_mask):
    B, S = input_ids.shape
    d = p["ln0_g"].shape[0]
    dp = p["wo"].shape[0]
    # embeddings (gather stays in XLA glue) + LayerNorm kernel (-> bf16)
    h = jnp.take(p["word_emb"], input_ids, axis=0) + p["pos_emb"][None, :S, :]
    hf = layernorm(h.reshape(B * S, d), p["ln0_g"], p["ln0_b"], out_dtype=BF16)
    # fused QKV projection; each of the 3 sections is padded to dp lanes
    qkv = matmul(hf, p["wqkv"], p["bqkv"], out_dtype=BF16)   # (B*S, 3*dp) bf16
    tile, Sp = _pick_tile(S, 256, 8)
    qkv3 = qkv.reshape(B, S, 3 * dp)
    mask_bias = (1.0 - attention_mask.astype(F32)) * (-1e9)
    if Sp != S:
        qkv3 = jnp.pad(qkv3, ((0, 0), (0, Sp - S), (0, 0)))
        mask_bias = jnp.pad(mask_bias, ((0, 0), (0, Sp - S)),
                            constant_values=-1e9)
    # TODO(synk): single-head stand-in scale; multi-head weights need 1/sqrt(head_dim)
    scale = 1.0 / float(d) ** 0.5
    ctx = flash_attention(qkv3, mask_bias, dp, scale, tile)  # (B, Sp, dp) bf16
    ctx2 = ctx[:, :S, :].reshape(B * S, dp) if Sp != S else ctx.reshape(B * S, dp)
    # output projection + residual + LN fused in one kernel (bf16 out)
    h1 = matmul_residual_layernorm(ctx2, p["wo"], p["bo"], hf,
                                   p["ln1_g"], p["ln1_b"], out_dtype=BF16)
    # feed-forward: gelu matmul, then FF2 + residual + LN fused
    ff = matmul(h1, p["ff1_w"], p["ff1_b"], act="gelu", out_dtype=BF16)
    h2 = matmul_residual_layernorm(ff, p["ff2_w"], p["ff2_b"], h1,
                                   p["ln2_g"], p["ln2_b"], out_dtype=F32)
    # last_hidden_state[:, 0, :] (CLS token); dropout(0) == identity
    return h2.reshape(B, S, d)[:, 0, :]


@functools.partial(jax.jit, static_argnums=(4, 5))
def baseline_model_forward(p, graph_x, edge_index, batch, num_graphs, nout,
                           input_ids, attention_mask):
    graph_encoded = graph_encoder_forward(p, graph_x, edge_index, batch,
                                          num_graphs, nout)
    text_encoded = text_encoder_forward(p, input_ids, attention_mask)
    return graph_encoded, text_encoded


# ---------------------------------------------------------------------------
# Demo
# ---------------------------------------------------------------------------

if __name__ == "__main__":
    key = jax.random.PRNGKey(0)

    # model hyper-params (small)
    num_node_features = 8
    nout = 32
    nhid = 32
    graph_hidden_channels = 32
    vocab = 32
    seq_len = 8
    d_model = 32

    # synthetic graph batch: 2 graphs of 8 nodes, bidirectional ring edges
    num_graphs = 2
    nodes_per_graph = 8
    n_nodes = num_graphs * nodes_per_graph
    k_x, k_ids, k_p = jax.random.split(key, 3)
    graph_x = jax.random.normal(k_x, (n_nodes, num_node_features), F32)

    src_list, dst_list = [], []
    for gidx in range(num_graphs):
        base = gidx * nodes_per_graph
        for i in range(nodes_per_graph):
            j = (i + 1) % nodes_per_graph
            src_list += [base + i, base + j]
            dst_list += [base + j, base + i]
    edge_index = jnp.array([src_list, dst_list], dtype=jnp.int32)
    batch = jnp.repeat(jnp.arange(num_graphs, dtype=jnp.int32), nodes_per_graph)

    # synthetic text batch
    input_ids = jax.random.randint(k_ids, (num_graphs, seq_len), 0, vocab,
                                   jnp.int32)
    attention_mask = jnp.ones((num_graphs, seq_len), jnp.int32).at[1, 6:].set(0)

    params = init_params(k_p, num_node_features, nout, nhid,
                         graph_hidden_channels, vocab, seq_len, d_model)

    graph_encoded, text_encoded = baseline_model_forward(
        params, graph_x, edge_index, batch, num_graphs, nout,
        input_ids, attention_mask)
    jax.block_until_ready((graph_encoded, text_encoded))

    assert graph_encoded.shape == (num_graphs, nout)
    assert text_encoded.shape == (num_graphs, d_model)
    assert bool(jnp.all(jnp.isfinite(graph_encoded)))
    assert bool(jnp.all(jnp.isfinite(text_encoded)))
    print("KERNEL_OK")
</pallas_src>

<mosaic_0001>
module attributes {stable_mosaic.version = 11 : i64} {
  func.func private @main(%arg0: i32) attributes {dimension_semantics = [#tpu.dimension_semantics<core_parallel>], iteration_bounds = array<i64: 2>, tpu.core_type = #tpu.core_type<sc_scalar_subcore>, window_params = []} {
    return
  }
}

module attributes {stable_mosaic.version = 11 : i64} {
  func.func private @main(%arg0: i32) attributes {dimension_semantics = [#tpu.dimension_semantics<core_parallel>], iteration_bounds = array<i64: 2>, tpu.core_type = #tpu.core_type<sc_scalar_subcore>, window_params = []} {
    return
  }
}

module attributes {stable_mosaic.version = 11 : i64} {
  func.func @_mm_kernel_k1(%arg0: i32, %arg1: i32, %arg2: memref<16x32xbf16, #tpu.memory_space<vmem>>, %arg3: memref<32x384xbf16, #tpu.memory_space<vmem>>, %arg4: memref<1x384xf32, #tpu.memory_space<vmem>>, %arg5: memref<16x384xbf16, #tpu.memory_space<vmem>>) attributes {dimension_semantics = [#tpu.dimension_semantics<parallel>, #tpu.dimension_semantics<parallel>], iteration_bounds = array<i64: 1, 1>, scalar_prefetch = 0 : i64, scratch_operands = 0 : i64, tpu.core_type = #tpu.core_type<tc>, window_params = [{transform_indices = @transform_0, window_bounds = array<i64: 16, 32>}, {transform_indices = @transform_1, window_bounds = array<i64: 32, 384>}, {transform_indices = @transform_2, window_bounds = array<i64: 1, 384>}, {transform_indices = @transform_3, window_bounds = array<i64: 16, 384>}]} {
    %c0 = arith.constant 0 : index
    %c0_0 = arith.constant 0 : index
    %0 = vector.load %arg2[%c0, %c0_0] : memref<16x32xbf16, #tpu.memory_space<vmem>>, vector<16x32xbf16>
    %c0_1 = arith.constant 0 : index
    %c0_2 = arith.constant 0 : index
    %1 = vector.load %arg3[%c0_1, %c0_2] : memref<32x384xbf16, #tpu.memory_space<vmem>>, vector<32x384xbf16>
    %cst = arith.constant dense<0.000000e+00> : vector<16x384xf32>
    %2 = tpu.matmul %0, %1, %cst {dimension_numbers = #tpu.dot_dimension_numbers<[1], [0], [0], [1], [0, 0, 1, 1], [], []>} : vector<16x32xbf16>, vector<32x384xbf16>, vector<16x384xf32> -> vector<16x384xf32>
    %c0_3 = arith.constant 0 : index
    %c0_4 = arith.constant 0 : index
    %3 = vector.load %arg4[%c0_3, %c0_4] : memref<1x384xf32, #tpu.memory_space<vmem>>, vector<1x384xf32>
    %4 = vector.broadcast %3 : vector<1x384xf32> to vector<16x384xf32>
    %5 = arith.addf %2, %4 : vector<16x384xf32>
    %6 = arith.truncf %5 : vector<16x384xf32> to vector<16x384xbf16>
    %c0_5 = arith.constant 0 : index
    %c0_6 = arith.constant 0 : index
    %7 = vector.load %arg5[%c0_5, %c0_6] : memref<16x384xbf16, #tpu.memory_space<vmem>>, vector<16x384xbf16>
    tpu.vector_store %arg5[%c0_5, %c0_6], %6 {strides = array<i32>} : memref<16x384xbf16, #tpu.memory_space<vmem>>, vector<16x384xbf16>,
    return
  }
  func.func @transform_0(%arg0: i32, %arg1: i32) -> (i32, i32) {
    %c0_i32 = arith.constant 0 : i32
    %c0_i32_0 = arith.constant 0 : i32
    return %arg0, %c0_i32 : i32, i32
  }
  func.func @transform_1(%arg0: i32, %arg1: i32) -> (i32, i32) {
    %c0_i32 = arith.constant 0 : i32
    %c0_i32_0 = arith.constant 0 : i32
    return %c0_i32, %arg1 : i32, i32
  }
  func.func @transform_2(%arg0: i32, %arg1: i32) -> (i32, i32) {
    %c0_i32 = arith.constant 0 : i32
    %c0_i32_0 = arith.constant 0 : i32
    return %c0_i32, %arg1 : i32, i32
  }
  func.func @transform_3(%arg0: i32, %arg1: i32) -> (i32, i32) {
    %c0_i32 = arith.constant 0 : i32
    return %arg0, %arg1 : i32, i32
  }
}

module attributes {stable_mosaic.version = 11 : i64} {
  func.func @_ln_kernel(%arg0: i32, %arg1: memref<16x32xf32, #tpu.memory_space<vmem>>, %arg2: memref<1x32xf32, #tpu.memory_space<vmem>>, %arg3: memref<1x32xf32, #tpu.memory_space<vmem>>, %arg4: memref<16x32xbf16, #tpu.memory_space<vmem>>) attributes {dimension_semantics = [#tpu.dimension_semantics<parallel>], iteration_bounds = array<i64: 1>, scalar_prefetch = 0 : i64, scratch_operands = 0 : i64, tpu.core_type = #tpu.core_type<tc>, window_params = [{transform_indices = @transform_0, window_bounds = array<i64: 16, 32>}, {pipeline_mode = #tpu.pipeline_mode<synchronous>, transform_indices = @transform_1, window_bounds = array<i64: 1, 32>}, {pipeline_mode = #tpu.pipeline_mode<synchronous>, transform_indices = @transform_2, window_bounds = array<i64: 1, 32>}, {transform_indices = @transform_3, window_bounds = array<i64: 16, 32>}]} {
    %c0 = arith.constant 0 : index
    %c0_0 = arith.constant 0 : index
    %0 = vector.load %arg1[%c0, %c0_0] : memref<16x32xf32, #tpu.memory_space<vmem>>, vector<16x32xf32>
    %cst = arith.constant dense<0.000000e+00> : vector<16xf32>
    %1 = vector.multi_reduction <add>, %0, %cst [1] : vector<16x32xf32> to vector<16xf32>
    %2 = vector.shape_cast %1 : vector<16xf32> to vector<16x1xf32>
    %cst_1 = arith.constant 3.200000e+01 : f32
    %3 = vector.broadcast %cst_1 : f32 to vector<16x1xf32>
    %4 = arith.divf %2, %3 : vector<16x1xf32>
    %5 = vector.broadcast %4 : vector<16x1xf32> to vector<16x32xf32>
    %6 = arith.subf %0, %5 : vector<16x32xf32>
    %7 = arith.mulf %6, %6 : vector<16x32xf32>
    %cst_2 = arith.constant dense<0.000000e+00> : vector<16xf32>
    %8 = vector.multi_reduction <add>, %7, %cst_2 [1] : vector<16x32xf32> to vector<16xf32>
    %9 = vector.shape_cast %8 : vector<16xf32> to vector<16x1xf32>
    %cst_3 = arith.constant 3.200000e+01 : f32
    %10 = vector.broadcast %cst_3 : f32 to vector<16x1xf32>
    %11 = arith.divf %9, %10 : vector<16x1xf32>
    %12 = vector.broadcast %4 : vector<16x1xf32> to vector<16x32xf32>
    %13 = arith.subf %0, %12 : vector<16x32xf32>
    %cst_4 = arith.constant 9.99999974E-6 : f32
    %14 = vector.broadcast %cst_4 : f32 to vector<16x1xf32>
    %15 = arith.addf %11, %14 : vector<16x1xf32>
    %16 = math.rsqrt %15 : vector<16x1xf32>
    %17 = vector.broadcast %16 : vector<16x1xf32> to vector<16x32xf32>
    %18 = arith.mulf %13, %17 : vector<16x32xf32>
    %c0_5 = arith.constant 0 : index
    %c0_6 = arith.constant 0 : index
    %19 = vector.load %arg2[%c0_5, %c0_6] : memref<1x32xf32, #tpu.memory_space<vmem>>, vector<1x32xf32>
    %20 = vector.broadcast %19 : vector<1x32xf32> to vector<16x32xf32>
    %21 = arith.mulf %18, %20 : vector<16x32xf32>
    %c0_7 = arith.constant 0 : index
    %c0_8 = arith.constant 0 : index
    %22 = vector.load %arg3[%c0_7, %c0_8] : memref<1x32xf32, #tpu.memory_space<vmem>>, vector<1x32xf32>
    %23 = vector.broadcast %22 : vector<1x32xf32> to vector<16x32xf32>
    %24 = arith.addf %21, %23 : vector<16x32xf32>
    %25 = arith.truncf %24 : vector<16x32xf32> to vector<16x32xbf16>
    %c0_9 = arith.constant 0 : index
    %c0_10 = arith.constant 0 : index
    %26 = vector.load %arg4[%c0_9, %c0_10] : memref<16x32xbf16, #tpu.memory_space<vmem>>, vector<16x32xbf16>
    tpu.vector_store %arg4[%c0_9, %c0_10], %25 {strides = array<i32>} : memref<16x32xbf16, #tpu.memory_space<vmem>>, vector<16x32xbf16>,
    return
  }
  func.func @transform_0(%arg0: i32) -> (i32, i32) {
    %c0_i32 = arith.constant 0 : i32
    %c0_i32_0 = arith.constant 0 : i32
    return %arg0, %c0_i32 : i32, i32
  }
  func.func @transform_1(%arg0: i32) -> (i32, i32) {
    %c0_i32 = arith.constant 0 : i32
    %c0_i32_0 = arith.constant 0 : i32
    %c0_i32_1 = arith.constant 0 : i32
    return %c0_i32, %c0_i32_0 : i32, i32
  }
  func.func @transform_2(%arg0: i32) -> (i32, i32) {
    %c0_i32 = arith.constant 0 : i32
    %c0_i32_0 = arith.constant 0 : i32
    %c0_i32_1 = arith.constant 0 : i32
    return %c0_i32, %c0_i32_0 : i32, i32
  }
  func.func @transform_3(%arg0: i32) -> (i32, i32) {
    %c0_i32 = arith.constant 0 : i32
    %c0_i32_0 = arith.constant 0 : i32
    return %arg0, %c0_i32 : i32, i32
  }
}

module attributes {stable_mosaic.version = 11 : i64} {
  func.func @_mm_res_ln_kernel_k1(%arg0: i32, %arg1: memref<16x128xbf16, #tpu.memory_space<vmem>>, %arg2: memref<128x32xbf16, #tpu.memory_space<vmem>>, %arg3: memref<1x32xf32, #tpu.memory_space<vmem>>, %arg4: memref<16x32xbf16, #tpu.memory_space<vmem>>, %arg5: memref<1x32xf32, #tpu.memory_space<vmem>>, %arg6: memref<1x32xf32, #tpu.memory_space<vmem>>, %arg7: memref<16x32xbf16, #tpu.memory_space<vmem>>) attributes {dimension_semantics = [#tpu.dimension_semantics<parallel>], iteration_bounds = array<i64: 1>, scalar_prefetch = 0 : i64, scratch_operands = 0 : i64, tpu.core_type = #tpu.core_type<tc>, window_params = [{transform_indices = @transform_0, window_bounds = array<i64: 16, 128>}, {pipeline_mode = #tpu.pipeline_mode<synchronous>, transform_indices = @transform_1, window_bounds = array<i64: 128, 32>}, {pipeline_mode = #tpu.pipeline_mode<synchronous>, transform_indices = @transform_2, window_bounds = array<i64: 1, 32>}, {transform_indices = @transform_3, window_bounds = array<i64: 16, 32>}, {pipeline_mode = #tpu.pipeline_mode<synchronous>, transform_indices = @transform_4, window_bounds = array<i64: 1, 32>}, {pipeline_mode = #tpu.pipeline_mode<synchronous>, transform_indices = @transform_5, window_bounds = array<i64: 1, 32>}, {transform_indices = @transform_6, window_bounds = array<i64: 16, 32>}]} {
    %c0 = arith.constant 0 : index
    %c0_0 = arith.constant 0 : index
    %0 = vector.load %arg1[%c0, %c0_0] : memref<16x128xbf16, #tpu.memory_space<vmem>>, vector<16x128xbf16>
    %c0_1 = arith.constant 0 : index
    %c0_2 = arith.constant 0 : index
    %1 = vector.load %arg2[%c0_1, %c0_2] : memref<128x32xbf16, #tpu.memory_space<vmem>>, vector<128x32xbf16>
    %cst = arith.constant dense<0.000000e+00> : vector<16x32xf32>
    %2 = tpu.matmul %0, %1, %cst {dimension_numbers = #tpu.dot_dimension_numbers<[1], [0], [0], [1], [0, 0, 1, 1], [], []>} : vector<16x128xbf16>, vector<128x32xbf16>, vector<16x32xf32> -> vector<16x32xf32>
    %c0_3 = arith.constant 0 : index
    %c0_4 = arith.constant 0 : index
    %3 = vector.load %arg3[%c0_3, %c0_4] : memref<1x32xf32, #tpu.memory_space<vmem>>, vector<1x32xf32>
    %4 = vector.broadcast %3 : vector<1x32xf32> to vector<16x32xf32>
    %5 = arith.addf %2, %4 : vector<16x32xf32>
    %c0_5 = arith.constant 0 : index
    %c0_6 = arith.constant 0 : index
    %6 = vector.load %arg4[%c0_5, %c0_6] : memref<16x32xbf16, #tpu.memory_space<vmem>>, vector<16x32xbf16>
    %7 = arith.extf %6 : vector<16x32xbf16> to vector<16x32xf32>
    %8 = arith.addf %5, %7 : vector<16x32xf32>
    %cst_7 = arith.constant dense<0.000000e+00> : vector<16xf32>
    %9 = vector.multi_reduction <add>, %8, %cst_7 [1] : vector<16x32xf32> to vector<16xf32>
    %10 = vector.shape_cast %9 : vector<16xf32> to vector<16x1xf32>
    %cst_8 = arith.constant 3.200000e+01 : f32
    %11 = vector.broadcast %cst_8 : f32 to vector<16x1xf32>
    %12 = arith.divf %10, %11 : vector<16x1xf32>
    %13 = vector.broadcast %12 : vector<16x1xf32> to vector<16x32xf32>
    %14 = arith.subf %8, %13 : vector<16x32xf32>
    %15 = arith.mulf %14, %14 : vector<16x32xf32>
    %cst_9 = arith.constant dense<0.000000e+00> : vector<16xf32>
    %16 = vector.multi_reduction <add>, %15, %cst_9 [1] : vector<16x32xf32> to vector<16xf32>
    %17 = vector.shape_cast %16 : vector<16xf32> to vector<16x1xf32>
    %cst_10 = arith.constant 3.200000e+01 : f32
    %18 = vector.broadcast %cst_10 : f32 to vector<16x1xf32>
    %19 = arith.divf %17, %18 : vector<16x1xf32>
    %20 = vector.broadcast %12 : vector<16x1xf32> to vector<16x32xf32>
    %21 = arith.subf %8, %20 : vector<16x32xf32>
    %cst_11 = arith.constant 9.99999974E-6 : f32
    %22 = vector.broadcast %cst_11 : f32 to vector<16x1xf32>
    %23 = arith.addf %19, %22 : vector<16x1xf32>
    %24 = math.rsqrt %23 : vector<16x1xf32>
    %25 = vector.broadcast %24 : vector<16x1xf32> to vector<16x32xf32>
    %26 = arith.mulf %21, %25 : vector<16x32xf32>
    %c0_12 = arith.constant 0 : index
    %c0_13 = arith.constant 0 : index
    %27 = vector.load %arg5[%c0_12, %c0_13] : memref<1x32xf32, #tpu.memory_space<vmem>>, vector<1x32xf32>
    %28 = vector.broadcast %27 : vector<1x32xf32> to vector<16x32xf32>
    %29 = arith.mulf %26, %28 : vector<16x32xf32>
    %c0_14 = arith.constant 0 : index
    %c0_15 = arith.constant 0 : index
    %30 = vector.load %arg6[%c0_14, %c0_15] : memref<1x32xf32, #tpu.memory_space<vmem>>, vector<1x32xf32>
    %31 = vector.broadcast %30 : vector<1x32xf32> to vector<16x32xf32>
    %32 = arith.addf %29, %31 : vector<16x32xf32>
    %33 = arith.truncf %32 : vector<16x32xf32> to vector<16x32xbf16>
    %c0_16 = arith.constant 0 : index
    %c0_17 = arith.constant 0 : index
    %34 = vector.load %arg7[%c0_16, %c0_17] : memref<16x32xbf16, #tpu.memory_space<vmem>>, vector<16x32xbf16>
    tpu.vector_store %arg7[%c0_16, %c0_17], %33 {strides = array<i32>} : memref<16x32xbf16, #tpu.memory_space<vmem>>, vector<16x32xbf16>,
    return
  }
  func.func @transform_0(%arg0: i32) -> (i32, i32) {
    %c0_i32 = arith.constant 0 : i32
    %c0_i32_0 = arith.constant 0 : i32
    return %arg0, %c0_i32 : i32, i32
  }
  func.func @transform_1(%arg0: i32) -> (i32, i32) {
    %c0_i32 = arith.constant 0 : i32
    %c0_i32_0 = arith.constant 0 : i32
    %c0_i32_1 = arith.constant 0 : i32
    return %c0_i32, %c0_i32_0 : i32, i32
  }
  func.func @transform_2(%arg0: i32) -> (i32, i32) {
    %c0_i32 = arith.constant 0 : i32
    %c0_i32_0 = arith.constant 0 : i32
    %c0_i32_1 = arith.constant 0 : i32
    return %c0_i32, %c0_i32_0 : i32, i32
  }
  func.func @transform_3(%arg0: i32) -> (i32, i32) {
    %c0_i32 = arith.constant 0 : i32
    %c0_i32_0 = arith.constant 0 : i32
    return %arg0, %c0_i32 : i32, i32
  }
  func.func @transform_4(%arg0: i32) -> (i32, i32) {
    %c0_i32 = arith.constant 0 : i32
    %c0_i32_0 = arith.constant 0 : i32
    %c0_i32_1 = arith.constant 0 : i32
    return %c0_i32, %c0_i32_0 : i32, i32
  }
  func.func @transform_5(%arg0: i32) -> (i32, i32) {
    %c0_i32 = arith.constant 0 : i32
    %c0_i32_0 = arith.constant 0 : i32
    %c0_i32_1 = arith.constant 0 : i32
    return %c0_i32, %c0_i32_0 : i32, i32
  }
  func.func @transform_6(%arg0: i32) -> (i32, i32) {
    %c0_i32 = arith.constant 0 : i32
    %c0_i32_0 = arith.constant 0 : i32
    return %arg0, %c0_i32 : i32, i32
  }
}

module attributes {stable_mosaic.version = 11 : i64} {
  func.func @_flash_kernel(%arg0: i32, %arg1: i32, %arg2: memref<2x8xf32, #tpu.memory_space<vmem>>, %arg3: memref<2x8x128xbf16, #tpu.memory_space<vmem>>, %arg4: memref<2x8x128xbf16, #tpu.memory_space<vmem>>, %arg5: memref<2x8x128xbf16, #tpu.memory_space<vmem>>, %arg6: memref<2x8x128xbf16, #tpu.memory_space<vmem>>, %arg7: memref<2x8x1xf32, #tpu.memory_space<vmem>>, %arg8: memref<2x8x1xf32, #tpu.memory_space<vmem>>, %arg9: memref<2x8x128xf32, #tpu.memory_space<vmem>>) attributes {dimension_semantics = [#tpu.dimension_semantics<parallel>, #tpu.dimension_semantics<arbitrary>], iteration_bounds = array<i64: 1, 1>, scalar_prefetch = 0 : i64, scratch_operands = 3 : i64, tpu.core_type = #tpu.core_type<tc>, window_params = [{transform_indices = @transform_0, window_bounds = array<i64: 2, 8>}, {transform_indices = @transform_1, window_bounds = array<i64: 2, 8, 128>}, {transform_indices = @transform_2, window_bounds = array<i64: 2, 8, 128>}, {transform_indices = @transform_3, window_bounds = array<i64: 2, 8, 128>}, {transform_indices = @transform_4, window_bounds = array<i64: 2, 8, 128>}]} {
    %c0_i32 = arith.constant 0 : i32
    %0 = arith.cmpi eq, %arg1, %c0_i32 : i32
    %1 = arith.extui %0 : i1 to i32
    %c0_i32_0 = arith.constant 0 : i32
    %2 = arith.cmpi ne, %1, %c0_i32_0 : i32
    scf.if %2 {
      %cst_35 = arith.constant -1.000000e+30 : f32
      %39 = vector.broadcast %cst_35 : f32 to vector<2x8x1xf32>
      %c0_36 = arith.constant 0 : index
      %c0_37 = arith.constant 0 : index
      %c0_38 = arith.constant 0 : index
      %40 = vector.load %arg7[%c0_36, %c0_37, %c0_38] : memref<2x8x1xf32, #tpu.memory_space<vmem>>, vector<2x8x1xf32>
      tpu.vector_store %arg7[%c0_36, %c0_37, %c0_38], %39 {strides = array<i32>} : memref<2x8x1xf32, #tpu.memory_space<vmem>>, vector<2x8x1xf32>,
      %cst_39 = arith.constant 0.000000e+00 : f32
      %41 = vector.broadcast %cst_39 : f32 to vector<2x8x1xf32>
      %c0_40 = arith.constant 0 : index
      %c0_41 = arith.constant 0 : index
      %c0_42 = arith.constant 0 : index
      %42 = vector.load %arg8[%c0_40, %c0_41, %c0_42] : memref<2x8x1xf32, #tpu.memory_space<vmem>>, vector<2x8x1xf32>
      tpu.vector_store %arg8[%c0_40, %c0_41, %c0_42], %41 {strides = array<i32>} : memref<2x8x1xf32, #tpu.memory_space<vmem>>, vector<2x8x1xf32>,
      %cst_43 = arith.constant 0.000000e+00 : f32
      %43 = vector.broadcast %cst_43 : f32 to vector<2x8x128xf32>
      %c0_44 = arith.constant 0 : index
      %c0_45 = arith.constant 0 : index
      %c0_46 = arith.constant 0 : index
      %44 = vector.load %arg9[%c0_44, %c0_45, %c0_46] : memref<2x8x128xf32, #tpu.memory_space<vmem>>, vector<2x8x128xf32>
      tpu.vector_store %arg9[%c0_44, %c0_45, %c0_46], %43 {strides = array<i32>} : memref<2x8x128xf32, #tpu.memory_space<vmem>>, vector<2x8x128xf32>,
    } else {
    }
    %c0 = arith.constant 0 : index
    %c0_1 = arith.constant 0 : index
    %c0_2 = arith.constant 0 : index
    %3 = vector.load %arg3[%c0, %c0_1, %c0_2] : memref<2x8x128xbf16, #tpu.memory_space<vmem>>, vector<2x8x128xbf16>
    %c0_3 = arith.constant 0 : index
    %c0_4 = arith.constant 0 : index
    %c0_5 = arith.constant 0 : index
    %4 = vector.load %arg4[%c0_3, %c0_4, %c0_5] : memref<2x8x128xbf16, #tpu.memory_space<vmem>>, vector<2x8x128xbf16>
    %c0_6 = arith.constant 0 : index
    %c0_7 = arith.constant 0 : index
    %c0_8 = arith.constant 0 : index
    %5 = vector.load %arg5[%c0_6, %c0_7, %c0_8] : memref<2x8x128xbf16, #tpu.memory_space<vmem>>, vector<2x8x128xbf16>
    "tpu.trace_start"() <{level = 10 : i32, message = "bqd,bkd->bqk"}> : () -> ()
    %cst = arith.constant dense<0.000000e+00> : vector<2x8x8xf32>
    %6 = tpu.matmul %3, %4, %cst {dimension_numbers = #tpu.dot_dimension_numbers<[2], [2], [1], [1], [0, 0, 0, 1, 1, 1], [0], [0]>} : vector<2x8x128xbf16>, vector<2x8x128xbf16>, vector<2x8x8xf32> -> vector<2x8x8xf32>
    "tpu.trace_stop"() : () -> ()
    %cst_9 = arith.constant 0.176776692 : f32
    %7 = vector.broadcast %cst_9 : f32 to vector<2x8x8xf32>
    %8 = arith.mulf %6, %7 : vector<2x8x8xf32>
    %c0_10 = arith.constant 0 : index
    %c0_11 = arith.constant 0 : index
    %9 = vector.load %arg2[%c0_10, %c0_11] : memref<2x8xf32, #tpu.memory_space<vmem>>, vector<2x8xf32>
    %10 = vector.shape_cast %9 : vector<2x8xf32> to vector<2x1x8xf32>
    %11 = vector.broadcast %10 : vector<2x1x8xf32> to vector<2x8x8xf32>
    %12 = arith.addf %8, %11 : vector<2x8x8xf32>
    %c0_12 = arith.constant 0 : index
    %c0_13 = arith.constant 0 : index
    %c0_14 = arith.constant 0 : index
    %13 = vector.load %arg7[%c0_12, %c0_13, %c0_14] : memref<2x8x1xf32, #tpu.memory_space<vmem>>, vector<2x8x1xf32>
    %cst_15 = arith.constant dense<0xFF800000> : vector<2x8xf32>
    %14 = vector.multi_reduction <maximumf>, %12, %cst_15 [2] : vector<2x8x8xf32> to vector<2x8xf32>
    %15 = vector.shape_cast %14 : vector<2x8xf32> to vector<2x8x1xf32>
    %16 = arith.maximumf %13, %15 : vector<2x8x1xf32>
    %17 = arith.subf %13, %16 : vector<2x8x1xf32>
    %18 = math.exp %17 : vector<2x8x1xf32>
    %19 = vector.broadcast %16 : vector<2x8x1xf32> to vector<2x8x8xf32>
    %20 = arith.subf %12, %19 : vector<2x8x8xf32>
    %21 = math.exp %20 : vector<2x8x8xf32>
    %c0_16 = arith.constant 0 : index
    %c0_17 = arith.constant 0 : index
    %c0_18 = arith.constant 0 : index
    %22 = vector.load %arg8[%c0_16, %c0_17, %c0_18] : memref<2x8x1xf32, #tpu.memory_space<vmem>>, vector<2x8x1xf32>
    %23 = arith.mulf %18, %22 : vector<2x8x1xf32>
    %cst_19 = arith.constant dense<0.000000e+00> : vector<2x8xf32>
    %24 = vector.multi_reduction <add>, %21, %cst_19 [2] : vector<2x8x8xf32> to vector<2x8xf32>
    %25 = vector.shape_cast %24 : vector<2x8xf32> to vector<2x8x1xf32>
    %26 = arith.addf %23, %25 : vector<2x8x1xf32>
    %c0_20 = arith.constant 0 : index
    %c0_21 = arith.constant 0 : index
    %c0_22 = arith.constant 0 : index
    %27 = vector.load %arg8[%c0_20, %c0_21, %c0_22] : memref<2x8x1xf32, #tpu.memory_space<vmem>>, vector<2x8x1xf32>
    tpu.vector_store %arg8[%c0_20, %c0_21, %c0_22], %26 {strides = array<i32>} : memref<2x8x1xf32, #tpu.memory_space<vmem>>, vector<2x8x1xf32>,
    %c0_23 = arith.constant 0 : index
    %c0_24 = arith.constant 0 : index
    %c0_25 = arith.constant 0 : index
    %28 = vector.load %arg9[%c0_23, %c0_24, %c0_25] : memref<2x8x128xf32, #tpu.memory_space<vmem>>, vector<2x8x128xf32>
    %29 = vector.broadcast %18 : vector<2x8x1xf32> to vector<2x8x128xf32>
    %30 = arith.mulf %29, %28 : vector<2x8x128xf32>
    %31 = arith.truncf %21 : vector<2x8x8xf32> to vector<2x8x8xbf16>
    "tpu.trace_start"() <{level = 10 : i32, message = "bqk,bkd->bqd"}> : () -> ()
    %cst_26 = arith.constant dense<0.000000e+00> : vector<2x8x128xf32>
    %32 = tpu.matmul %31, %5, %cst_26 {dimension_numbers = #tpu.dot_dimension_numbers<[2], [1], [1], [2], [0, 0, 0, 1, 1, 2], [0], [0]>} : vector<2x8x8xbf16>, vector<2x8x128xbf16>, vector<2x8x128xf32> -> vector<2x8x128xf32>
    "tpu.trace_stop"() : () -> ()
    %33 = arith.addf %30, %32 : vector<2x8x128xf32>
    %c0_27 = arith.constant 0 : index
    %c0_28 = arith.constant 0 : index
    %c0_29 = arith.constant 0 : index
    %34 = vector.load %arg9[%c0_27, %c0_28, %c0_29] : memref<2x8x128xf32, #tpu.memory_space<vmem>>, vector<2x8x128xf32>
    tpu.vector_store %arg9[%c0_27, %c0_28, %c0_29], %33 {strides = array<i32>} : memref<2x8x128xf32, #tpu.memory_space<vmem>>, vector<2x8x128xf32>,
    %c0_30 = arith.constant 0 : index
    %c0_31 = arith.constant 0 : index
    %c0_32 = arith.constant 0 : index
    %35 = vector.load %arg7[%c0_30, %c0_31, %c0_32] : memref<2x8x1xf32, #tpu.memory_space<vmem>>, vector<2x8x1xf32>
    tpu.vector_store %arg7[%c0_30, %c0_31, %c0_32], %16 {strides = array<i32>} : memref<2x8x1xf32, #tpu.memory_space<vmem>>, vector<2x8x1xf32>,
    %c0_i32_33 = arith.constant 0 : i32
    %36 = arith.cmpi eq, %arg1, %c0_i32_33 : i32
    %37 = arith.extui %36 : i1 to i32
    %c0_i32_34 = arith.constant 0 : i32
    %38 = arith.cmpi ne, %37, %c0_i32_34 : i32
    scf.if %38 {
      %c0_35 = arith.constant 0 : index
      %c0_36 = arith.constant 0 : index
      %c0_37 = arith.constant 0 : index
      %39 = vector.load %arg9[%c0_35, %c0_36, %c0_37] : memref<2x8x128xf32, #tpu.memory_space<vmem>>, vector<2x8x128xf32>
      %c0_38 = arith.constant 0 : index
      %c0_39 = arith.constant 0 : index
      %c0_40 = arith.constant 0 : index
      %40 = vector.load %arg8[%c0_38, %c0_39, %c0_40] : memref<2x8x1xf32, #tpu.memory_space<vmem>>, vector<2x8x1xf32>
      %41 = vector.broadcast %40 : vector<2x8x1xf32> to vector<2x8x128xf32>
      %42 = arith.divf %39, %41 : vector<2x8x128xf32>
      %43 = arith.truncf %42 : vector<2x8x128xf32> to vector<2x8x128xbf16>
      %c0_41 = arith.constant 0 : index
      %c0_42 = arith.constant 0 : index
      %c0_43 = arith.constant 0 : index
      %44 = vector.load %arg6[%c0_41, %c0_42, %c0_43] : memref<2x8x128xbf16, #tpu.memory_space<vmem>>, vector<2x8x128xbf16>
      tpu.vector_store %arg6[%c0_41, %c0_42, %c0_43], %43 {strides = array<i32>} : memref<2x8x128xbf16, #tpu.memory_space<vmem>>, vector<2x8x128xbf16>,
    } else {
    }
    return
  }
  func.func @transform_0(%arg0: i32, %arg1: i32) -> (i32, i32) {
    %c0_i32 = arith.constant 0 : i32
    %c0_i32_0 = arith.constant 0 : i32
    return %c0_i32, %arg1 : i32, i32
  }
  func.func @transform_1(%arg0: i32, %arg1: i32) -> (i32, i32, i32) {
    %c0_i32 = arith.constant 0 : i32
    %c0_i32_0 = arith.constant 0 : i32
    %c0_i32_1 = arith.constant 0 : i32
    return %c0_i32, %arg0, %c0_i32_0 : i32, i32, i32
  }
  func.func @transform_2(%arg0: i32, %arg1: i32) -> (i32, i32, i32) {
    %c0_i32 = arith.constant 0 : i32
    %c1_i32 = arith.constant 1 : i32
    %c0_i32_0 = arith.constant 0 : i32
    return %c0_i32, %arg1, %c1_i32 : i32, i32, i32
  }
  func.func @transform_3(%arg0: i32, %arg1: i32) -> (i32, i32, i32) {
    %c0_i32 = arith.constant 0 : i32
    %c2_i32 = arith.constant 2 : i32
    %c0_i32_0 = arith.constant 0 : i32
    return %c0_i32, %arg1, %c2_i32 : i32, i32, i32
  }
  func.func @transform_4(%arg0: i32, %arg1: i32) -> (i32, i32, i32) {
    %c0_i32 = arith.constant 0 : i32
    %c0_i32_0 = arith.constant 0 : i32
    %c0_i32_1 = arith.constant 0 : i32
    return %c0_i32, %arg0, %c0_i32_0 : i32, i32, i32
  }
}

module attributes {stable_mosaic.version = 11 : i64} {
  func.func @_mm_kernel_k1(%arg0: i32, %arg1: i32, %arg2: memref<16x32xbf16, #tpu.memory_space<vmem>>, %arg3: memref<32x128xbf16, #tpu.memory_space<vmem>>, %arg4: memref<1x128xf32, #tpu.memory_space<vmem>>, %arg5: memref<16x128xbf16, #tpu.memory_space<vmem>>) attributes {dimension_semantics = [#tpu.dimension_semantics<parallel>, #tpu.dimension_semantics<parallel>], iteration_bounds = array<i64: 1, 1>, scalar_prefetch = 0 : i64, scratch_operands = 0 : i64, tpu.core_type = #tpu.core_type<tc>, window_params = [{transform_indices = @transform_0, window_bounds = array<i64: 16, 32>}, {transform_indices = @transform_1, window_bounds = array<i64: 32, 128>}, {transform_indices = @transform_2, window_bounds = array<i64: 1, 128>}, {transform_indices = @transform_3, window_bounds = array<i64: 16, 128>}]} {
    %c0 = arith.constant 0 : index
    %c0_0 = arith.constant 0 : index
    %0 = vector.load %arg2[%c0, %c0_0] : memref<16x32xbf16, #tpu.memory_space<vmem>>, vector<16x32xbf16>
    %c0_1 = arith.constant 0 : index
    %c0_2 = arith.constant 0 : index
    %1 = vector.load %arg3[%c0_1, %c0_2] : memref<32x128xbf16, #tpu.memory_space<vmem>>, vector<32x128xbf16>
    %cst = arith.constant dense<0.000000e+00> : vector<16x128xf32>
    %2 = tpu.matmul %0, %1, %cst {dimension_numbers = #tpu.dot_dimension_numbers<[1], [0], [0], [1], [0, 0, 1, 1], [], []>} : vector<16x32xbf16>, vector<32x128xbf16>, vector<16x128xf32> -> vector<16x128xf32>
    %c0_3 = arith.constant 0 : index
    %c0_4 = arith.constant 0 : index
    %3 = vector.load %arg4[%c0_3, %c0_4] : memref<1x128xf32, #tpu.memory_space<vmem>>, vector<1x128xf32>
    %4 = vector.broadcast %3 : vector<1x128xf32> to vector<16x128xf32>
    %5 = arith.addf %2, %4 : vector<16x128xf32>
    %6 = arith.mulf %5, %5 : vector<16x128xf32>
    %7 = arith.mulf %5, %6 : vector<16x128xf32>
    %cst_5 = arith.constant 4.471500e-02 : f32
    %8 = vector.broadcast %cst_5 : f32 to vector<16x128xf32>
    %9 = arith.mulf %8, %7 : vector<16x128xf32>
    %10 = arith.addf %5, %9 : vector<16x128xf32>
    %cst_6 = arith.constant 0.797884583 : f32
    %11 = vector.broadcast %cst_6 : f32 to vector<16x128xf32>
    %12 = arith.mulf %11, %10 : vector<16x128xf32>
    %13 = math.tanh %12 : vector<16x128xf32>
    %cst_7 = arith.constant 1.000000e+00 : f32
    %14 = vector.broadcast %cst_7 : f32 to vector<16x128xf32>
    %15 = arith.addf %14, %13 : vector<16x128xf32>
    %cst_8 = arith.constant 5.000000e-01 : f32
    %16 = vector.broadcast %cst_8 : f32 to vector<16x128xf32>
    %17 = arith.mulf %16, %15 : vector<16x128xf32>
    %18 = arith.mulf %5, %17 : vector<16x128xf32>
    %19 = arith.truncf %18 : vector<16x128xf32> to vector<16x128xbf16>
    %c0_9 = arith.constant 0 : index
    %c0_10 = arith.constant 0 : index
    %20 = vector.load %arg5[%c0_9, %c0_10] : memref<16x128xbf16, #tpu.memory_space<vmem>>, vector<16x128xbf16>
    tpu.vector_store %arg5[%c0_9, %c0_10], %19 {strides = array<i32>} : memref<16x128xbf16, #tpu.memory_space<vmem>>, vector<16x128xbf16>,
    return
  }
  func.func @transform_0(%arg0: i32, %arg1: i32) -> (i32, i32) {
    %c0_i32 = arith.constant 0 : i32
    %c0_i32_0 = arith.constant 0 : i32
    return %arg0, %c0_i32 : i32, i32
  }
  func.func @transform_1(%arg0: i32, %arg1: i32) -> (i32, i32) {
    %c0_i32 = arith.constant 0 : i32
    %c0_i32_0 = arith.constant 0 : i32
    return %c0_i32, %arg1 : i32, i32
  }
  func.func @transform_2(%arg0: i32, %arg1: i32) -> (i32, i32) {
    %c0_i32 = arith.constant 0 : i32
    %c0_i32_0 = arith.constant 0 : i32
    return %c0_i32, %arg1 : i32, i32
  }
  func.func @transform_3(%arg0: i32, %arg1: i32) -> (i32, i32) {
    %c0_i32 = arith.constant 0 : i32
    return %arg0, %arg1 : i32, i32
  }
}

module attributes {stable_mosaic.version = 11 : i64} {
  func.func @_mm_kernel_k1(%arg0: i32, %arg1: i32, %arg2: memref<128x128xbf16, #tpu.memory_space<vmem>>, %arg3: memref<128x128xbf16, #tpu.memory_space<vmem>>, %arg4: memref<128x128xbf16, #tpu.memory_space<vmem>>) attributes {dimension_semantics = [#tpu.dimension_semantics<parallel>, #tpu.dimension_semantics<parallel>], iteration_bounds = array<i64: 1, 1>, scalar_prefetch = 0 : i64, scratch_operands = 0 : i64, tpu.core_type = #tpu.core_type<tc>, window_params = [{transform_indices = @transform_0, window_bounds = array<i64: 128, 128>}, {transform_indices = @transform_1, window_bounds = array<i64: 128, 128>}, {transform_indices = @transform_2, window_bounds = array<i64: 128, 128>}]} {
    %c0 = arith.constant 0 : index
    %c0_0 = arith.constant 0 : index
    %0 = vector.load %arg2[%c0, %c0_0] : memref<128x128xbf16, #tpu.memory_space<vmem>>, vector<128x128xbf16>
    %c0_1 = arith.constant 0 : index
    %c0_2 = arith.constant 0 : index
    %1 = vector.load %arg3[%c0_1, %c0_2] : memref<128x128xbf16, #tpu.memory_space<vmem>>, vector<128x128xbf16>
    %cst = arith.constant dense<0.000000e+00> : vector<128x128xf32>
    %2 = tpu.matmul %0, %1, %cst {dimension_numbers = #tpu.dot_dimension_numbers<[1], [0], [0], [1], [0, 0, 1, 1], [], []>} : vector<128x128xbf16>, vector<128x128xbf16>, vector<128x128xf32> -> vector<128x128xf32>
    %3 = arith.truncf %2 : vector<128x128xf32> to vector<128x128xbf16>
    %c0_3 = arith.constant 0 : index
    %c0_4 = arith.constant 0 : index
    %4 = vector.load %arg4[%c0_3, %c0_4] : memref<128x128xbf16, #tpu.memory_space<vmem>>, vector<128x128xbf16>
    tpu.vector_store %arg4[%c0_3, %c0_4], %3 {strides = array<i32>} : memref<128x128xbf16, #tpu.memory_space<vmem>>, vector<128x128xbf16>,
    return
  }
  func.func @transform_0(%arg0: i32, %arg1: i32) -> (i32, i32) {
    %c0_i32 = arith.constant 0 : i32
    %c0_i32_0 = arith.constant 0 : i32
    return %arg0, %c0_i32 : i32, i32
  }
  func.func @transform_1(%arg0: i32, %arg1: i32) -> (i32, i32) {
    %c0_i32 = arith.constant 0 : i32
    %c0_i32_0 = arith.constant 0 : i32
    return %c0_i32, %arg1 : i32, i32
  }
  func.func @transform_2(%arg0: i32, %arg1: i32) -> (i32, i32) {
    %c0_i32 = arith.constant 0 : i32
    return %arg0, %arg1 : i32, i32
  }
}

module attributes {stable_mosaic.version = 11 : i64} {
  func.func @_mm_res_ln_kernel_k1(%arg0: i32, %arg1: memref<16x128xbf16, #tpu.memory_space<vmem>>, %arg2: memref<128x32xbf16, #tpu.memory_space<vmem>>, %arg3: memref<1x32xf32, #tpu.memory_space<vmem>>, %arg4: memref<16x32xbf16, #tpu.memory_space<vmem>>, %arg5: memref<1x32xf32, #tpu.memory_space<vmem>>, %arg6: memref<1x32xf32, #tpu.memory_space<vmem>>, %arg7: memref<16x32xf32, #tpu.memory_space<vmem>>) attributes {dimension_semantics = [#tpu.dimension_semantics<parallel>], iteration_bounds = array<i64: 1>, scalar_prefetch = 0 : i64, scratch_operands = 0 : i64, tpu.core_type = #tpu.core_type<tc>, window_params = [{transform_indices = @transform_0, window_bounds = array<i64: 16, 128>}, {pipeline_mode = #tpu.pipeline_mode<synchronous>, transform_indices = @transform_1, window_bounds = array<i64: 128, 32>}, {pipeline_mode = #tpu.pipeline_mode<synchronous>, transform_indices = @transform_2, window_bounds = array<i64: 1, 32>}, {transform_indices = @transform_3, window_bounds = array<i64: 16, 32>}, {pipeline_mode = #tpu.pipeline_mode<synchronous>, transform_indices = @transform_4, window_bounds = array<i64: 1, 32>}, {pipeline_mode = #tpu.pipeline_mode<synchronous>, transform_indices = @transform_5, window_bounds = array<i64: 1, 32>}, {transform_indices = @transform_6, window_bounds = array<i64: 16, 32>}]} {
    %c0 = arith.constant 0 : index
    %c0_0 = arith.constant 0 : index
    %0 = vector.load %arg1[%c0, %c0_0] : memref<16x128xbf16, #tpu.memory_space<vmem>>, vector<16x128xbf16>
    %c0_1 = arith.constant 0 : index
    %c0_2 = arith.constant 0 : index
    %1 = vector.load %arg2[%c0_1, %c0_2] : memref<128x32xbf16, #tpu.memory_space<vmem>>, vector<128x32xbf16>
    %cst = arith.constant dense<0.000000e+00> : vector<16x32xf32>
    %2 = tpu.matmul %0, %1, %cst {dimension_numbers = #tpu.dot_dimension_numbers<[1], [0], [0], [1], [0, 0, 1, 1], [], []>} : vector<16x128xbf16>, vector<128x32xbf16>, vector<16x32xf32> -> vector<16x32xf32>
    %c0_3 = arith.constant 0 : index
    %c0_4 = arith.constant 0 : index
    %3 = vector.load %arg3[%c0_3, %c0_4] : memref<1x32xf32, #tpu.memory_space<vmem>>, vector<1x32xf32>
    %4 = vector.broadcast %3 : vector<1x32xf32> to vector<16x32xf32>
    %5 = arith.addf %2, %4 : vector<16x32xf32>
    %c0_5 = arith.constant 0 : index
    %c0_6 = arith.constant 0 : index
    %6 = vector.load %arg4[%c0_5, %c0_6] : memref<16x32xbf16, #tpu.memory_space<vmem>>, vector<16x32xbf16>
    %7 = arith.extf %6 : vector<16x32xbf16> to vector<16x32xf32>
    %8 = arith.addf %5, %7 : vector<16x32xf32>
    %cst_7 = arith.constant dense<0.000000e+00> : vector<16xf32>
    %9 = vector.multi_reduction <add>, %8, %cst_7 [1] : vector<16x32xf32> to vector<16xf32>
    %10 = vector.shape_cast %9 : vector<16xf32> to vector<16x1xf32>
    %cst_8 = arith.constant 3.200000e+01 : f32
    %11 = vector.broadcast %cst_8 : f32 to vector<16x1xf32>
    %12 = arith.divf %10, %11 : vector<16x1xf32>
    %13 = vector.broadcast %12 : vector<16x1xf32> to vector<16x32xf32>
    %14 = arith.subf %8, %13 : vector<16x32xf32>
    %15 = arith.mulf %14, %14 : vector<16x32xf32>
    %cst_9 = arith.constant dense<0.000000e+00> : vector<16xf32>
    %16 = vector.multi_reduction <add>, %15, %cst_9 [1] : vector<16x32xf32> to vector<16xf32>
    %17 = vector.shape_cast %16 : vector<16xf32> to vector<16x1xf32>
    %cst_10 = arith.constant 3.200000e+01 : f32
    %18 = vector.broadcast %cst_10 : f32 to vector<16x1xf32>
    %19 = arith.divf %17, %18 : vector<16x1xf32>
    %20 = vector.broadcast %12 : vector<16x1xf32> to vector<16x32xf32>
    %21 = arith.subf %8, %20 : vector<16x32xf32>
    %cst_11 = arith.constant 9.99999974E-6 : f32
    %22 = vector.broadcast %cst_11 : f32 to vector<16x1xf32>
    %23 = arith.addf %19, %22 : vector<16x1xf32>
    %24 = math.rsqrt %23 : vector<16x1xf32>
    %25 = vector.broadcast %24 : vector<16x1xf32> to vector<16x32xf32>
    %26 = arith.mulf %21, %25 : vector<16x32xf32>
    %c0_12 = arith.constant 0 : index
    %c0_13 = arith.constant 0 : index
    %27 = vector.load %arg5[%c0_12, %c0_13] : memref<1x32xf32, #tpu.memory_space<vmem>>, vector<1x32xf32>
    %28 = vector.broadcast %27 : vector<1x32xf32> to vector<16x32xf32>
    %29 = arith.mulf %26, %28 : vector<16x32xf32>
    %c0_14 = arith.constant 0 : index
    %c0_15 = arith.constant 0 : index
    %30 = vector.load %arg6[%c0_14, %c0_15] : memref<1x32xf32, #tpu.memory_space<vmem>>, vector<1x32xf32>
    %31 = vector.broadcast %30 : vector<1x32xf32> to vector<16x32xf32>
    %32 = arith.addf %29, %31 : vector<16x32xf32>
    %c0_16 = arith.constant 0 : index
    %c0_17 = arith.constant 0 : index
    %33 = vector.load %arg7[%c0_16, %c0_17] : memref<16x32xf32, #tpu.memory_space<vmem>>, vector<16x32xf32>
    tpu.vector_store %arg7[%c0_16, %c0_17], %32 {strides = array<i32>} : memref<16x32xf32, #tpu.memory_space<vmem>>, vector<16x32xf32>,
    return
  }
  func.func @transform_0(%arg0: i32) -> (i32, i32) {
    %c0_i32 = arith.constant 0 : i32
    %c0_i32_0 = arith.constant 0 : i32
    return %arg0, %c0_i32 : i32, i32
  }
  func.func @transform_1(%arg0: i32) -> (i32, i32) {
    %c0_i32 = arith.constant 0 : i32
    %c0_i32_0 = arith.constant 0 : i32
    %c0_i32_1 = arith.constant 0 : i32
    return %c0_i32, %c0_i32_0 : i32, i32
  }
  func.func @transform_2(%arg0: i32) -> (i32, i32) {
    %c0_i32 = arith.constant 0 : i32
    %c0_i32_0 = arith.constant 0 : i32
    %c0_i32_1 = arith.constant 0 : i32
    return %c0_i32, %c0_i32_0 : i32, i32
  }
  func.func @transform_3(%arg0: i32) -> (i32, i32) {
    %c0_i32 = arith.constant 0 : i32
    %c0_i32_0 = arith.constant 0 : i32
    return %arg0, %c0_i32 : i32, i32
  }
  func.func @transform_4(%arg0: i32) -> (i32, i32) {
    %c0_i32 = arith.constant 0 : i32
    %c0_i32_0 = arith.constant 0 : i32
    %c0_i32_1 = arith.constant 0 : i32
    return %c0_i32, %c0_i32_0 : i32, i32
  }
  func.func @transform_5(%arg0: i32) -> (i32, i32) {
    %c0_i32 = arith.constant 0 : i32
    %c0_i32_0 = arith.constant 0 : i32
    %c0_i32_1 = arith.constant 0 : i32
    return %c0_i32, %c0_i32_0 : i32, i32
  }
  func.func @transform_6(%arg0: i32) -> (i32, i32) {
    %c0_i32 = arith.constant 0 : i32
    %c0_i32_0 = arith.constant 0 : i32
    return %arg0, %c0_i32 : i32, i32
  }
}

module attributes {stable_mosaic.version = 11 : i64} {
  func.func @_gcn_ax_kernel(%arg0: i32, %arg1: i32, %arg2: memref<128x128xbf16, #tpu.memory_space<vmem>>, %arg3: memref<128x128xbf16, #tpu.memory_space<vmem>>, %arg4: memref<1x128xf32, #tpu.memory_space<vmem>>, %arg5: memref<128x128xbf16, #tpu.memory_space<vmem>>, %arg6: memref<128x128xf32, #tpu.memory_space<vmem>>) attributes {dimension_semantics = [#tpu.dimension_semantics<parallel>, #tpu.dimension_semantics<arbitrary>], iteration_bounds = array<i64: 1, 1>, scalar_prefetch = 0 : i64, scratch_operands = 1 : i64, tpu.core_type = #tpu.core_type<tc>, window_params = [{transform_indices = @transform_0, window_bounds = array<i64: 128, 128>}, {pipeline_mode = #tpu.pipeline_mode<synchronous>, transform_indices = @transform_1, window_bounds = array<i64: 128, 128>}, {pipeline_mode = #tpu.pipeline_mode<synchronous>, transform_indices = @transform_2, window_bounds = array<i64: 1, 128>}, {transform_indices = @transform_3, window_bounds = array<i64: 128, 128>}]} {
    %c0_i32 = arith.constant 0 : i32
    %0 = arith.cmpi eq, %arg1, %c0_i32 : i32
    %1 = arith.extui %0 : i1 to i32
    %c0_i32_0 = arith.constant 0 : i32
    %2 = arith.cmpi ne, %1, %c0_i32_0 : i32
    scf.if %2 {
      %cst_9 = arith.constant 0.000000e+00 : f32
      %15 = vector.broadcast %cst_9 : f32 to vector<128x128xf32>
      %c0_10 = arith.constant 0 : index
      %c0_11 = arith.constant 0 : index
      %16 = vector.load %arg6[%c0_10, %c0_11] : memref<128x128xf32, #tpu.memory_space<vmem>>, vector<128x128xf32>
      tpu.vector_store %arg6[%c0_10, %c0_11], %15 {strides = array<i32>} : memref<128x128xf32, #tpu.memory_space<vmem>>, vector<128x128xf32>,
    } else {
    }
    %c128_i32 = arith.constant 128 : i32
    %3 = arith.muli %arg1, %c128_i32 : i32
    %4 = tpu.assume_multiple %3, 128 : i32
    %c0 = arith.constant 0 : index
    %c0_1 = arith.constant 0 : index
    %5 = vector.load %arg6[%c0, %c0_1] : memref<128x128xf32, #tpu.memory_space<vmem>>, vector<128x128xf32>
    %c0_2 = arith.constant 0 : index
    %c0_3 = arith.constant 0 : index
    %6 = vector.load %arg2[%c0_2, %c0_3] : memref<128x128xbf16, #tpu.memory_space<vmem>>, vector<128x128xbf16>
    %7 = arith.index_cast %4 : i32 to index
    %c0_4 = arith.constant 0 : index
    %8 = vector.load %arg3[%7, %c0_4] : memref<128x128xbf16, #tpu.memory_space<vmem>>, vector<128x128xbf16>
    %cst = arith.constant dense<0.000000e+00> : vector<128x128xf32>
    %9 = tpu.matmul %6, %8, %cst {dimension_numbers = #tpu.dot_dimension_numbers<[1], [0], [0], [1], [0, 0, 1, 1], [], []>} : vector<128x128xbf16>, vector<128x128xbf16>, vector<128x128xf32> -> vector<128x128xf32>
    %10 = arith.addf %5, %9 : vector<128x128xf32>
    %c0_5 = arith.constant 0 : index
    %c0_6 = arith.constant 0 : index
    %11 = vector.load %arg6[%c0_5, %c0_6] : memref<128x128xf32, #tpu.memory_space<vmem>>, vector<128x128xf32>
    tpu.vector_store %arg6[%c0_5, %c0_6], %10 {strides = array<i32>} : memref<128x128xf32, #tpu.memory_space<vmem>>, vector<128x128xf32>,
    %c0_i32_7 = arith.constant 0 : i32
    %12 = arith.cmpi eq, %arg1, %c0_i32_7 : i32
    %13 = arith.extui %12 : i1 to i32
    %c0_i32_8 = arith.constant 0 : i32
    %14 = arith.cmpi ne, %13, %c0_i32_8 : i32
    scf.if %14 {
      %c0_9 = arith.constant 0 : index
      %c0_10 = arith.constant 0 : index
      %15 = vector.load %arg6[%c0_9, %c0_10] : memref<128x128xf32, #tpu.memory_space<vmem>>, vector<128x128xf32>
      %c0_11 = arith.constant 0 : index
      %c0_12 = arith.constant 0 : index
      %16 = vector.load %arg4[%c0_11, %c0_12] : memref<1x128xf32, #tpu.memory_space<vmem>>, vector<1x128xf32>
      %17 = vector.broadcast %16 : vector<1x128xf32> to vector<128x128xf32>
      %18 = arith.addf %15, %17 : vector<128x128xf32>
      %cst_13 = arith.constant 0.000000e+00 : f32
      %19 = vector.broadcast %cst_13 : f32 to vector<128x128xf32>
      %20 = arith.maximumf %18, %19 : vector<128x128xf32>
      %21 = arith.truncf %20 : vector<128x128xf32> to vector<128x128xbf16>
      %c0_14 = arith.constant 0 : index
      %c0_15 = arith.constant 0 : index
      %22 = vector.load %arg5[%c0_14, %c0_15] : memref<128x128xbf16, #tpu.memory_space<vmem>>, vector<128x128xbf16>
      tpu.vector_store %arg5[%c0_14, %c0_15], %21 {strides = array<i32>} : memref<128x128xbf16, #tpu.memory_space<vmem>>, vector<128x128xbf16>,
    } else {
    }
    return
  }
  func.func @transform_0(%arg0: i32, %arg1: i32) -> (i32, i32) {
    %c0_i32 = arith.constant 0 : i32
    return %arg0, %arg1 : i32, i32
  }
  func.func @transform_1(%arg0: i32, %arg1: i32) -> (i32, i32) {
    %c0_i32 = arith.constant 0 : i32
    %c0_i32_0 = arith.constant 0 : i32
    %c0_i32_1 = arith.constant 0 : i32
    return %c0_i32, %c0_i32_0 : i32, i32
  }
  func.func @transform_2(%arg0: i32, %arg1: i32) -> (i32, i32) {
    %c0_i32 = arith.constant 0 : i32
    %c0_i32_0 = arith.constant 0 : i32
    %c0_i32_1 = arith.constant 0 : i32
    return %c0_i32, %c0_i32_0 : i32, i32
  }
  func.func @transform_3(%arg0: i32, %arg1: i32) -> (i32, i32) {
    %c0_i32 = arith.constant 0 : i32
    %c0_i32_0 = arith.constant 0 : i32
    return %arg0, %c0_i32 : i32, i32
  }
}

module attributes {stable_mosaic.version = 11 : i64} {
  func.func @_gcn_ax_kernel(%arg0: i32, %arg1: i32, %arg2: memref<128x128xbf16, #tpu.memory_space<vmem>>, %arg3: memref<128x128xbf16, #tpu.memory_space<vmem>>, %arg4: memref<1x128xf32, #tpu.memory_space<vmem>>, %arg5: memref<128x128xbf16, #tpu.memory_space<vmem>>, %arg6: memref<128x128xf32, #tpu.memory_space<vmem>>) attributes {dimension_semantics = [#tpu.dimension_semantics<parallel>, #tpu.dimension_semantics<arbitrary>], iteration_bounds = array<i64: 1, 1>, scalar_prefetch = 0 : i64, scratch_operands = 1 : i64, tpu.core_type = #tpu.core_type<tc>, window_params = [{transform_indices = @transform_0, window_bounds = array<i64: 128, 128>}, {pipeline_mode = #tpu.pipeline_mode<synchronous>, transform_indices = @transform_1, window_bounds = array<i64: 128, 128>}, {pipeline_mode = #tpu.pipeline_mode<synchronous>, transform_indices = @transform_2, window_bounds = array<i64: 1, 128>}, {transform_indices = @transform_3, window_bounds = array<i64: 128, 128>}]} {
    %c0_i32 = arith.constant 0 : i32
    %0 = arith.cmpi eq, %arg1, %c0_i32 : i32
    %1 = arith.extui %0 : i1 to i32
    %c0_i32_0 = arith.constant 0 : i32
    %2 = arith.cmpi ne, %1, %c0_i32_0 : i32
    scf.if %2 {
      %cst_9 = arith.constant 0.000000e+00 : f32
      %15 = vector.broadcast %cst_9 : f32 to vector<128x128xf32>
      %c0_10 = arith.constant 0 : index
      %c0_11 = arith.constant 0 : index
      %16 = vector.load %arg6[%c0_10, %c0_11] : memref<128x128xf32, #tpu.memory_space<vmem>>, vector<128x128xf32>
      tpu.vector_store %arg6[%c0_10, %c0_11], %15 {strides = array<i32>} : memref<128x128xf32, #tpu.memory_space<vmem>>, vector<128x128xf32>,
    } else {
    }
    %c128_i32 = arith.constant 128 : i32
    %3 = arith.muli %arg1, %c128_i32 : i32
    %4 = tpu.assume_multiple %3, 128 : i32
    %c0 = arith.constant 0 : index
    %c0_1 = arith.constant 0 : index
    %5 = vector.load %arg6[%c0, %c0_1] : memref<128x128xf32, #tpu.memory_space<vmem>>, vector<128x128xf32>
    %c0_2 = arith.constant 0 : index
    %c0_3 = arith.constant 0 : index
    %6 = vector.load %arg2[%c0_2, %c0_3] : memref<128x128xbf16, #tpu.memory_space<vmem>>, vector<128x128xbf16>
    %7 = arith.index_cast %4 : i32 to index
    %c0_4 = arith.constant 0 : index
    %8 = vector.load %arg3[%7, %c0_4] : memref<128x128xbf16, #tpu.memory_space<vmem>>, vector<128x128xbf16>
    %cst = arith.constant dense<0.000000e+00> : vector<128x128xf32>
    %9 = tpu.matmul %6, %8, %cst {dimension_numbers = #tpu.dot_dimension_numbers<[1], [0], [0], [1], [0, 0, 1, 1], [], []>} : vector<128x128xbf16>, vector<128x128xbf16>, vector<128x128xf32> -> vector<128x128xf32>
    %10 = arith.addf %5, %9 : vector<128x128xf32>
    %c0_5 = arith.constant 0 : index
    %c0_6 = arith.constant 0 : index
    %11 = vector.load %arg6[%c0_5, %c0_6] : memref<128x128xf32, #tpu.memory_space<vmem>>, vector<128x128xf32>
    tpu.vector_store %arg6[%c0_5, %c0_6], %10 {strides = array<i32>} : memref<128x128xf32, #tpu.memory_space<vmem>>, vector<128x128xf32>,
    %c0_i32_7 = arith.constant 0 : i32
    %12 = arith.cmpi eq, %arg1, %c0_i32_7 : i32
    %13 = arith.extui %12 : i1 to i32
    %c0_i32_8 = arith.constant 0 : i32
    %14 = arith.cmpi ne, %13, %c0_i32_8 : i32
    scf.if %14 {
      %c0_9 = arith.constant 0 : index
      %c0_10 = arith.constant 0 : index
      %15 = vector.load %arg6[%c0_9, %c0_10] : memref<128x128xf32, #tpu.memory_space<vmem>>, vector<128x128xf32>
      %c0_11 = arith.constant 0 : index
      %c0_12 = arith.constant 0 : index
      %16 = vector.load %arg4[%c0_11, %c0_12] : memref<1x128xf32, #tpu.memory_space<vmem>>, vector<1x128xf32>
      %17 = vector.broadcast %16 : vector<1x128xf32> to vector<128x128xf32>
      %18 = arith.addf %15, %17 : vector<128x128xf32>
      %19 = arith.truncf %18 : vector<128x128xf32> to vector<128x128xbf16>
      %c0_13 = arith.constant 0 : index
      %c0_14 = arith.constant 0 : index
      %20 = vector.load %arg5[%c0_13, %c0_14] : memref<128x128xbf16, #tpu.memory_space<vmem>>, vector<128x128xbf16>
      tpu.vector_store %arg5[%c0_13, %c0_14], %19 {strides = array<i32>} : memref<128x128xbf16, #tpu.memory_space<vmem>>, vector<128x128xbf16>,
    } else {
    }
    return
  }
  func.func @transform_0(%arg0: i32, %arg1: i32) -> (i32, i32) {
    %c0_i32 = arith.constant 0 : i32
    return %arg0, %arg1 : i32, i32
  }
  func.func @transform_1(%arg0: i32, %arg1: i32) -> (i32, i32) {
    %c0_i32 = arith.constant 0 : i32
    %c0_i32_0 = arith.constant 0 : i32
    %c0_i32_1 = arith.constant 0 : i32
    return %c0_i32, %c0_i32_0 : i32, i32
  }
  func.func @transform_2(%arg0: i32, %arg1: i32) -> (i32, i32) {
    %c0_i32 = arith.constant 0 : i32
    %c0_i32_0 = arith.constant 0 : i32
    %c0_i32_1 = arith.constant 0 : i32
    return %c0_i32, %c0_i32_0 : i32, i32
  }
  func.func @transform_3(%arg0: i32, %arg1: i32) -> (i32, i32) {
    %c0_i32 = arith.constant 0 : i32
    %c0_i32_0 = arith.constant 0 : i32
    return %arg0, %c0_i32 : i32, i32
  }
}

module attributes {stable_mosaic.version = 11 : i64} {
  func.func @_graph_head_kernel(%arg0: i32, %arg1: memref<8x128xbf16, #tpu.memory_space<vmem>>, %arg2: memref<128x128xbf16, #tpu.memory_space<vmem>>, %arg3: memref<128x128xbf16, #tpu.memory_space<vmem>>, %arg4: memref<1x128xf32, #tpu.memory_space<vmem>>, %arg5: memref<128x128xbf16, #tpu.memory_space<vmem>>, %arg6: memref<1x128xf32, #tpu.memory_space<vmem>>, %arg7: memref<8x128xf32, #tpu.memory_space<vmem>>, %arg8: memref<8x128xf32, #tpu.memory_space<vmem>>) attributes {dimension_semantics = [#tpu.dimension_semantics<arbitrary>], iteration_bounds = array<i64: 1>, scalar_prefetch = 0 : i64, scratch_operands = 1 : i64, tpu.core_type = #tpu.core_type<tc>, window_params = [{transform_indices = @transform_0, window_bounds = array<i64: 8, 128>}, {transform_indices = @transform_1, window_bounds = array<i64: 128, 128>}, {pipeline_mode = #tpu.pipeline_mode<synchronous>, transform_indices = @transform_2, window_bounds = array<i64: 128, 128>}, {pipeline_mode = #tpu.pipeline_mode<synchronous>, transform_indices = @transform_3, window_bounds = array<i64: 1, 128>}, {pipeline_mode = #tpu.pipeline_mode<synchronous>, transform_indices = @transform_4, window_bounds = array<i64: 128, 128>}, {pipeline_mode = #tpu.pipeline_mode<synchronous>, transform_indices = @transform_5, window_bounds = array<i64: 1, 128>}, {pipeline_mode = #tpu.pipeline_mode<synchronous>, transform_indices = @transform_6, window_bounds = array<i64: 8, 128>}]} {
    %c0_i32 = arith.constant 0 : i32
    %0 = arith.cmpi eq, %arg0, %c0_i32 : i32
    %1 = arith.extui %0 : i1 to i32
    %c0_i32_0 = arith.constant 0 : i32
    %2 = arith.cmpi ne, %1, %c0_i32_0 : i32
    scf.if %2 {
      %cst_10 = arith.constant 0.000000e+00 : f32
      %12 = vector.broadcast %cst_10 : f32 to vector<8x128xf32>
      %c0_11 = arith.constant 0 : index
      %c0_12 = arith.constant 0 : index
      %13 = vector.load %arg8[%c0_11, %c0_12] : memref<8x128xf32, #tpu.memory_space<vmem>>, vector<8x128xf32>
      tpu.vector_store %arg8[%c0_11, %c0_12], %12 {strides = array<i32>} : memref<8x128xf32, #tpu.memory_space<vmem>>, vector<8x128xf32>,
    } else {
    }
    %c0 = arith.constant 0 : index
    %c0_1 = arith.constant 0 : index
    %3 = vector.load %arg8[%c0, %c0_1] : memref<8x128xf32, #tpu.memory_space<vmem>>, vector<8x128xf32>
    %c0_2 = arith.constant 0 : index
    %c0_3 = arith.constant 0 : index
    %4 = vector.load %arg1[%c0_2, %c0_3] : memref<8x128xbf16, #tpu.memory_space<vmem>>, vector<8x128xbf16>
    %c0_4 = arith.constant 0 : index
    %c0_5 = arith.constant 0 : index
    %5 = vector.load %arg2[%c0_4, %c0_5] : memref<128x128xbf16, #tpu.memory_space<vmem>>, vector<128x128xbf16>
    %cst = arith.constant dense<0.000000e+00> : vector<8x128xf32>
    %6 = tpu.matmul %4, %5, %cst {dimension_numbers = #tpu.dot_dimension_numbers<[1], [0], [0], [1], [0, 0, 1, 1], [], []>} : vector<8x128xbf16>, vector<128x128xbf16>, vector<8x128xf32> -> vector<8x128xf32>
    %7 = arith.addf %3, %6 : vector<8x128xf32>
    %c0_6 = arith.constant 0 : index
    %c0_7 = arith.constant 0 : index
    %8 = vector.load %arg8[%c0_6, %c0_7] : memref<8x128xf32, #tpu.memory_space<vmem>>, vector<8x128xf32>
    tpu.vector_store %arg8[%c0_6, %c0_7], %7 {strides = array<i32>} : memref<8x128xf32, #tpu.memory_space<vmem>>, vector<8x128xf32>,
    %c0_i32_8 = arith.constant 0 : i32
    %9 = arith.cmpi eq, %arg0, %c0_i32_8 : i32
    %10 = arith.extui %9 : i1 to i32
    %c0_i32_9 = arith.constant 0 : i32
    %11 = arith.cmpi ne, %10, %c0_i32_9 : i32
    scf.if %11 {
      %c0_10 = arith.constant 0 : index
      %c0_11 = arith.constant 0 : index
      %12 = vector.load %arg8[%c0_10, %c0_11] : memref<8x128xf32, #tpu.memory_space<vmem>>, vector<8x128xf32>
      %13 = arith.truncf %12 : vector<8x128xf32> to vector<8x128xbf16>
      %c0_12 = arith.constant 0 : index
      %c0_13 = arith.constant 0 : index
      %14 = vector.load %arg3[%c0_12, %c0_13] : memref<128x128xbf16, #tpu.memory_space<vmem>>, vector<128x128xbf16>
      %cst_14 = arith.constant dense<0.000000e+00> : vector<8x128xf32>
      %15 = tpu.matmul %13, %14, %cst_14 {dimension_numbers = #tpu.dot_dimension_numbers<[1], [0], [0], [1], [0, 0, 1, 1], [], []>} : vector<8x128xbf16>, vector<128x128xbf16>, vector<8x128xf32> -> vector<8x128xf32>
      %c0_15 = arith.constant 0 : index
      %c0_16 = arith.constant 0 : index
      %16 = vector.load %arg4[%c0_15, %c0_16] : memref<1x128xf32, #tpu.memory_space<vmem>>, vector<1x128xf32>
      %17 = vector.broadcast %16 : vector<1x128xf32> to vector<8x128xf32>
      %18 = arith.addf %15, %17 : vector<8x128xf32>
      %cst_17 = arith.constant 0.000000e+00 : f32
      %19 = vector.broadcast %cst_17 : f32 to vector<8x128xf32>
      %20 = arith.maximumf %18, %19 : vector<8x128xf32>
      %21 = arith.truncf %20 : vector<8x128xf32> to vector<8x128xbf16>
      %c0_18 = arith.constant 0 : index
      %c0_19 = arith.constant 0 : index
      %22 = vector.load %arg5[%c0_18, %c0_19] : memref<128x128xbf16, #tpu.memory_space<vmem>>, vector<128x128xbf16>
      %cst_20 = arith.constant dense<0.000000e+00> : vector<8x128xf32>
      %23 = tpu.matmul %21, %22, %cst_20 {dimension_numbers = #tpu.dot_dimension_numbers<[1], [0], [0], [1], [0, 0, 1, 1], [], []>} : vector<8x128xbf16>, vector<128x128xbf16>, vector<8x128xf32> -> vector<8x128xf32>
      %c0_21 = arith.constant 0 : index
      %c0_22 = arith.constant 0 : index
      %24 = vector.load %arg6[%c0_21, %c0_22] : memref<1x128xf32, #tpu.memory_space<vmem>>, vector<1x128xf32>
      %25 = vector.broadcast %24 : vector<1x128xf32> to vector<8x128xf32>
      %26 = arith.addf %23, %25 : vector<8x128xf32>
      %c0_23 = arith.constant 0 : index
      %c0_24 = arith.constant 0 : index
      %27 = vector.load %arg7[%c0_23, %c0_24] : memref<8x128xf32, #tpu.memory_space<vmem>>, vector<8x128xf32>
      tpu.vector_store %arg7[%c0_23, %c0_24], %26 {strides = array<i32>} : memref<8x128xf32, #tpu.memory_space<vmem>>, vector<8x128xf32>,
    } else {
    }
    return
  }
  func.func @transform_0(%arg0: i32) -> (i32, i32) {
    %c0_i32 = arith.constant 0 : i32
    %c0_i32_0 = arith.constant 0 : i32
    return %c0_i32, %arg0 : i32, i32
  }
  func.func @transform_1(%arg0: i32) -> (i32, i32) {
    %c0_i32 = arith.constant 0 : i32
    %c0_i32_0 = arith.constant 0 : i32
    return %arg0, %c0_i32 : i32, i32
  }
  func.func @transform_2(%arg0: i32) -> (i32, i32) {
    %c0_i32 = arith.constant 0 : i32
    %c0_i32_0 = arith.constant 0 : i32
    %c0_i32_1 = arith.constant 0 : i32
    return %c0_i32, %c0_i32_0 : i32, i32
  }
  func.func @transform_3(%arg0: i32) -> (i32, i32) {
    %c0_i32 = arith.constant 0 : i32
    %c0_i32_0 = arith.constant 0 : i32
    %c0_i32_1 = arith.constant 0 : i32
    return %c0_i32, %c0_i32_0 : i32, i32
  }
  func.func @transform_4(%arg0: i32) -> (i32, i32) {
    %c0_i32 = arith.constant 0 : i32
    %c0_i32_0 = arith.constant 0 : i32
    %c0_i32_1 = arith.constant 0 : i32
    return %c0_i32, %c0_i32_0 : i32, i32
  }
  func.func @transform_5(%arg0: i32) -> (i32, i32) {
    %c0_i32 = arith.constant 0 : i32
    %c0_i32_0 = arith.constant 0 : i32
    %c0_i32_1 = arith.constant 0 : i32
    return %c0_i32, %c0_i32_0 : i32, i32
  }
  func.func @transform_6(%arg0: i32) -> (i32, i32) {
    %c0_i32 = arith.constant 0 : i32
    %c0_i32_0 = arith.constant 0 : i32
    %c0_i32_1 = arith.constant 0 : i32
    return %c0_i32, %c0_i32_0 : i32, i32
  }
}

</mosaic_0001>

<llo_original>
// kernel: baseline_model_forward.20
$region0: #{baseline_model_forward.20}
  #allocation0 [shape = 'u32[]', space=smem, size = 0x4, offset = 0x4, fixed_abs, tag = 'smem constant byte address 0x4 - core index']
  #allocation1 [shape = 'u32[144,128]{1,0:T(1,128)}', space=vmem, size = 0x12000, scoped, tag = 'internal scratch']
  %s0 = inlined_call_operand.vmem [shape: f32[16,32], index: 0, kind: input, shape index: {}]
  %s1 = inlined_call_operand.vmem [shape: f32[1,32], index: 1, kind: input, shape index: {}]
  %s2 = inlined_call_operand.vmem [shape: f32[1,32], index: 2, kind: input, shape index: {}]
  %s3 = inlined_call_operand.vmem [shape: bf16[16,32], index: 3, kind: output, shape index: {}]
  %s4 = sld [smem:[#allocation0]]
  $region22: #{baseline_model_forward.20} parent=0
    _
  %s6 = ssub.s32 1, %s4
  %s7 = scalar_select 0, %s6, %s4
  // Predicated region
  $region2: #{baseline_model_forward.20} parent=0 // pred_check
    _
  $region3: #{baseline_model_forward.20} parent=0 // pred_check_branch
    %9 = sbr.rel (0) target = $region5
  $region4: #{baseline_model_forward.20} parent=0 // pred_region
    _
  $region5: #{baseline_model_forward.20} parent=0 // pred_fallthru
    _
  // Predicated region
  $region6: #{baseline_model_forward.20} parent=0 // pred_check
    _
  $region7: #{baseline_model_forward.20} parent=0 // pred_check_branch
    %11 = sbr.rel (0) target = $region9
  $region8: #{baseline_model_forward.20} parent=0 // pred_region
    _
  $region9: #{baseline_model_forward.20} parent=0 // pred_fallthru
    _
  // Predicated region
  $region10: #{baseline_model_forward.20} parent=0 // pred_check
    _
  $region11: #{baseline_model_forward.20} parent=0 // pred_check_branch
    %13 = sbr.rel (0) target = $region13
  $region12: #{baseline_model_forward.20} parent=0 // pred_region
    _
  $region13: #{baseline_model_forward.20} parent=0 // pred_fallthru
    _
  %v14 = vld [vmem:[%s0] sm:$0xff]
  %v15 = vld [vmem:[%s0 + $0x8] sm:$0xff]
  %vm16 = vcmask 261120
  %v17 = vsel %vm16, %v14, 0.0
  %18 = vadd.xlane.f32.xlu0 %v17
  %v19 = vpop.xlane.xlu0 %18
  %v20 = vsel %vm16, %v15, 0.0
  %21 = vadd.xlane.f32.xlu0 %v20
  %v22 = vpop.xlane.xlu0 %21
  %v23 = vrcp.pop 32.0
  %v24 = vmul.f32 %v19, %v23
  %v25 = vmul.f32 %v22, %v23
  %v26 = vsub.f32 %v14, %v24
  %v27 = vsub.f32 %v15, %v25
  %v28 = vmul.f32 %v26, %v26
  %v29 = vmul.f32 %v27, %v27
  %v30 = vsel %vm16, %v28, 0.0
  %31 = vadd.xlane.f32.xlu0 %v30
  %v32 = vpop.xlane.xlu0 %31
  %v33 = vsel %vm16, %v29, 0.0
  %34 = vadd.xlane.f32.xlu0 %v33
  %v35 = vpop.xlane.xlu0 %34
  %v36 = vmul.f32 %v32, %v23
  %v37 = vmul.f32 %v35, %v23
  %v38 = vadd.f32 %v36, 1e-05
  %v39 = vadd.f32 %v37, 1e-05
  %v40 = vrsqrt.pop %v38
  %v41 = vrsqrt.pop %v39
  %v42 = vmul.f32 %v26, %v40
  %v43 = vmul.f32 %v27, %v41
  %v44 = vld [vmem:[%s1] sm:$0x1]
  %v46 = vlaneseq
  %v47 = vshrl.u32 %v46, 7
  %v48 = vsub.s32 0, %v47
  %v49 = vrot.slane %v44, %v48
  %v51 = vmul.f32 %v42, %v49
  %v52 = vmul.f32 %v43, %v49
  %v53 = vld [vmem:[%s2] sm:$0x1]
  %v55 = vlaneseq
  %v56 = vshrl.u32 %v55, 7
  %v57 = vsub.s32 0, %v56
  %v58 = vrot.slane %v53, %v57
  %v60 = vadd.f32 %v51, %v58
  %v61 = vadd.f32 %v52, %v58
  %v62 = vpack.c.bf16 %v61, %v60
  %v64 = vunpack.c.l.b16 %v62
  %v65 = vunpack.c.h.b16 %v62
  %v66 = vpack.c.b16 %v64, %v64
  %v67 = vpack.c.b16 %v65, %v65
  %vm70 = vcmask 257024
  %71 = vst.msk [vmem:[%s3] sm:$0xf] %vm70, %v66
  %72 = vst.msk [vmem:[%s3 + $0x4] sm:$0xf] %vm70, %v67
  // Predicated region
  $region14: #{baseline_model_forward.20} parent=0 // pred_check
    _
  $region15: #{baseline_model_forward.20} parent=0 // pred_check_branch
    %74 = sbr.rel (0) target = $region17
  $region16: #{baseline_model_forward.20} parent=0 // pred_region
    _
  $region17: #{baseline_model_forward.20} parent=0 // pred_fallthru
    _
  // Predicated region
  $region18: #{baseline_model_forward.20} parent=0 // pred_check
    _
  $region19: #{baseline_model_forward.20} parent=0 // pred_check_branch
    %76 = sbr.rel (0) target = $region21
  $region20: #{baseline_model_forward.20} parent=0 // pred_region
    _
  $region21: #{baseline_model_forward.20} parent=0 // pred_fallthru
    _

// kernel: baseline_model_forward.21
$region0: #{baseline_model_forward.21}
  #allocation0 [shape = 'u32[]', space=smem, size = 0x4, offset = 0x4, fixed_abs, tag = 'smem constant byte address 0x4 - core index']
  #allocation1 [shape = 'u32[144,128]{1,0:T(1,128)}', space=vmem, size = 0x12000, scoped, tag = 'internal scratch']
  %s0 = inlined_call_operand.vmem [shape: bf16[16,32], index: 0, kind: input, shape index: {}]
  %s1 = inlined_call_operand.vmem [shape: bf16[32,384], index: 1, kind: input, shape index: {}]
  %s2 = inlined_call_operand.vmem [shape: f32[1,384], index: 2, kind: input, shape index: {}]
  %s3 = inlined_call_operand.vmem [shape: bf16[16,384], index: 3, kind: output, shape index: {}]
  %s4 = sld [smem:[#allocation0]]
  $region22: #{baseline_model_forward.21} parent=0
    _
  %s6 = ssub.s32 1, %s4
  %s7 = scalar_select 0, %s6, %s4
  // Predicated region
  $region2: #{baseline_model_forward.21} parent=0 // pred_check
    _
  $region3: #{baseline_model_forward.21} parent=0 // pred_check_branch
    %9 = sbr.rel (0) target = $region5
  $region4: #{baseline_model_forward.21} parent=0 // pred_region
    _
  $region5: #{baseline_model_forward.21} parent=0 // pred_fallthru
    _
  // Predicated region
  $region6: #{baseline_model_forward.21} parent=0 // pred_check
    _
  $region7: #{baseline_model_forward.21} parent=0 // pred_check_branch
    %11 = sbr.rel (0) target = $region9
  $region8: #{baseline_model_forward.21} parent=0 // pred_region
    _
  $region9: #{baseline_model_forward.21} parent=0 // pred_fallthru
    _
  // Predicated region
  $region10: #{baseline_model_forward.21} parent=0 // pred_check
    _
  $region11: #{baseline_model_forward.21} parent=0 // pred_check_branch
    %13 = sbr.rel (0) target = $region13
  $region12: #{baseline_model_forward.21} parent=0 // pred_region
    _
  $region13: #{baseline_model_forward.21} parent=0 // pred_fallthru
    _
  %v15 = vld [vmem:[%s0] sm:$0xf]
  %v16 = vld [vmem:[%s0 + $0x4] sm:$0xf]
  %v17 = vld [vmem:[%s1] sm:$0xff]
  %v18 = vld [vmem:[%s1 + $0x8] sm:$0xf]
  %v19 = vld [vmem:[%s1 + $0xc] sm:$0xff]
  %v20 = vld [vmem:[%s1 + $0x14] sm:$0xf]
  %v21 = vld [vmem:[%s1 + $0x18] sm:$0xff]
  %v22 = vld [vmem:[%s1 + $0x20] sm:$0xf]
  %v23 = vld [vmem:[%s1 + $0x24] sm:$0xff]
  %v24 = vld [vmem:[%s1 + $0x2c] sm:$0xf]
  %v25 = vld [vmem:[%s2] sm:$0x7]
  %v27 = vlaneseq
  %v28 = vshrl.u32 %v27, 7
  %v29 = vsub.s32 0, %v28
  %v30 = vrot.slane %v25, %v29
  %v31 = vlaneseq
  %v32 = vshrl.u32 %v31, 7
  %v33 = vsub.s32 1, %v32
  %v34 = vrot.slane %v25, %v33
  %v35 = vlaneseq
  %v36 = vshrl.u32 %v35, 7
  %v37 = vsub.s32 2, %v36
  %v38 = vrot.slane %v25, %v37
  %v44 = vunpack.c.l.b16 %v15
  %v45 = vunpack.c.l.b16 %v16
  %v46 = vpack.c.b16 %v45, %v44
  %v55 = vunpack.c.l.b16 %v17
  %v56 = vunpack.c.h.b16 %v17
  %v57 = vunpack.c.l.b16 %v18
  %v58 = vunpack.c.l.b16 %v19
  %v59 = vunpack.c.h.b16 %v19
  %v60 = vunpack.c.l.b16 %v20
  %v61 = vunpack.c.l.b16 %v21
  %v62 = vunpack.c.h.b16 %v21
  %v63 = vunpack.c.l.b16 %v22
  %v64 = vunpack.c.l.b16 %v23
  %v65 = vunpack.c.h.b16 %v23
  %v66 = vunpack.c.l.b16 %v24
  %v67 = vpack.c.b16 %v58, %v55
  %v68 = vpack.c.b16 %v59, %v56
  %v69 = vpack.c.b16 %v60, %v57
  %v70 = vpack.c.b16 %v64, %v61
  %v71 = vpack.c.b16 %v65, %v62
  %v72 = vpack.c.b16 %v66, %v63
  %vm79 = vcmask 261120
  %v81 = vsel %vm79, %v46, 0
  %83 = vmatprep.subr.bf16.mxu0 0
  %84 = vmatpush1.bf16.msra.mxu0 0
  %85 = vmatprep.subr.bf16.mxu0 0
  %86 = vmatpush1.bf16.msra.mxu0 0
  %87 = vmatprep.subr.bf16.mxu0 0
  %88 = vmatpush1.bf16.msra.mxu0 0
  %89 = vmatprep.subr.bf16.mxu0 0
  %90 = vmatpush1.bf16.msra.mxu0 0
  %91 = vmatprep.subr.bf16.mxu0 0
  %92 = vmatpush1.bf16.msra.mxu0 0
  %93 = vmatprep.subr.bf16.mxu0 0
  %94 = vmatpush1.bf16.msra.mxu0 0
  %95 = vmatprep.subr.bf16.mxu0 %v71
  %96 = vmatpush1.bf16.msra.mxu0 %v70
  %97 = vmatprep.subr.bf16.mxu0 %v68
  %98 = vmatpush1.bf16.msra.mxu0 %v67
  %99 = vmatprep.subr.bf16.mxu0 0
  %100 = vmatpush2.bf16.msra.mxu0 0
  %101 = vmatprep.subr.bf16.mxu0 0
  %102 = vmatpush2.bf16.msra.mxu0 0
  %103 = vmatprep.subr.bf16.mxu0 0
  %104 = vmatpush2.bf16.msra.mxu0 0
  %105 = vmatprep.subr.bf16.mxu0 0
  %106 = vmatpush2.bf16.msra.mxu0 0
  %107 = vmatprep.subr.bf16.mxu0 0
  %108 = vmatpush2.bf16.msra.mxu0 0
  %109 = vmatprep.subr.bf16.mxu0 0
  %110 = vmatpush2.bf16.msra.mxu0 0
  %111 = vmatprep.subr.bf16.mxu0 0
  %112 = vmatpush2.bf16.msra.mxu0 0
  %113 = vmatprep.subr.bf16.mxu0 0
  %114 = vmatpush2.bf16.msra.mxu0 0
  %115 = vmatprep.mubr.bf16.mxu0 0
  %116 = vmatmul.mubr.bf16.gmra.mxu0 %v81
  %v117 = vpop.f32.mrf.mxu0
  %v118 = vadd.f32 %v30, %v117
  %v119 = vpop.f32.mrf.mxu0
  %v120 = vadd.f32 %v34, %v119
  %v121 = vpop.f32.mrf.mxu0
  %v122 = vadd.f32 %v30, %v121
  %v123 = vpop.f32.mrf.mxu0
  %v124 = vadd.f32 %v34, %v123
  %125 = vdwg.mxu0
  %126 = vmatprep.subr.bf16.mxu0 0
  %127 = vmatpush1.bf16.msra.mxu0 0
  %128 = vmatprep.subr.bf16.mxu0 0
  %129 = vmatpush1.bf16.msra.mxu0 0
  %130 = vmatprep.subr.bf16.mxu0 0
  %131 = vmatpush1.bf16.msra.mxu0 0
  %132 = vmatprep.subr.bf16.mxu0 0
  %133 = vmatpush1.bf16.msra.mxu0 0
  %134 = vmatprep.subr.bf16.mxu0 0
  %135 = vmatpush1.bf16.msra.mxu0 0
  %136 = vmatprep.subr.bf16.mxu0 0
  %137 = vmatpush1.bf16.msra.mxu0 0
  %138 = vmatprep.subr.bf16.mxu0 0
  %139 = vmatpush1.bf16.msra.mxu0 %v72
  %140 = vmatprep.subr.bf16.mxu0 0
  %141 = vmatpush1.bf16.msra.mxu0 %v69
  %142 = vmatprep.subr.bf16.mxu0 0
  %143 = vmatpush2.bf16.msra.mxu0 0
  %144 = vmatprep.subr.bf16.mxu0 0
  %145 = vmatpush2.bf16.msra.mxu0 0
  %146 = vmatprep.subr.bf16.mxu0 0
  %147 = vmatpush2.bf16.msra.mxu0 0
  %148 = vmatprep.subr.bf16.mxu0 0
  %149 = vmatpush2.bf16.msra.mxu0 0
  %150 = vmatprep.subr.bf16.mxu0 0
  %151 = vmatpush2.bf16.msra.mxu0 0
  %152 = vmatprep.subr.bf16.mxu0 0
  %153 = vmatpush2.bf16.msra.mxu0 0
  %154 = vmatprep.subr.bf16.mxu0 0
  %155 = vmatpush2.bf16.msra.mxu0 0
  %156 = vmatprep.subr.bf16.mxu0 0
  %157 = vmatpush2.bf16.msra.mxu0 0
  %158 = vmatprep.mubr.bf16.mxu0 0
  %159 = vmatmul.mubr.bf16.gmra.mxu0 %v81
  %v160 = vpop.f32.mrf.mxu0
  %v161 = vadd.f32 %v38, %v160
  %v162 = vpop.f32.mrf.mxu0
  %v163 = vpop.f32.mrf.mxu0
  %v164 = vadd.f32 %v38, %v163
  %v165 = vpop.f32.mrf.mxu0
  %166 = vdwg.mxu0
  %v167 = vpack.c.bf16 %v122, %v118
  %v168 = vpack.c.bf16 %v124, %v120
  %v169 = vpack.c.bf16 %v164, %v161
  %v173 = vunpack.c.l.b16 %v167
  %v174 = vunpack.c.l.b16 %v168
  %v175 = vunpack.c.l.b16 %v169
  %v176 = vunpack.c.h.b16 %v167
  %v177 = vunpack.c.h.b16 %v168
  %v178 = vunpack.c.h.b16 %v169
  %v179 = vpack.c.b16 %v174, %v173
  %v180 = vpack.c.b16 %v175, %v175
  %v181 = vpack.c.b16 %v177, %v176
  %v182 = vpack.c.b16 %v178, %v178
  %187 = vst [vmem:[%s3] sm:$0xff] %v179
  %188 = vst [vmem:[%s3 + $0x8] sm:$0xf] %v180
  %189 = vst [vmem:[%s3 + $0xc] sm:$0xff] %v181
  %190 = vst [vmem:[%s3 + $0x14] sm:$0xf] %v182
  // Predicated region
  $region14: #{baseline_model_forward.21} parent=0 // pred_check
    _
  $region15: #{baseline_model_forward.21} parent=0 // pred_check_branch
    %192 = sbr.rel (0) target = $region17
  $region16: #{baseline_model_forward.21} parent=0 // pred_region
    _
  $region17: #{baseline_model_forward.21} parent=0 // pred_fallthru
    _
  // Predicated region
  $region18: #{baseline_model_forward.21} parent=0 // pred_check
    _
  $region19: #{baseline_model_forward.21} parent=0 // pred_check_branch
    %194 = sbr.rel (0) target = $region21
  $region20: #{baseline_model_forward.21} parent=0 // pred_region
    _
  $region21: #{baseline_model_forward.21} parent=0 // pred_fallthru
    _

// kernel: baseline_model_forward.23
$region0: #{baseline_model_forward.23}
  #allocation0 [shape = 'u32[]', space=smem, size = 0x4, offset = 0x4, fixed_abs, tag = 'smem constant byte address 0x4 - core index']
  #allocation1 [shape = 'u32[144,128]{1,0:T(1,128)}', space=vmem, size = 0x12000, scoped, tag = 'internal scratch']
  %s0 = inlined_call_operand.vmem [shape: bf16[16,128], index: 0, kind: input, shape index: {}]
  %s1 = inlined_call_operand.vmem [shape: bf16[128,32], index: 1, kind: input, shape index: {}]
  %s2 = inlined_call_operand.vmem [shape: f32[1,32], index: 2, kind: input, shape index: {}]
  %s3 = inlined_call_operand.vmem [shape: bf16[16,32], index: 3, kind: input, shape index: {}]
  %s4 = inlined_call_operand.vmem [shape: f32[1,32], index: 4, kind: input, shape index: {}]
  %s5 = inlined_call_operand.vmem [shape: f32[1,32], index: 5, kind: input, shape index: {}]
  %s6 = inlined_call_operand.vmem [shape: bf16[16,32], index: 6, kind: output, shape index: {}]
  %s7 = sld [smem:[#allocation0]]
  $region34: #{baseline_model_forward.23} parent=0
    _
  %s9 = ssub.s32 1, %s7
  %s10 = scalar_select 0, %s9, %s7
  // Predicated region
  $region2: #{baseline_model_forward.23} parent=0 // pred_check
    _
  $region3: #{baseline_model_forward.23} parent=0 // pred_check_branch
    %12 = sbr.rel (0) target = $region5
  $region4: #{baseline_model_forward.23} parent=0 // pred_region
    _
  $region5: #{baseline_model_forward.23} parent=0 // pred_fallthru
    _
  // Predicated region
  $region6: #{baseline_model_forward.23} parent=0 // pred_check
    _
  $region7: #{baseline_model_forward.23} parent=0 // pred_check_branch
    %14 = sbr.rel (0) target = $region9
  $region8: #{baseline_model_forward.23} parent=0 // pred_region
    _
  $region9: #{baseline_model_forward.23} parent=0 // pred_fallthru
    _
  // Predicated region
  $region10: #{baseline_model_forward.23} parent=0 // pred_check
    _
  $region11: #{baseline_model_forward.23} parent=0 // pred_check_branch
    %16 = sbr.rel (0) target = $region13
  $region12: #{baseline_model_forward.23} parent=0 // pred_region
    _
  $region13: #{baseline_model_forward.23} parent=0 // pred_fallthru
    _
  // Predicated region
  $region14: #{baseline_model_forward.23} parent=0 // pred_check
    _
  $region15: #{baseline_model_forward.23} parent=0 // pred_check_branch
    %18 = sbr.rel (0) target = $region17
  $region16: #{baseline_model_forward.23} parent=0 // pred_region
    _
  $region17: #{baseline_model_forward.23} parent=0 // pred_fallthru
    _
  // Predicated region
  $region18: #{baseline_model_forward.23} parent=0 // pred_check
    _
  $region19: #{baseline_model_forward.23} parent=0 // pred_check_branch
    %20 = sbr.rel (0) target = $region21
  $region20: #{baseline_model_forward.23} parent=0 // pred_region
    _
  $region21: #{baseline_model_forward.23} parent=0 // pred_fallthru
    _
  // Predicated region
  $region22: #{baseline_model_forward.23} parent=0 // pred_check
    _
  $region23: #{baseline_model_forward.23} parent=0 // pred_check_branch
    %22 = sbr.rel (0) target = $region25
  $region24: #{baseline_model_forward.23} parent=0 // pred_region
    _
  $region25: #{baseline_model_forward.23} parent=0 // pred_fallthru
    _
  %v24 = vld [vmem:[%s0] sm:$0xf]
  %v25 = vld [vmem:[%s0 + $0x4] sm:$0xf]
  %v26 = vld [vmem:[%s1] sm:$0xf]
  %v27 = vld [vmem:[%s1 + $0x4] sm:$0xf]
  %v28 = vld [vmem:[%s1 + $0x8] sm:$0xf]
  %v29 = vld [vmem:[%s1 + $0xc] sm:$0xf]
  %v30 = vld [vmem:[%s1 + $0x10] sm:$0xf]
  %v31 = vld [vmem:[%s1 + $0x14] sm:$0xf]
  %v32 = vld [vmem:[%s1 + $0x18] sm:$0xf]
  %v33 = vld [vmem:[%s1 + $0x1c] sm:$0xf]
  %v34 = vld [vmem:[%s1 + $0x20] sm:$0xf]
  %v35 = vld [vmem:[%s1 + $0x24] sm:$0xf]
  %v36 = vld [vmem:[%s1 + $0x28] sm:$0xf]
  %v37 = vld [vmem:[%s1 + $0x2c] sm:$0xf]
  %v38 = vld [vmem:[%s1 + $0x30] sm:$0xf]
  %v39 = vld [vmem:[%s1 + $0x34] sm:$0xf]
  %v40 = vld [vmem:[%s1 + $0x38] sm:$0xf]
  %v41 = vld [vmem:[%s1 + $0x3c] sm:$0xf]
  %v42 = vld [vmem:[%s2] sm:$0x1]
  %v44 = vlaneseq
  %v45 = vshrl.u32 %v44, 7
  %v46 = vsub.s32 0, %v45
  %v47 = vrot.slane %v42, %v46
  %v51 = vunpack.c.l.b16 %v24
  %v52 = vunpack.c.l.b16 %v25
  %v53 = vpack.c.b16 %v52, %v51
  %v71 = vunpack.c.l.b16 %v26
  %v72 = vunpack.c.l.b16 %v27
  %v73 = vunpack.c.l.b16 %v28
  %v74 = vunpack.c.l.b16 %v29
  %v75 = vunpack.c.l.b16 %v30
  %v76 = vunpack.c.l.b16 %v31
  %v77 = vunpack.c.l.b16 %v32
  %v78 = vunpack.c.l.b16 %v33
  %v79 = vunpack.c.l.b16 %v34
  %v80 = vunpack.c.l.b16 %v35
  %v81 = vunpack.c.l.b16 %v36
  %v82 = vunpack.c.l.b16 %v37
  %v83 = vunpack.c.l.b16 %v38
  %v84 = vunpack.c.l.b16 %v39
  %v85 = vunpack.c.l.b16 %v40
  %v86 = vunpack.c.l.b16 %v41
  %v87 = vpack.c.b16 %v72, %v71
  %v88 = vpack.c.b16 %v74, %v73
  %v89 = vpack.c.b16 %v76, %v75
  %v90 = vpack.c.b16 %v78, %v77
  %v91 = vpack.c.b16 %v80, %v79
  %v92 = vpack.c.b16 %v82, %v81
  %v93 = vpack.c.b16 %v84, %v83
  %v94 = vpack.c.b16 %v86, %v85
  %103 = vmatprep.subr.bf16.mxu0 0
  %104 = vmatpush1.bf16.msra.mxu0 %v94
  %105 = vmatprep.subr.bf16.mxu0 0
  %106 = vmatpush1.bf16.msra.mxu0 %v93
  %107 = vmatprep.subr.bf16.mxu0 0
  %108 = vmatpush1.bf16.msra.mxu0 %v92
  %109 = vmatprep.subr.bf16.mxu0 0
  %110 = vmatpush1.bf16.msra.mxu0 %v91
  %111 = vmatprep.subr.bf16.mxu0 0
  %112 = vmatpush1.bf16.msra.mxu0 %v90
  %113 = vmatprep.subr.bf16.mxu0 0
  %114 = vmatpush1.bf16.msra.mxu0 %v89
  %115 = vmatprep.subr.bf16.mxu0 0
  %116 = vmatpush1.bf16.msra.mxu0 %v88
  %117 = vmatprep.subr.bf16.mxu0 0
  %118 = vmatpush1.bf16.msra.mxu0 %v87
  %119 = vmatprep.subr.bf16.mxu0 0
  %120 = vmatpush2.bf16.msra.mxu0 0
  %121 = vmatprep.subr.bf16.mxu0 0
  %122 = vmatpush2.bf16.msra.mxu0 0
  %123 = vmatprep.subr.bf16.mxu0 0
  %124 = vmatpush2.bf16.msra.mxu0 0
  %125 = vmatprep.subr.bf16.mxu0 0
  %126 = vmatpush2.bf16.msra.mxu0 0
  %127 = vmatprep.subr.bf16.mxu0 0
  %128 = vmatpush2.bf16.msra.mxu0 0
  %129 = vmatprep.subr.bf16.mxu0 0
  %130 = vmatpush2.bf16.msra.mxu0 0
  %131 = vmatprep.subr.bf16.mxu0 0
  %132 = vmatpush2.bf16.msra.mxu0 0
  %133 = vmatprep.subr.bf16.mxu0 0
  %134 = vmatpush2.bf16.msra.mxu0 0
  %135 = vmatprep.mubr.bf16.mxu0 0
  %136 = vmatmul.mubr.bf16.gmra.mxu0 %v53
  %v137 = vpop.f32.mrf.mxu0
  %v138 = vadd.f32 %v47, %v137
  %v139 = vpop.f32.mrf.mxu0
  %v140 = vpop.f32.mrf.mxu0
  %v141 = vadd.f32 %v47, %v140
  %v142 = vpop.f32.mrf.mxu0
  %143 = vdwg.mxu0
  %v144 = vld [vmem:[%s3] sm:$0xf]
  %v145 = vld [vmem:[%s3 + $0x4] sm:$0xf]
  %v146 = vunpack.c.l.bf16 %v144
  %v147 = vunpack.c.l.bf16 %v145
  %v148 = vadd.f32 %v138, %v146
  %v149 = vadd.f32 %v141, %v147
  %vm150 = vcmask 261120
  %v151 = vsel %vm150, %v148, 0.0
  %152 = vadd.xlane.f32.xlu0 %v151
  %v153 = vpop.xlane.xlu0 %152
  %v154 = vsel %vm150, %v149, 0.0
  %155 = vadd.xlane.f32.xlu0 %v154
  %v156 = vpop.xlane.xlu0 %155
  %v157 = vrcp.pop 32.0
  %v158 = vmul.f32 %v153, %v157
  %v159 = vmul.f32 %v156, %v157
  %v160 = vsub.f32 %v148, %v158
  %v161 = vsub.f32 %v149, %v159
  %v162 = vmul.f32 %v160, %v160
  %v163 = vmul.f32 %v161, %v161
  %v164 = vsel %vm150, %v162, 0.0
  %165 = vadd.xlane.f32.xlu0 %v164
  %v166 = vpop.xlane.xlu0 %165
  %v167 = vsel %vm150, %v163, 0.0
  %168 = vadd.xlane.f32.xlu0 %v167
  %v169 = vpop.xlane.xlu0 %168
  %v170 = vmul.f32 %v166, %v157
  %v171 = vmul.f32 %v169, %v157
  %v172 = vadd.f32 %v170, 1e-05
  %v173 = vadd.f32 %v171, 1e-05
  %v174 = vrsqrt.pop %v172
  %v175 = vrsqrt.pop %v173
  %v176 = vmul.f32 %v160, %v174
  %v177 = vmul.f32 %v161, %v175
  %v178 = vld [vmem:[%s4] sm:$0x1]
  %v180 = vlaneseq
  %v181 = vshrl.u32 %v180, 7
  %v182 = vsub.s32 0, %v181
  %v183 = vrot.slane %v178, %v182
  %v185 = vmul.f32 %v176, %v183
  %v186 = vmul.f32 %v177, %v183
  %v187 = vld [vmem:[%s5] sm:$0x1]
  %v189 = vlaneseq
  %v190 = vshrl.u32 %v189, 7
  %v191 = vsub.s32 0, %v190
  %v192 = vrot.slane %v187, %v191
  %v194 = vadd.f32 %v185, %v192
  %v195 = vadd.f32 %v186, %v192
  %v196 = vpack.c.bf16 %v195, %v194
  %v198 = vunpack.c.l.b16 %v196
  %v199 = vunpack.c.h.b16 %v196
  %v200 = vpack.c.b16 %v198, %v198
  %v201 = vpack.c.b16 %v199, %v199
  %vm204 = vcmask 257024
  %205 = vst.msk [vmem:[%s6] sm:$0xf] %vm204, %v200
  %206 = vst.msk [vmem:[%s6 + $0x4] sm:$0xf] %vm204, %v201
  // Predicated region
  $region26: #{baseline_model_forward.23} parent=0 // pred_check
    _
  $region27: #{baseline_model_forward.23} parent=0 // pred_check_branch
    %208 = sbr.rel (0) target = $region29
  $region28: #{baseline_model_forward.23} parent=0 // pred_region
    _
  $region29: #{baseline_model_forward.23} parent=0 // pred_fallthru
    _
  // Predicated region
  $region30: #{baseline_model_forward.23} parent=0 // pred_check
    _
  $region31: #{baseline_model_forward.23} parent=0 // pred_check_branch
    %210 = sbr.rel (0) target = $region33
  $region32: #{baseline_model_forward.23} parent=0 // pred_region
    _
  $region33: #{baseline_model_forward.23} parent=0 // pred_fallthru
    _

// kernel: baseline_model_forward.22
$region0: #{baseline_model_forward.22}
  #allocation0 [shape = 'u32[]', space=smem, size = 0x4, offset = 0x4, fixed_abs, tag = 'smem constant byte address 0x4 - core index']
  #allocation1 [shape = 'u32[144,128]{1,0:T(1,128)}', space=vmem, size = 0x12000, scoped, tag = 'internal scratch']
  #allocation2 [shape = 'f32[2,8,1]{2,1,0:T(8,128)}', space=vmem, size = 0x2000, scoped, tag = 'scratch operand']
  #allocation3 [shape = 'f32[2,8,1]{2,1,0:T(8,128)}', space=vmem, size = 0x2000, scoped, tag = 'scratch operand']
  #allocation4 [shape = 'f32[2,8,128]{2,1,0:T(8,128)}', space=vmem, size = 0x2000, scoped, tag = 'scratch operand']
  %s0 = inlined_call_operand.vmem [shape: f32[2,8], index: 0, kind: input, shape index: {}]
  %s1 = inlined_call_operand.vmem [shape: bf16[2,8,384], index: 1, kind: input, shape index: {}, may-alias: {1,2,3}]
  %s2 = inlined_call_operand.vmem [shape: bf16[2,8,384], index: 2, kind: input, shape index: {}, may-alias: {1,2,3}]
  %s3 = inlined_call_operand.vmem [shape: bf16[2,8,384], index: 3, kind: input, shape index: {}, may-alias: {1,2,3}]
  %s4 = inlined_call_operand.vmem [shape: bf16[2,8,128], index: 4, kind: output, shape index: {}]
  %s5 = sld [smem:[#allocation0]]
  $region157: #{baseline_model_forward.22} parent=0
    _
  %s7 = ssub.s32 1, %s5
  %s8 = scalar_select 0, %s7, %s5
  $region1: #{baseline_model_forward.22} parent=0
    #allocation5 [shape = 'u8[4096]{0}', space=vmem, size = 0x1000, scoped, tag = 'input window, operand 1, single buffered']
    #allocation6 [shape = 'u8[4096]{0}', space=vmem, size = 0x1000, scoped, tag = 'input window, operand 2, single buffered']
    #allocation7 [shape = 'u8[4096]{0}', space=vmem, size = 0x1000, scoped, tag = 'input window, operand 3, single buffered']
    // Predicated region
    $region2: #{baseline_model_forward.22} parent=1 // pred_check
      _
    $region3: #{baseline_model_forward.22} parent=1 // pred_check_branch
      %10 = sbr.rel (0) target = $region5
    $region4: #{baseline_model_forward.22} parent=1 // pred_region
      _
    $region5: #{baseline_model_forward.22} parent=1 // pred_fallthru
      _
    // Predicated region
    $region6: #{baseline_model_forward.22} parent=1 // pred_check
      _
    $region7: #{baseline_model_forward.22} parent=1 // pred_check_branch
      %12 = sbr.rel (0) target = $region9
    $region8: #{baseline_model_forward.22} parent=1 // pred_region
      // Predicated region
      $region10: #{baseline_model_forward.22} parent=8 // pred_check
        _
      $region11: #{baseline_model_forward.22} parent=8 // pred_check_branch
        %14 = sbr.rel (0) target = $region13
      $region12: #{baseline_model_forward.22} parent=8 // pred_region
        // Predicated region
        $region14: #{baseline_model_forward.22} parent=12 // pred_check
          _
        $region15: #{baseline_model_forward.22} parent=12 // pred_check_branch
          %16 = sbr.rel target = $region17
        $region16: #{baseline_model_forward.22} parent=12 // pred_region
          // Predicated region
          $region29: #{baseline_model_forward.22} parent=16 // pred_check
            _
          $region30: #{baseline_model_forward.22} parent=16 // pred_check_branch
            %34 = sbr.rel (0) target = $region32
          $region31: #{baseline_model_forward.22} parent=16 // pred_region
            loop: start=0, step=1, limit=1
            $region33: #{baseline_model_forward.22} parent=31 // loop_pre_header
              _
            $region34: #{baseline_model_forward.22} parent=31 // loop_header
              %s36 = sphi 0, %s40
              %p37 = scmp.ge.s32.totalorder %s36, 1
              %s41 = sphi %s1, %s1
              %s42 = sphi [#allocation5], [#allocation5]
            $region35: #{baseline_model_forward.22} parent=31 // loop_header_branch
              %39 = sbr.rel (%p37) target = $region39
            $region36: #{baseline_model_forward.22} parent=31 // loop_body
              _
            $region37: #{baseline_model_forward.22} parent=31 // loop_footer
              %s40 = sadd.s32 1, %s36
            $region38: #{baseline_model_forward.22} parent=31 // loop_footer_branch
              %35 = sbr.rel target = $region34
            $region39: #{baseline_model_forward.22} parent=31 // loop_exit
              _
            %s44 = ssub.s32 16, 1
            loop: start=0, step=1, limit=1
            $region40: #{baseline_model_forward.22} parent=31 // loop_pre_header
              _
            $region41: #{baseline_model_forward.22} parent=31 // loop_header
              %s46 = sphi 0, %s50
              %p47 = scmp.ge.s32.totalorder %s46, 1
              %s51 = sphi %s1, %s1
              %s52 = sphi [#allocation5], [#allocation5]
            $region42: #{baseline_model_forward.22} parent=31 // loop_header_branch
              %49 = sbr.rel (%p47) target = $region46
            $region43: #{baseline_model_forward.22} parent=31 // loop_body
              %v53 = vld [vmem:[%s51] sm:%s44]
              %54 = vst [vmem:[%s52] sm:%s44] %v53
              %v55 = vld [vmem:[%s51 + $0xc] sm:%s44]
              %56 = vst [vmem:[%s52 + $0x4] sm:%s44] %v55
            $region44: #{baseline_model_forward.22} parent=31 // loop_footer
              %s50 = sadd.s32 1, %s46
            $region45: #{baseline_model_forward.22} parent=31 // loop_footer_branch
              %45 = sbr.rel target = $region41
            $region46: #{baseline_model_forward.22} parent=31 // loop_exit
              _
          $region32: #{baseline_model_forward.22} parent=16 // pred_fallthru
            _
        $region17: #{baseline_model_forward.22} parent=12 // pred_fallthru
          _
        // Predicated region
        $region18: #{baseline_model_forward.22} parent=12 // pred_check
          _
        $region19: #{baseline_model_forward.22} parent=12 // pred_check_branch
          %18 = sbr.rel (0) target = $region21
        $region20: #{baseline_model_forward.22} parent=12 // pred_region
          %s20 = ssub.s32 16, 1
          loop: start=0, step=1, limit=1
          $region22: #{baseline_model_forward.22} parent=20 // loop_pre_header
            _
          $region23: #{baseline_model_forward.22} parent=20 // loop_header
            %s22 = sphi 0, %s26
            %p23 = scmp.ge.s32.totalorder %s22, 1
            %s27 = sphi %s1, %s1
            %s28 = sphi [#allocation5], [#allocation5]
          $region24: #{baseline_model_forward.22} parent=20 // loop_header_branch
            %25 = sbr.rel (%p23) target = $region28
          $region25: #{baseline_model_forward.22} parent=20 // loop_body
            %v29 = vld [vmem:[%s27] sm:%s20]
            %30 = vst [vmem:[%s28] sm:%s20] %v29
            %v31 = vld [vmem:[%s27 + $0xc] sm:%s20]
            %32 = vst [vmem:[%s28 + $0x4] sm:%s20] %v31
          $region26: #{baseline_model_forward.22} parent=20 // loop_footer
            %s26 = sadd.s32 1, %s22
          $region27: #{baseline_model_forward.22} parent=20 // loop_footer_branch
            %21 = sbr.rel target = $region23
          $region28: #{baseline_model_forward.22} parent=20 // loop_exit
            _
        $region21: #{baseline_model_forward.22} parent=12 // pred_fallthru
          _
      $region13: #{baseline_model_forward.22} parent=8 // pred_fallthru
        _
      %57 = vnop
    $region9: #{baseline_model_forward.22} parent=1 // pred_fallthru
      _
    // Predicated region
    $region47: #{baseline_model_forward.22} parent=1 // pred_check
      _
    $region48: #{baseline_model_forward.22} parent=1 // pred_check_branch
      %59 = sbr.rel (0) target = $region50
    $region49: #{baseline_model_forward.22} parent=1 // pred_region
      %s60 = scalar_lea.vmem %s2, 4
      // Predicated region
      $region51: #{baseline_model_forward.22} parent=49 // pred_check
        _
      $region52: #{baseline_model_forward.22} parent=49 // pred_check_branch
        %62 = sbr.rel (0) target = $region54
      $region53: #{baseline_model_forward.22} parent=49 // pred_region
        // Predicated region
        $region55: #{baseline_model_forward.22} parent=53 // pred_check
          _
        $region56: #{baseline_model_forward.22} parent=53 // pred_check_branch
          %64 = sbr.rel target = $region58
        $region57: #{baseline_model_forward.22} parent=53 // pred_region
          // Predicated region
          $region70: #{baseline_model_forward.22} parent=57 // pred_check
            _
          $region71: #{baseline_model_forward.22} parent=57 // pred_check_branch
            %82 = sbr.rel (0) target = $region73
          $region72: #{baseline_model_forward.22} parent=57 // pred_region
            loop: start=0, step=1, limit=1
            $region74: #{baseline_model_forward.22} parent=72 // loop_pre_header
              _
            $region75: #{baseline_model_forward.22} parent=72 // loop_header
              %s84 = sphi 0, %s88
              %p85 = scmp.ge.s32.totalorder %s84, 1
              %s89 = sphi %s60, %s60
              %s90 = sphi [#allocation6], [#allocation6]
            $region76: #{baseline_model_forward.22} parent=72 // loop_header_branch
              %87 = sbr.rel (%p85) target = $region80
            $region77: #{baseline_model_forward.22} parent=72 // loop_body
              _
            $region78: #{baseline_model_forward.22} parent=72 // loop_footer
              %s88 = sadd.s32 1, %s84
            $region79: #{baseline_model_forward.22} parent=72 // loop_footer_branch
              %83 = sbr.rel target = $region75
            $region80: #{baseline_model_forward.22} parent=72 // loop_exit
              _
            %s92 = ssub.s32 16, 1
            loop: start=0, step=1, limit=1
            $region81: #{baseline_model_forward.22} parent=72 // loop_pre_header
              _
            $region82: #{baseline_model_forward.22} parent=72 // loop_header
              %s94 = sphi 0, %s98
              %p95 = scmp.ge.s32.totalorder %s94, 1
              %s99 = sphi %s60, %s60
              %s100 = sphi [#allocation6], [#allocation6]
            $region83: #{baseline_model_forward.22} parent=72 // loop_header_branch
              %97 = sbr.rel (%p95) target = $region87
            $region84: #{baseline_model_forward.22} parent=72 // loop_body
              %v101 = vld [vmem:[%s99] sm:%s92]
              %102 = vst [vmem:[%s100] sm:%s92] %v101
              %v103 = vld [vmem:[%s99 + $0xc] sm:%s92]
              %104 = vst [vmem:[%s100 + $0x4] sm:%s92] %v103
            $region85: #{baseline_model_forward.22} parent=72 // loop_footer
              %s98 = sadd.s32 1, %s94
            $region86: #{baseline_model_forward.22} parent=72 // loop_footer_branch
              %93 = sbr.rel target = $region82
            $region87: #{baseline_model_forward.22} parent=72 // loop_exit
              _
          $region73: #{baseline_model_forward.22} parent=57 // pred_fallthru
            _
        $region58: #{baseline_model_forward.22} parent=53 // pred_fallthru
          _
        // Predicated region
        $region59: #{baseline_model_forward.22} parent=53 // pred_check
          _
        $region60: #{baseline_model_forward.22} parent=53 // pred_check_branch
          %66 = sbr.rel (0) target = $region62
        $region61: #{baseline_model_forward.22} parent=53 // pred_region
          %s68 = ssub.s32 16, 1
          loop: start=0, step=1, limit=1
          $region63: #{baseline_model_forward.22} parent=61 // loop_pre_header
            _
          $region64: #{baseline_model_forward.22} parent=61 // loop_header
            %s70 = sphi 0, %s74
            %p71 = scmp.ge.s32.totalorder %s70, 1
            %s75 = sphi %s60, %s60
            %s76 = sphi [#allocation6], [#allocation6]
          $region65: #{baseline_model_forward.22} parent=61 // loop_header_branch
            %73 = sbr.rel (%p71) target = $region69
          $region66: #{baseline_model_forward.22} parent=61 // loop_body
            %v77 = vld [vmem:[%s75] sm:%s68]
            %78 = vst [vmem:[%s76] sm:%s68] %v77
            %v79 = vld [vmem:[%s75 + $0xc] sm:%s68]
            %80 = vst [vmem:[%s76 + $0x4] sm:%s68] %v79
          $region67: #{baseline_model_forward.22} parent=61 // loop_footer
            %s74 = sadd.s32 1, %s70
          $region68: #{baseline_model_forward.22} parent=61 // loop_footer_branch
            %69 = sbr.rel target = $region64
          $region69: #{baseline_model_forward.22} parent=61 // loop_exit
            _
        $region62: #{baseline_model_forward.22} parent=53 // pred_fallthru
          _
      $region54: #{baseline_model_forward.22} parent=49 // pred_fallthru
        _
      %105 = vnop
    $region50: #{baseline_model_forward.22} parent=1 // pred_fallthru
      _
    // Predicated region
    $region88: #{baseline_model_forward.22} parent=1 // pred_check
      _
    $region89: #{baseline_model_forward.22} parent=1 // pred_check_branch
      %107 = sbr.rel (0) target = $region91
    $region90: #{baseline_model_forward.22} parent=1 // pred_region
      %s108 = scalar_lea.vmem %s3, 8
      // Predicated region
      $region92: #{baseline_model_forward.22} parent=90 // pred_check
        _
      $region93: #{baseline_model_forward.22} parent=90 // pred_check_branch
        %110 = sbr.rel (0) target = $region95
      $region94: #{baseline_model_forward.22} parent=90 // pred_region
        // Predicated region
        $region96: #{baseline_model_forward.22} parent=94 // pred_check
          _
        $region97: #{baseline_model_forward.22} parent=94 // pred_check_branch
          %112 = sbr.rel target = $region99
        $region98: #{baseline_model_forward.22} parent=94 // pred_region
          // Predicated region
          $region111: #{baseline_model_forward.22} parent=98 // pred_check
            _
          $region112: #{baseline_model_forward.22} parent=98 // pred_check_branch
            %130 = sbr.rel (0) target = $region114
          $region113: #{baseline_model_forward.22} parent=98 // pred_region
            loop: start=0, step=1, limit=1
            $region115: #{baseline_model_forward.22} parent=113 // loop_pre_header
              _
            $region116: #{baseline_model_forward.22} parent=113 // loop_header
              %s132 = sphi 0, %s136
              %p133 = scmp.ge.s32.totalorder %s132, 1
              %s137 = sphi %s108, %s108
              %s138 = sphi [#allocation7], [#allocation7]
            $region117: #{baseline_model_forward.22} parent=113 // loop_header_branch
              %135 = sbr.rel (%p133) target = $region121
            $region118: #{baseline_model_forward.22} parent=113 // loop_body
              _
            $region119: #{baseline_model_forward.22} parent=113 // loop_footer
              %s136 = sadd.s32 1, %s132
            $region120: #{baseline_model_forward.22} parent=113 // loop_footer_branch
              %131 = sbr.rel target = $region116
            $region121: #{baseline_model_forward.22} parent=113 // loop_exit
              _
            %s140 = ssub.s32 16, 1
            loop: start=0, step=1, limit=1
            $region122: #{baseline_model_forward.22} parent=113 // loop_pre_header
              _
            $region123: #{baseline_model_forward.22} parent=113 // loop_header
              %s142 = sphi 0, %s146
              %p143 = scmp.ge.s32.totalorder %s142, 1
              %s147 = sphi %s108, %s108
              %s148 = sphi [#allocation7], [#allocation7]
            $region124: #{baseline_model_forward.22} parent=113 // loop_header_branch
              %145 = sbr.rel (%p143) target = $region128
            $region125: #{baseline_model_forward.22} parent=113 // loop_body
              %v149 = vld [vmem:[%s147] sm:%s140]
              %150 = vst [vmem:[%s148] sm:%s140] %v149
              %v151 = vld [vmem:[%s147 + $0xc] sm:%s140]
              %152 = vst [vmem:[%s148 + $0x4] sm:%s140] %v151
            $region126: #{baseline_model_forward.22} parent=113 // loop_footer
              %s146 = sadd.s32 1, %s142
            $region127: #{baseline_model_forward.22} parent=113 // loop_footer_branch
              %141 = sbr.rel target = $region123
            $region128: #{baseline_model_forward.22} parent=113 // loop_exit
              _
          $region114: #{baseline_model_forward.22} parent=98 // pred_fallthru
            _
        $region99: #{baseline_model_forward.22} parent=94 // pred_fallthru
          _
        // Predicated region
        $region100: #{baseline_model_forward.22} parent=94 // pred_check
          _
        $region101: #{baseline_model_forward.22} parent=94 // pred_check_branch
          %114 = sbr.rel (0) target = $region103
        $region102: #{baseline_model_forward.22} parent=94 // pred_region
          %s116 = ssub.s32 16, 1
          loop: start=0, step=1, limit=1
          $region104: #{baseline_model_forward.22} parent=102 // loop_pre_header
            _
          $region105: #{baseline_model_forward.22} parent=102 // loop_header
            %s118 = sphi 0, %s122
            %p119 = scmp.ge.s32.totalorder %s118, 1
            %s123 = sphi %s108, %s108
            %s124 = sphi [#allocation7], [#allocation7]
          $region106: #{baseline_model_forward.22} parent=102 // loop_header_branch
            %121 = sbr.rel (%p119) target = $region110
          $region107: #{baseline_model_forward.22} parent=102 // loop_body
            %v125 = vld [vmem:[%s123] sm:%s116]
            %126 = vst [vmem:[%s124] sm:%s116] %v125
            %v127 = vld [vmem:[%s123 + $0xc] sm:%s116]
            %128 = vst [vmem:[%s124 + $0x4] sm:%s116] %v127
          $region108: #{baseline_model_forward.22} parent=102 // loop_footer
            %s122 = sadd.s32 1, %s118
          $region109: #{baseline_model_forward.22} parent=102 // loop_footer_branch
            %117 = sbr.rel target = $region105
          $region110: #{baseline_model_forward.22} parent=102 // loop_exit
            _
        $region103: #{baseline_model_forward.22} parent=94 // pred_fallthru
          _
      $region95: #{baseline_model_forward.22} parent=90 // pred_fallthru
        _
      %153 = vnop
    $region91: #{baseline_model_forward.22} parent=1 // pred_fallthru
      _
    // Predicated region
    $region129: #{baseline_model_forward.22} parent=1 // pred_check
      _
    $region130: #{baseline_model_forward.22} parent=1 // pred_check_branch
      %155 = sbr.rel (0) target = $region132
    $region131: #{baseline_model_forward.22} parent=1 // pred_region
      _
    $region132: #{baseline_model_forward.22} parent=1 // pred_fallthru
      _
    // Predicated region
    $region133: #{baseline_model_forward.22} parent=1 // pred_check
      _
    $region134: #{baseline_model_forward.22} parent=1 // pred_check_branch
      %157 = sbr.rel (0) target = $region136
    $region135: #{baseline_model_forward.22} parent=1 // pred_region
      _
    $region136: #{baseline_model_forward.22} parent=1 // pred_fallthru
      _
    // Predicated region
    $region137: #{baseline_model_forward.22} parent=1 // pred_check
      _
    $region138: #{baseline_model_forward.22} parent=1 // pred_check_branch
      %159 = sbr.rel (0) target = $region140
    $region139: #{baseline_model_forward.22} parent=1 // pred_region
      _
    $region140: #{baseline_model_forward.22} parent=1 // pred_fallthru
      _
    %p161 = scmp.eq.s32.totalorder 0, 0
    // Predicated region
    $region141: #{baseline_model_forward.22} parent=1 // pred_check
      %p162 = pneg %p161
    $region142: #{baseline_model_forward.22} parent=1 // pred_check_branch
      %164 = sbr.rel (%p162) target = $region144
    $region143: #{baseline_model_forward.22} parent=1 // pred_region
      %vm165 = vcmask 7168
      %166 = vst.msk [vmem:[#allocation2] sm:$0xff] %vm165, -1e+30
      %167 = vst.msk [vmem:[#allocation2 + $0x8] sm:$0xff] %vm165, -1e+30
      %168 = vst.msk [vmem:[#allocation3] sm:$0xff] %vm165, 0.0
      %169 = vst.msk [vmem:[#allocation3 + $0x8] sm:$0xff] %vm165, 0.0
      %170 = vst [vmem:[#allocation4] sm:$0xff] 0.0
      %171 = vst [vmem:[#allocation4 + $0x8] sm:$0xff] 0.0
    $region144: #{baseline_model_forward.22} parent=1 // pred_fallthru
      _
    %v172 = vld [vmem:[#allocation5] sm:$0xf]
    %v173 = vld [vmem:[#allocation5 + $0x4] sm:$0xf]
    %v174 = vld [vmem:[#allocation6] sm:$0xf]
    %v175 = vld [vmem:[#allocation6 + $0x4] sm:$0xf]
    %v176 = vld [vmem:[#allocation7] sm:$0xf]
    %v177 = vld [vmem:[#allocation7 + $0x4] sm:$0xf]
    %178 = vmatprep.subr.bf16.mxu0 0
    %179 = vmatpush1.bf16.xpose.msra.mxu0 0
    %180 = vmatprep.subr.bf16.mxu0 0
    %181 = vmatpush1.bf16.xpose.msra.mxu0 0
    %182 = vmatprep.subr.bf16.mxu0 0
    %183 = vmatpush1.bf16.xpose.msra.mxu0 0
    %184 = vmatprep.subr.bf16.mxu0 0
    %185 = vmatpush1.bf16.xpose.msra.mxu0 0
    %186 = vmatprep.subr.bf16.mxu0 0
    %187 = vmatpush1.bf16.xpose.msra.mxu0 0
    %188 = vmatprep.subr.bf16.mxu0 0
    %189 = vmatpush1.bf16.xpose.msra.mxu0 0
    %190 = vmatprep.subr.bf16.mxu0 0
    %191 = vmatpush1.bf16.xpose.msra.mxu0 0
    %192 = vmatprep.subr.bf16.mxu0 0
    %193 = vmatpush1.bf16.xpose.msra.mxu0 %v174
    %194 = vmatprep.subr.bf16.mxu0 0
    %195 = vmatpush2.bf16.xpose.msra.mxu0 0
    %196 = vmatprep.subr.bf16.mxu0 0
    %197 = vmatpush2.bf16.xpose.msra.mxu0 0
    %198 = vmatprep.subr.bf16.mxu0 0
    %199 = vmatpush2.bf16.xpose.msra.mxu0 0
    %200 = vmatprep.subr.bf16.mxu0 0
    %201 = vmatpush2.bf16.xpose.msra.mxu0 0
    %202 = vmatprep.subr.bf16.mxu0 0
    %203 = vmatpush2.bf16.xpose.msra.mxu0 0
    %204 = vmatprep.subr.bf16.mxu0 0
    %205 = vmatpush2.bf16.xpose.msra.mxu0 0
    %206 = vmatprep.subr.bf16.mxu0 0
    %207 = vmatpush2.bf16.xpose.msra.mxu0 0
    %208 = vmatprep.subr.bf16.mxu0 0
    %209 = vmatpush2.bf16.xpose.msra.mxu0 0
    %210 = vmatprep.mubr.bf16.mxu0 0
    %211 = vmatmul.mubr.bf16.gmra.mxu0 %v172
    %v212 = vpop.f32.mrf.mxu0
    %v213 = vadd.f32 0.0, %v212
    %v214 = vpop.f32.mrf.mxu0
    %v215 = vpop.f32.mrf.mxu0
    %v216 = vpop.f32.mrf.mxu0
    %217 = vdwg.mxu0
    %218 = vmatprep.subr.bf16.mxu0 0
    %219 = vmatpush1.bf16.xpose.msra.mxu0 0
    %220 = vmatprep.subr.bf16.mxu0 0
    %221 = vmatpush1.bf16.xpose.msra.mxu0 0
    %222 = vmatprep.subr.bf16.mxu0 0
    %223 = vmatpush1.bf16.xpose.msra.mxu0 0
    %224 = vmatprep.subr.bf16.mxu0 0
    %225 = vmatpush1.bf16.xpose.msra.mxu0 0
    %226 = vmatprep.subr.bf16.mxu0 0
    %227 = vmatpush1.bf16.xpose.msra.mxu0 0
    %228 = vmatprep.subr.bf16.mxu0 0
    %229 = vmatpush1.bf16.xpose.msra.mxu0 0
    %230 = vmatprep.subr.bf16.mxu0 0
    %231 = vmatpush1.bf16.xpose.msra.mxu0 0
    %232 = vmatprep.subr.bf16.mxu0 0
    %233 = vmatpush1.bf16.xpose.msra.mxu0 %v175
    %234 = vmatprep.subr.bf16.mxu0 0
    %235 = vmatpush2.bf16.xpose.msra.mxu0 0
    %236 = vmatprep.subr.bf16.mxu0 0
    %237 = vmatpush2.bf16.xpose.msra.mxu0 0
    %238 = vmatprep.subr.bf16.mxu0 0
    %239 = vmatpush2.bf16.xpose.msra.mxu0 0
    %240 = vmatprep.subr.bf16.mxu0 0
    %241 = vmatpush2.bf16.xpose.msra.mxu0 0
    %242 = vmatprep.subr.bf16.mxu0 0
    %243 = vmatpush2.bf16.xpose.msra.mxu0 0
    %244 = vmatprep.subr.bf16.mxu0 0
    %245 = vmatpush2.bf16.xpose.msra.mxu0 0
    %246 = vmatprep.subr.bf16.mxu0 0
    %247 = vmatpush2.bf16.xpose.msra.mxu0 0
    %248 = vmatprep.subr.bf16.mxu0 0
    %249 = vmatpush2.bf16.xpose.msra.mxu0 0
    %250 = vmatprep.mubr.bf16.mxu0 0
    %251 = vmatmul.mubr.bf16.gmra.mxu0 %v173
    %v252 = vpop.f32.mrf.mxu0
    %v253 = vadd.f32 0.0, %v252
    %v254 = vpop.f32.mrf.mxu0
    %v255 = vpop.f32.mrf.mxu0
    %v256 = vpop.f32.mrf.mxu0
    %257 = vdwg.mxu0
    %v258 = vmul.f32 %v213, 0.17677669
    %v259 = vmul.f32 %v253, 0.17677669
    %v260 = vld [vmem:[%s0] sm:$0x3]
    %v263 = vunpack.c.l.s4 1966171168
    %v264 = vunpack.c.0.s8 %v263
    %v265 = vlaneseq
    %v266 = vshrl.u32 %v265, 7
    %v267 = vsub.s32 %v264, %v266
    %v268 = vrot.slane %v260, %v267
    %v269 = vcombine.high %v268, %v268
    %v271 = vunpack.c.l.s4 1966171168
    %v272 = vunpack.c.0.s8 %v271
    %v273 = vlaneseq
    %v274 = vshrl.u32 %v273, 7
    %v275 = vsub.s32 %v272, %v274
    %v276 = vrot.slane %v268, %v275
    %v278 = vunpack.c.l.s4 1966171168
    %v279 = vunpack.c.0.s8 %v278
    %v280 = vlaneseq
    %v281 = vshrl.u32 %v280, 7
    %v282 = vsub.s32 %v279, %v281
    %v283 = vrot.slane %v269, %v282
    %v284 = vlaneseq
    %v285 = vshrl.u32 %v284, 7
    %v286 = vsub.s32 0, %v285
    %v287 = vrot.slane %v276, %v286
    %v288 = vlaneseq
    %v289 = vshrl.u32 %v288, 7
    %v290 = vsub.s32 0, %v289
    %v291 = vrot.slane %v283, %v290
    %v294 = vadd.f32 %v258, %v287
    %v295 = vadd.f32 %v259, %v291
    %v296 = vld [vmem:[#allocation2] sm:$0xff]
    %v297 = vld [vmem:[#allocation2 + $0x8] sm:$0xff]
    %vm298 = vcmask 64512
    %v299 = vsel %vm298, %v294, -inf
    %300 = vmax.xlane.f32.xlu0 %v299
    %v301 = vpop.xlane.xlu0 %300
    %v302 = vsel %vm298, %v295, -inf
    %303 = vmax.xlane.f32.xlu0 %v302
    %v304 = vpop.xlane.xlu0 %303
    %v305 = vmax.f32 %v296, %v301
    %v306 = vmax.f32 %v297, %v304
    %v307 = vsub.f32 %v296, %v305
    %v308 = vsub.f32 %v297, %v306
    %v309 = vmul.f32 %v307, 1.442695
    %v310 = vpow.pop %v309
    %v311 = vmul.f32 %v308, 1.442695
    %v312 = vpow.pop %v311
    %314 = vset.pattern.permute.xlu0 0
    %315 = vperm.xlu0 %314, %v305
    %v316 = vpop.permute.xlu0 %315
    %319 = vset.pattern.permute.xlu0 0
    %320 = vperm.xlu0 %319, %v306
    %v321 = vpop.permute.xlu0 %320
    %v323 = vsub.f32 %v294, %v316
    %v324 = vsub.f32 %v295, %v321
    %v325 = vmul.f32 %v323, 1.442695
    %v326 = vpow.pop %v325
    %v327 = vmul.f32 %v324, 1.442695
    %v328 = vpow.pop %v327
    %v329 = vld [vmem:[#allocation3] sm:$0xff]
    %v330 = vld [vmem:[#allocation3 + $0x8] sm:$0xff]
    %v331 = vmul.f32 %v310, %v329
    %v332 = vmul.f32 %v312, %v330
    %v333 = vsel %vm298, %v326, 0.0
    %334 = vadd.xlane.f32.xlu0 %v333
    %v335 = vpop.xlane.xlu0 %334
    %v336 = vsel %vm298, %v328, 0.0
    %337 = vadd.xlane.f32.xlu0 %v336
    %v338 = vpop.xlane.xlu0 %337
    %v339 = vadd.f32 %v331, %v335
    %v340 = vadd.f32 %v332, %v338
    %vm341 = vcmask 7168
    %342 = vst.msk [vmem:[#allocation3] sm:$0xff] %vm341, %v339
    %343 = vst.msk [vmem:[#allocation3 + $0x8] sm:$0xff] %vm341, %v340
    %v344 = vld [vmem:[#allocation4] sm:$0xff]
    %v345 = vld [vmem:[#allocation4 + $0x8] sm:$0xff]
    %347 = vset.pattern.permute.xlu0 0
    %348 = vperm.xlu0 %347, %v310
    %v349 = vpop.permute.xlu0 %348
    %352 = vset.pattern.permute.xlu0 0
    %353 = vperm.xlu0 %352, %v312
    %v354 = vpop.permute.xlu0 %353
    %v356 = vmul.f32 %v349, %v344
    %v357 = vmul.f32 %v354, %v345
    %v358 = vpack.c.bf16 %v326, %v326
    %v359 = vpack.c.bf16 %v328, %v328
    %v361 = vsel %vm298, %v358, 0
    %vm363 = vcmask 1043456
    %v365 = vsel %vm363, %v176, 0
    %367 = vmatprep.subr.bf16.mxu0 0
    %368 = vmatpush1.bf16.msra.mxu0 0
    %369 = vmatprep.subr.bf16.mxu0 0
    %370 = vmatpush1.bf16.msra.mxu0 0
    %371 = vmatprep.subr.bf16.mxu0 0
    %372 = vmatpush1.bf16.msra.mxu0 0
    %373 = vmatprep.subr.bf16.mxu0 0
    %374 = vmatpush1.bf16.msra.mxu0 0
    %375 = vmatprep.subr.bf16.mxu0 0
    %376 = vmatpush1.bf16.msra.mxu0 0
    %377 = vmatprep.subr.bf16.mxu0 0
    %378 = vmatpush1.bf16.msra.mxu0 0
    %379 = vmatprep.subr.bf16.mxu0 0
    %380 = vmatpush1.bf16.msra.mxu0 0
    %381 = vmatprep.subr.bf16.mxu0 0
    %382 = vmatpush1.bf16.msra.mxu0 %v365
    %383 = vmatprep.subr.bf16.mxu0 0
    %384 = vmatpush2.bf16.msra.mxu0 0
    %385 = vmatprep.subr.bf16.mxu0 0
    %386 = vmatpush2.bf16.msra.mxu0 0
    %387 = vmatprep.subr.bf16.mxu0 0
    %388 = vmatpush2.bf16.msra.mxu0 0
    %389 = vmatprep.subr.bf16.mxu0 0
    %390 = vmatpush2.bf16.msra.mxu0 0
    %391 = vmatprep.subr.bf16.mxu0 0
    %392 = vmatpush2.bf16.msra.mxu0 0
    %393 = vmatprep.subr.bf16.mxu0 0
    %394 = vmatpush2.bf16.msra.mxu0 0
    %395 = vmatprep.subr.bf16.mxu0 0
    %396 = vmatpush2.bf16.msra.mxu0 0
    %397 = vmatprep.subr.bf16.mxu0 0
    %398 = vmatpush2.bf16.msra.mxu0 0
    %399 = vmatprep.mubr.bf16.mxu0 0
    %400 = vmatmul.mubr.bf16.gmra.mxu0 %v361
    %v401 = vpop.f32.mrf.mxu0
    %v402 = vadd.f32 0.0, %v401
    %v403 = vpop.f32.mrf.mxu0
    %v404 = vpop.f32.mrf.mxu0
    %v405 = vpop.f32.mrf.mxu0
    %406 = vdwg.mxu0
    %v408 = vsel %vm298, %v359, 0
    %v411 = vsel %vm363, %v177, 0
    %413 = vmatprep.subr.bf16.mxu0 0
    %414 = vmatpush1.bf16.msra.mxu0 0
    %415 = vmatprep.subr.bf16.mxu0 0
    %416 = vmatpush1.bf16.msra.mxu0 0
    %417 = vmatprep.subr.bf16.mxu0 0
    %418 = vmatpush1.bf16.msra.mxu0 0
    %419 = vmatprep.subr.bf16.mxu0 0
    %420 = vmatpush1.bf16.msra.mxu0 0
    %421 = vmatprep.subr.bf16.mxu0 0
    %422 = vmatpush1.bf16.msra.mxu0 0
    %423 = vmatprep.subr.bf16.mxu0 0
    %424 = vmatpush1.bf16.msra.mxu0 0
    %425 = vmatprep.subr.bf16.mxu0 0
    %426 = vmatpush1.bf16.msra.mxu0 0
    %427 = vmatprep.subr.bf16.mxu0 0
    %428 = vmatpush1.bf16.msra.mxu0 %v411
    %429 = vmatprep.subr.bf16.mxu0 0
    %430 = vmatpush2.bf16.msra.mxu0 0
    %431 = vmatprep.subr.bf16.mxu0 0
    %432 = vmatpush2.bf16.msra.mxu0 0
    %433 = vmatprep.subr.bf16.mxu0 0
    %434 = vmatpush2.bf16.msra.mxu0 0
    %435 = vmatprep.subr.bf16.mxu0 0
    %436 = vmatpush2.bf16.msra.mxu0 0
    %437 = vmatprep.subr.bf16.mxu0 0
    %438 = vmatpush2.bf16.msra.mxu0 0
    %439 = vmatprep.subr.bf16.mxu0 0
    %440 = vmatpush2.bf16.msra.mxu0 0
    %441 = vmatprep.subr.bf16.mxu0 0
    %442 = vmatpush2.bf16.msra.mxu0 0
    %443 = vmatprep.subr.bf16.mxu0 0
    %444 = vmatpush2.bf16.msra.mxu0 0
    %445 = vmatprep.mubr.bf16.mxu0 0
    %446 = vmatmul.mubr.bf16.gmra.mxu0 %v408
    %v447 = vpop.f32.mrf.mxu0
    %v448 = vadd.f32 0.0, %v447
    %v449 = vpop.f32.mrf.mxu0
    %v450 = vpop.f32.mrf.mxu0
    %v451 = vpop.f32.mrf.mxu0
    %452 = vdwg.mxu0
    %v453 = vadd.f32 %v356, %v402
    %v454 = vadd.f32 %v357, %v448
    %455 = vst [vmem:[#allocation4] sm:$0xff] %v453
    %456 = vst [vmem:[#allocation4 + $0x8] sm:$0xff] %v454
    %457 = vst.msk [vmem:[#allocation2] sm:$0xff] %vm341, %v305
    %458 = vst.msk [vmem:[#allocation2 + $0x8] sm:$0xff] %vm341, %v306
    // Predicated region
    $region145: #{baseline_model_forward.22} parent=1 // pred_check
      %p459 = pneg %p161
    $region146: #{baseline_model_forward.22} parent=1 // pred_check_branch
      %461 = sbr.rel (%p459) target = $region148
    $region147: #{baseline_model_forward.22} parent=1 // pred_region
      %v462 = vld [vmem:[#allocation4] sm:$0xff]
      %v463 = vld [vmem:[#allocation4 + $0x8] sm:$0xff]
      %v464 = vld [vmem:[#allocation3] sm:$0xff]
      %v465 = vld [vmem:[#allocation3 + $0x8] sm:$0xff]
      %467 = vset.pattern.permute.xlu0 0
      %468 = vperm.xlu0 %467, %v464
      %v469 = vpop.permute.xlu0 %468
      %472 = vset.pattern.permute.xlu0 0
      %473 = vperm.xlu0 %472, %v465
      %v474 = vpop.permute.xlu0 %473
      %v476 = vrcp.pop %v469
      %v477 = vmul.f32 %v462, %v476
      %v478 = vrcp.pop %v474
      %v479 = vmul.f32 %v463, %v478
      %v480 = vpack.c.bf16 %v477, %v477
      %v481 = vpack.c.bf16 %v479, %v479
      %482 = vst [vmem:[%s4] sm:$0xf] %v480
      %483 = vst [vmem:[%s4 + $0x4] sm:$0xf] %v481
    $region148: #{baseline_model_forward.22} parent=1 // pred_fallthru
      _
    // Predicated region
    $region149: #{baseline_model_forward.22} parent=1 // pred_check
      _
    $region150: #{baseline_model_forward.22} parent=1 // pred_check_branch
      %485 = sbr.rel (0) target = $region152
    $region151: #{baseline_model_forward.22} parent=1 // pred_region
      _
    $region152: #{baseline_model_forward.22} parent=1 // pred_fallthru
      _
    // Predicated region
    $region153: #{baseline_model_forward.22} parent=1 // pred_check
      _
    $region154: #{baseline_model_forward.22} parent=1 // pred_check_branch
      %487 = sbr.rel (0) target = $region156
    $region155: #{baseline_model_forward.22} parent=1 // pred_region
      _
    $region156: #{baseline_model_forward.22} parent=1 // pred_fallthru
      _

// kernel: baseline_model_forward.24
$region0: #{baseline_model_forward.24}
  #allocation0 [shape = 'u32[]', space=smem, size = 0x4, offset = 0x4, fixed_abs, tag = 'smem constant byte address 0x4 - core index']
  #allocation1 [shape = 'u32[144,128]{1,0:T(1,128)}', space=vmem, size = 0x12000, scoped, tag = 'internal scratch']
  %s0 = inlined_call_operand.vmem [shape: bf16[16,32], index: 0, kind: input, shape index: {}]
  %s1 = inlined_call_operand.vmem [shape: bf16[32,128], index: 1, kind: input, shape index: {}]
  %s2 = inlined_call_operand.vmem [shape: f32[1,128], index: 2, kind: input, shape index: {}]
  %s3 = inlined_call_operand.vmem [shape: bf16[16,128], index: 3, kind: output, shape index: {}]
  %s4 = sld [smem:[#allocation0]]
  $region22: #{baseline_model_forward.24} parent=0
    _
  %s6 = ssub.s32 1, %s4
  %s7 = scalar_select 0, %s6, %s4
  // Predicated region
  $region2: #{baseline_model_forward.24} parent=0 // pred_check
    _
  $region3: #{baseline_model_forward.24} parent=0 // pred_check_branch
    %9 = sbr.rel (0) target = $region5
  $region4: #{baseline_model_forward.24} parent=0 // pred_region
    _
  $region5: #{baseline_model_forward.24} parent=0 // pred_fallthru
    _
  // Predicated region
  $region6: #{baseline_model_forward.24} parent=0 // pred_check
    _
  $region7: #{baseline_model_forward.24} parent=0 // pred_check_branch
    %11 = sbr.rel (0) target = $region9
  $region8: #{baseline_model_forward.24} parent=0 // pred_region
    _
  $region9: #{baseline_model_forward.24} parent=0 // pred_fallthru
    _
  // Predicated region
  $region10: #{baseline_model_forward.24} parent=0 // pred_check
    _
  $region11: #{baseline_model_forward.24} parent=0 // pred_check_branch
    %13 = sbr.rel (0) target = $region13
  $region12: #{baseline_model_forward.24} parent=0 // pred_region
    _
  $region13: #{baseline_model_forward.24} parent=0 // pred_fallthru
    _
  %v15 = vld [vmem:[%s0] sm:$0xf]
  %v16 = vld [vmem:[%s0 + $0x4] sm:$0xf]
  %v17 = vld [vmem:[%s1] sm:$0xf]
  %v18 = vld [vmem:[%s1 + $0x4] sm:$0xf]
  %v19 = vld [vmem:[%s1 + $0x8] sm:$0xf]
  %v20 = vld [vmem:[%s1 + $0xc] sm:$0xf]
  %v21 = vld [vmem:[%s2] sm:$0x1]
  %v23 = vlaneseq
  %v24 = vshrl.u32 %v23, 7
  %v25 = vsub.s32 0, %v24
  %v26 = vrot.slane %v21, %v25
  %v30 = vunpack.c.l.b16 %v15
  %v31 = vunpack.c.l.b16 %v16
  %v32 = vpack.c.b16 %v31, %v30
  %v37 = vunpack.c.l.b16 %v17
  %v38 = vunpack.c.l.b16 %v18
  %v39 = vunpack.c.l.b16 %v19
  %v40 = vunpack.c.l.b16 %v20
  %v41 = vpack.c.b16 %v38, %v37
  %v42 = vpack.c.b16 %v40, %v39
  %vm45 = vcmask 261120
  %v47 = vsel %vm45, %v32, 0
  %49 = vmatprep.subr.bf16.mxu0 0
  %50 = vmatpush1.bf16.msra.mxu0 0
  %51 = vmatprep.subr.bf16.mxu0 0
  %52 = vmatpush1.bf16.msra.mxu0 0
  %53 = vmatprep.subr.bf16.mxu0 0
  %54 = vmatpush1.bf16.msra.mxu0 0
  %55 = vmatprep.subr.bf16.mxu0 0
  %56 = vmatpush1.bf16.msra.mxu0 0
  %57 = vmatprep.subr.bf16.mxu0 0
  %58 = vmatpush1.bf16.msra.mxu0 0
  %59 = vmatprep.subr.bf16.mxu0 0
  %60 = vmatpush1.bf16.msra.mxu0 0
  %61 = vmatprep.subr.bf16.mxu0 0
  %62 = vmatpush1.bf16.msra.mxu0 %v42
  %63 = vmatprep.subr.bf16.mxu0 0
  %64 = vmatpush1.bf16.msra.mxu0 %v41
  %65 = vmatprep.subr.bf16.mxu0 0
  %66 = vmatpush2.bf16.msra.mxu0 0
  %67 = vmatprep.subr.bf16.mxu0 0
  %68 = vmatpush2.bf16.msra.mxu0 0
  %69 = vmatprep.subr.bf16.mxu0 0
  %70 = vmatpush2.bf16.msra.mxu0 0
  %71 = vmatprep.subr.bf16.mxu0 0
  %72 = vmatpush2.bf16.msra.mxu0 0
  %73 = vmatprep.subr.bf16.mxu0 0
  %74 = vmatpush2.bf16.msra.mxu0 0
  %75 = vmatprep.subr.bf16.mxu0 0
  %76 = vmatpush2.bf16.msra.mxu0 0
  %77 = vmatprep.subr.bf16.mxu0 0
  %78 = vmatpush2.bf16.msra.mxu0 0
  %79 = vmatprep.subr.bf16.mxu0 0
  %80 = vmatpush2.bf16.msra.mxu0 0
  %81 = vmatprep.mubr.bf16.mxu0 0
  %82 = vmatmul.mubr.bf16.gmra.mxu0 %v47
  %v83 = vpop.f32.mrf.mxu0
  %v84 = vadd.f32 %v26, %v83
  %v85 = vpop.f32.mrf.mxu0
  %v86 = vpop.f32.mrf.mxu0
  %v87 = vadd.f32 %v26, %v86
  %v88 = vpop.f32.mrf.mxu0
  %89 = vdwg.mxu0
  %v90 = vmul.f32 %v84, %v84
  %v91 = vmul.f32 %v87, %v87
  %v92 = vmul.f32 %v84, %v90
  %v93 = vmul.f32 %v87, %v91
  %v94 = vmul.f32 %v92, 0.044715
  %v95 = vmul.f32 %v93, 0.044715
  %v96 = vadd.f32 %v84, %v94
  %v97 = vadd.f32 %v87, %v95
  %v98 = vmul.f32 %v96, 0.7978846
  %v99 = vmul.f32 %v97, 0.7978846
  %v100 = vtanh.pop %v98
  %v101 = vtanh.pop %v99
  %v102 = vadd.f32 %v100, 1.0
  %v103 = vadd.f32 %v101, 1.0
  %v104 = vmul.f32 %v102, 0.5
  %v105 = vmul.f32 %v103, 0.5
  %v106 = vmul.f32 %v84, %v104
  %v107 = vmul.f32 %v87, %v105
  %v108 = vpack.c.bf16 %v107, %v106
  %v110 = vunpack.c.l.b16 %v108
  %v111 = vunpack.c.h.b16 %v108
  %v112 = vpack.c.b16 %v110, %v110
  %v113 = vpack.c.b16 %v111, %v111
  %116 = vst [vmem:[%s3] sm:$0xf] %v112
  %117 = vst [vmem:[%s3 + $0x4] sm:$0xf] %v113
  // Predicated region
  $region14: #{baseline_model_forward.24} parent=0 // pred_check
    _
  $region15: #{baseline_model_forward.24} parent=0 // pred_check_branch
    %119 = sbr.rel (0) target = $region17
  $region16: #{baseline_model_forward.24} parent=0 // pred_region
    _
  $region17: #{baseline_model_forward.24} parent=0 // pred_fallthru
    _
  // Predicated region
  $region18: #{baseline_model_forward.24} parent=0 // pred_check
    _
  $region19: #{baseline_model_forward.24} parent=0 // pred_check_branch
    %121 = sbr.rel (0) target = $region21
  $region20: #{baseline_model_forward.24} parent=0 // pred_region
    _
  $region21: #{baseline_model_forward.24} parent=0 // pred_fallthru
    _

// kernel: baseline_model_forward.13
$region0: #{baseline_model_forward.13}
  #allocation0 [shape = 'u32[]', space=smem, size = 0x4, offset = 0x4, fixed_abs, tag = 'smem constant byte address 0x4 - core index']
  #allocation1 [shape = 'u32[144,128]{1,0:T(1,128)}', space=vmem, size = 0x12000, scoped, tag = 'internal scratch']
  %s0 = inlined_call_operand.vmem [shape: bf16[128,128], index: 0, kind: input, shape index: {}]
  %s1 = inlined_call_operand.vmem [shape: bf16[128,128], index: 1, kind: input, shape index: {}]
  %s2 = inlined_call_operand.vmem [shape: bf16[128,128], index: 2, kind: output, shape index: {}]
  %s3 = sld [smem:[#allocation0]]
  $region18: #{baseline_model_forward.13} parent=0
    _
  %s5 = ssub.s32 1, %s3
  %s6 = scalar_select 0, %s5, %s3
  // Predicated region
  $region2: #{baseline_model_forward.13} parent=0 // pred_check
    _
  $region3: #{baseline_model_forward.13} parent=0 // pred_check_branch
    %8 = sbr.rel (0) target = $region5
  $region4: #{baseline_model_forward.13} parent=0 // pred_region
    _
  $region5: #{baseline_model_forward.13} parent=0 // pred_fallthru
    _
  // Predicated region
  $region6: #{baseline_model_forward.13} parent=0 // pred_check
    _
  $region7: #{baseline_model_forward.13} parent=0 // pred_check_branch
    %10 = sbr.rel (0) target = $region9
  $region8: #{baseline_model_forward.13} parent=0 // pred_region
    _
  $region9: #{baseline_model_forward.13} parent=0 // pred_fallthru
    _
  %v12 = vld [vmem:[%s0] sm:$0xf]
  %v13 = vld [vmem:[%s0 + $0x4] sm:$0xf]
  %v14 = vld [vmem:[%s0 + $0x8] sm:$0xf]
  %v15 = vld [vmem:[%s0 + $0xc] sm:$0xf]
  %v16 = vld [vmem:[%s0 + $0x10] sm:$0xf]
  %v17 = vld [vmem:[%s0 + $0x14] sm:$0xf]
  %v18 = vld [vmem:[%s0 + $0x18] sm:$0xf]
  %v19 = vld [vmem:[%s0 + $0x1c] sm:$0xf]
  %v20 = vld [vmem:[%s0 + $0x20] sm:$0xf]
  %v21 = vld [vmem:[%s0 + $0x24] sm:$0xf]
  %v22 = vld [vmem:[%s0 + $0x28] sm:$0xf]
  %v23 = vld [vmem:[%s0 + $0x2c] sm:$0xf]
  %v24 = vld [vmem:[%s0 + $0x30] sm:$0xf]
  %v25 = vld [vmem:[%s0 + $0x34] sm:$0xf]
  %v26 = vld [vmem:[%s0 + $0x38] sm:$0xf]
  %v27 = vld [vmem:[%s0 + $0x3c] sm:$0xf]
  %v28 = vld [vmem:[%s1] sm:$0xf]
  %v29 = vld [vmem:[%s1 + $0x4] sm:$0xf]
  %v30 = vld [vmem:[%s1 + $0x8] sm:$0xf]
  %v31 = vld [vmem:[%s1 + $0xc] sm:$0xf]
  %v32 = vld [vmem:[%s1 + $0x10] sm:$0xf]
  %v33 = vld [vmem:[%s1 + $0x14] sm:$0xf]
  %v34 = vld [vmem:[%s1 + $0x18] sm:$0xf]
  %v35 = vld [vmem:[%s1 + $0x1c] sm:$0xf]
  %v36 = vld [vmem:[%s1 + $0x20] sm:$0xf]
  %v37 = vld [vmem:[%s1 + $0x24] sm:$0xf]
  %v38 = vld [vmem:[%s1 + $0x28] sm:$0xf]
  %v39 = vld [vmem:[%s1 + $0x2c] sm:$0xf]
  %v40 = vld [vmem:[%s1 + $0x30] sm:$0xf]
  %v41 = vld [vmem:[%s1 + $0x34] sm:$0xf]
  %v42 = vld [vmem:[%s1 + $0x38] sm:$0xf]
  %v43 = vld [vmem:[%s1 + $0x3c] sm:$0xf]
  %v60 = vunpack.c.l.b16 %v12
  %v61 = vunpack.c.l.b16 %v13
  %v62 = vunpack.c.l.b16 %v14
  %v63 = vunpack.c.l.b16 %v15
  %v64 = vunpack.c.l.b16 %v16
  %v65 = vunpack.c.l.b16 %v17
  %v66 = vunpack.c.l.b16 %v18
  %v67 = vunpack.c.l.b16 %v19
  %v68 = vunpack.c.l.b16 %v20
  %v69 = vunpack.c.l.b16 %v21
  %v70 = vunpack.c.l.b16 %v22
  %v71 = vunpack.c.l.b16 %v23
  %v72 = vunpack.c.l.b16 %v24
  %v73 = vunpack.c.l.b16 %v25
  %v74 = vunpack.c.l.b16 %v26
  %v75 = vunpack.c.l.b16 %v27
  %v76 = vpack.c.b16 %v61, %v60
  %v77 = vpack.c.b16 %v63, %v62
  %v78 = vpack.c.b16 %v65, %v64
  %v79 = vpack.c.b16 %v67, %v66
  %v80 = vpack.c.b16 %v69, %v68
  %v81 = vpack.c.b16 %v71, %v70
  %v82 = vpack.c.b16 %v73, %v72
  %v83 = vpack.c.b16 %v75, %v74
  %v108 = vunpack.c.l.b16 %v28
  %v109 = vunpack.c.l.b16 %v29
  %v110 = vunpack.c.l.b16 %v30
  %v111 = vunpack.c.l.b16 %v31
  %v112 = vunpack.c.l.b16 %v32
  %v113 = vunpack.c.l.b16 %v33
  %v114 = vunpack.c.l.b16 %v34
  %v115 = vunpack.c.l.b16 %v35
  %v116 = vunpack.c.l.b16 %v36
  %v117 = vunpack.c.l.b16 %v37
  %v118 = vunpack.c.l.b16 %v38
  %v119 = vunpack.c.l.b16 %v39
  %v120 = vunpack.c.l.b16 %v40
  %v121 = vunpack.c.l.b16 %v41
  %v122 = vunpack.c.l.b16 %v42
  %v123 = vunpack.c.l.b16 %v43
  %v124 = vpack.c.b16 %v109, %v108
  %v125 = vpack.c.b16 %v111, %v110
  %v126 = vpack.c.b16 %v113, %v112
  %v127 = vpack.c.b16 %v115, %v114
  %v128 = vpack.c.b16 %v117, %v116
  %v129 = vpack.c.b16 %v119, %v118
  %v130 = vpack.c.b16 %v121, %v120
  %v131 = vpack.c.b16 %v123, %v122
  %140 = vmatprep.subr.bf16.mxu0 0
  %141 = vmatpush1.bf16.msra.mxu0 %v131
  %142 = vmatprep.subr.bf16.mxu0 0
  %143 = vmatpush1.bf16.msra.mxu0 %v130
  %144 = vmatprep.subr.bf16.mxu0 0
  %145 = vmatpush1.bf16.msra.mxu0 %v129
  %146 = vmatprep.subr.bf16.mxu0 0
  %147 = vmatpush1.bf16.msra.mxu0 %v128
  %148 = vmatprep.subr.bf16.mxu0 0
  %149 = vmatpush1.bf16.msra.mxu0 %v127
  %150 = vmatprep.subr.bf16.mxu0 0
  %151 = vmatpush1.bf16.msra.mxu0 %v126
  %152 = vmatprep.subr.bf16.mxu0 0
  %153 = vmatpush1.bf16.msra.mxu0 %v125
  %154 = vmatprep.subr.bf16.mxu0 0
  %155 = vmatpush1.bf16.msra.mxu0 %v124
  %156 = vmatprep.subr.bf16.mxu0 0
  %157 = vmatpush2.bf16.msra.mxu0 0
  %158 = vmatprep.subr.bf16.mxu0 0
  %159 = vmatpush2.bf16.msra.mxu0 0
  %160 = vmatprep.subr.bf16.mxu0 0
  %161 = vmatpush2.bf16.msra.mxu0 0
  %162 = vmatprep.subr.bf16.mxu0 0
  %163 = vmatpush2.bf16.msra.mxu0 0
  %164 = vmatprep.subr.bf16.mxu0 0
  %165 = vmatpush2.bf16.msra.mxu0 0
  %166 = vmatprep.subr.bf16.mxu0 0
  %167 = vmatpush2.bf16.msra.mxu0 0
  %168 = vmatprep.subr.bf16.mxu0 0
  %169 = vmatpush2.bf16.msra.mxu0 0
  %170 = vmatprep.subr.bf16.mxu0 0
  %171 = vmatpush2.bf16.msra.mxu0 0
  %172 = vmatprep.mubr.bf16.mxu0 0
  %173 = vmatmul.mubr.bf16.gmra.mxu0 %v76
  %v174 = vpop.f32.mrf.mxu0
  %v175 = vadd.f32 0.0, %v174
  %v176 = vpop.f32.mrf.mxu0
  %v177 = vpop.f32.mrf.mxu0
  %v178 = vadd.f32 0.0, %v177
  %v179 = vpop.f32.mrf.mxu0
  %180 = vmatprep.mubr.bf16.mxu0 0
  %181 = vmatmul.mubr.bf16.gmra.mxu0 %v77
  %v182 = vpop.f32.mrf.mxu0
  %v183 = vadd.f32 0.0, %v182
  %v184 = vpop.f32.mrf.mxu0
  %v185 = vpop.f32.mrf.mxu0
  %v186 = vadd.f32 0.0, %v185
  %v187 = vpop.f32.mrf.mxu0
  %188 = vmatprep.mubr.bf16.mxu0 0
  %189 = vmatmul.mubr.bf16.gmra.mxu0 %v78
  %v190 = vpop.f32.mrf.mxu0
  %v191 = vadd.f32 0.0, %v190
  %v192 = vpop.f32.mrf.mxu0
  %v193 = vpop.f32.mrf.mxu0
  %v194 = vadd.f32 0.0, %v193
  %v195 = vpop.f32.mrf.mxu0
  %196 = vmatprep.mubr.bf16.mxu0 0
  %197 = vmatmul.mubr.bf16.gmra.mxu0 %v79
  %v198 = vpop.f32.mrf.mxu0
  %v199 = vadd.f32 0.0, %v198
  %v200 = vpop.f32.mrf.mxu0
  %v201 = vpop.f32.mrf.mxu0
  %v202 = vadd.f32 0.0, %v201
  %v203 = vpop.f32.mrf.mxu0
  %204 = vmatprep.mubr.bf16.mxu0 0
  %205 = vmatmul.mubr.bf16.gmra.mxu0 %v80
  %v206 = vpop.f32.mrf.mxu0
  %v207 = vadd.f32 0.0, %v206
  %v208 = vpop.f32.mrf.mxu0
  %v209 = vpop.f32.mrf.mxu0
  %v210 = vadd.f32 0.0, %v209
  %v211 = vpop.f32.mrf.mxu0
  %212 = vmatprep.mubr.bf16.mxu0 0
  %213 = vmatmul.mubr.bf16.gmra.mxu0 %v81
  %v214 = vpop.f32.mrf.mxu0
  %v215 = vadd.f32 0.0, %v214
  %v216 = vpop.f32.mrf.mxu0
  %v217 = vpop.f32.mrf.mxu0
  %v218 = vadd.f32 0.0, %v217
  %v219 = vpop.f32.mrf.mxu0
  %220 = vmatprep.mubr.bf16.mxu0 0
  %221 = vmatmul.mubr.bf16.gmra.mxu0 %v82
  %v222 = vpop.f32.mrf.mxu0
  %v223 = vadd.f32 0.0, %v222
  %v224 = vpop.f32.mrf.mxu0
  %v225 = vpop.f32.mrf.mxu0
  %v226 = vadd.f32 0.0, %v225
  %v227 = vpop.f32.mrf.mxu0
  %228 = vmatprep.mubr.bf16.mxu0 0
  %229 = vmatmul.mubr.bf16.gmra.mxu0 %v83
  %v230 = vpop.f32.mrf.mxu0
  %v231 = vadd.f32 0.0, %v230
  %v232 = vpop.f32.mrf.mxu0
  %v233 = vpop.f32.mrf.mxu0
  %v234 = vadd.f32 0.0, %v233
  %v235 = vpop.f32.mrf.mxu0
  %236 = vdwg.mxu0
  %v237 = vpack.c.bf16 %v178, %v175
  %v238 = vpack.c.bf16 %v186, %v183
  %v239 = vpack.c.bf16 %v194, %v191
  %v240 = vpack.c.bf16 %v202, %v199
  %v241 = vpack.c.bf16 %v210, %v207
  %v242 = vpack.c.bf16 %v218, %v215
  %v243 = vpack.c.bf16 %v226, %v223
  %v244 = vpack.c.bf16 %v234, %v231
  %v253 = vunpack.c.l.b16 %v237
  %v254 = vunpack.c.h.b16 %v237
  %v255 = vunpack.c.l.b16 %v238
  %v256 = vunpack.c.h.b16 %v238
  %v257 = vunpack.c.l.b16 %v239
  %v258 = vunpack.c.h.b16 %v239
  %v259 = vunpack.c.l.b16 %v240
  %v260 = vunpack.c.h.b16 %v240
  %v261 = vunpack.c.l.b16 %v241
  %v262 = vunpack.c.h.b16 %v241
  %v263 = vunpack.c.l.b16 %v242
  %v264 = vunpack.c.h.b16 %v242
  %v265 = vunpack.c.l.b16 %v243
  %v266 = vunpack.c.h.b16 %v243
  %v267 = vunpack.c.l.b16 %v244
  %v268 = vunpack.c.h.b16 %v244
  %v269 = vpack.c.b16 %v253, %v253
  %v270 = vpack.c.b16 %v254, %v254
  %v271 = vpack.c.b16 %v255, %v255
  %v272 = vpack.c.b16 %v256, %v256
  %v273 = vpack.c.b16 %v257, %v257
  %v274 = vpack.c.b16 %v258, %v258
  %v275 = vpack.c.b16 %v259, %v259
  %v276 = vpack.c.b16 %v260, %v260
  %v277 = vpack.c.b16 %v261, %v261
  %v278 = vpack.c.b16 %v262, %v262
  %v279 = vpack.c.b16 %v263, %v263
  %v280 = vpack.c.b16 %v264, %v264
  %v281 = vpack.c.b16 %v265, %v265
  %v282 = vpack.c.b16 %v266, %v266
  %v283 = vpack.c.b16 %v267, %v267
  %v284 = vpack.c.b16 %v268, %v268
  %301 = vst [vmem:[%s2] sm:$0xf] %v269
  %302 = vst [vmem:[%s2 + $0x4] sm:$0xf] %v270
  %303 = vst [vmem:[%s2 + $0x8] sm:$0xf] %v271
  %304 = vst [vmem:[%s2 + $0xc] sm:$0xf] %v272
  %305 = vst [vmem:[%s2 + $0x10] sm:$0xf] %v273
  %306 = vst [vmem:[%s2 + $0x14] sm:$0xf] %v274
  %307 = vst [vmem:[%s2 + $0x18] sm:$0xf] %v275
  %308 = vst [vmem:[%s2 + $0x1c] sm:$0xf] %v276
  %309 = vst [vmem:[%s2 + $0x20] sm:$0xf] %v277
  %310 = vst [vmem:[%s2 + $0x24] sm:$0xf] %v278
  %311 = vst [vmem:[%s2 + $0x28] sm:$0xf] %v279
  %312 = vst [vmem:[%s2 + $0x2c] sm:$0xf] %v280
  %313 = vst [vmem:[%s2 + $0x30] sm:$0xf] %v281
  %314 = vst [vmem:[%s2 + $0x34] sm:$0xf] %v282
  %315 = vst [vmem:[%s2 + $0x38] sm:$0xf] %v283
  %316 = vst [vmem:[%s2 + $0x3c] sm:$0xf] %v284
  // Predicated region
  $region10: #{baseline_model_forward.13} parent=0 // pred_check
    _
  $region11: #{baseline_model_forward.13} parent=0 // pred_check_branch
    %318 = sbr.rel (0) target = $region13
  $region12: #{baseline_model_forward.13} parent=0 // pred_region
    _
  $region13: #{baseline_model_forward.13} parent=0 // pred_fallthru
    _
  // Predicated region
  $region14: #{baseline_model_forward.13} parent=0 // pred_check
    _
  $region15: #{baseline_model_forward.13} parent=0 // pred_check_branch
    %320 = sbr.rel (0) target = $region17
  $region16: #{baseline_model_forward.13} parent=0 // pred_region
    _
  $region17: #{baseline_model_forward.13} parent=0 // pred_fallthru
    _

// kernel: baseline_model_forward.25
$region0: #{baseline_model_forward.25}
  #allocation0 [shape = 'u32[]', space=smem, size = 0x4, offset = 0x4, fixed_abs, tag = 'smem constant byte address 0x4 - core index']
  #allocation1 [shape = 'u32[144,128]{1,0:T(1,128)}', space=vmem, size = 0x12000, scoped, tag = 'internal scratch']
  %s0 = inlined_call_operand.vmem [shape: bf16[16,128], index: 0, kind: input, shape index: {}]
  %s1 = inlined_call_operand.vmem [shape: bf16[128,32], index: 1, kind: input, shape index: {}]
  %s2 = inlined_call_operand.vmem [shape: f32[1,32], index: 2, kind: input, shape index: {}]
  %s3 = inlined_call_operand.vmem [shape: bf16[16,32], index: 3, kind: input, shape index: {}]
  %s4 = inlined_call_operand.vmem [shape: f32[1,32], index: 4, kind: input, shape index: {}]
  %s5 = inlined_call_operand.vmem [shape: f32[1,32], index: 5, kind: input, shape index: {}]
  %s6 = inlined_call_operand.vmem [shape: f32[16,32], index: 6, kind: output, shape index: {}]
  %s7 = sld [smem:[#allocation0]]
  $region34: #{baseline_model_forward.25} parent=0
    _
  %s9 = ssub.s32 1, %s7
  %s10 = scalar_select 0, %s9, %s7
  // Predicated region
  $region2: #{baseline_model_forward.25} parent=0 // pred_check
    _
  $region3: #{baseline_model_forward.25} parent=0 // pred_check_branch
    %12 = sbr.rel (0) target = $region5
  $region4: #{baseline_model_forward.25} parent=0 // pred_region
    _
  $region5: #{baseline_model_forward.25} parent=0 // pred_fallthru
    _
  // Predicated region
  $region6: #{baseline_model_forward.25} parent=0 // pred_check
    _
  $region7: #{baseline_model_forward.25} parent=0 // pred_check_branch
    %14 = sbr.rel (0) target = $region9
  $region8: #{baseline_model_forward.25} parent=0 // pred_region
    _
  $region9: #{baseline_model_forward.25} parent=0 // pred_fallthru
    _
  // Predicated region
  $region10: #{baseline_model_forward.25} parent=0 // pred_check
    _
  $region11: #{baseline_model_forward.25} parent=0 // pred_check_branch
    %16 = sbr.rel (0) target = $region13
  $region12: #{baseline_model_forward.25} parent=0 // pred_region
    _
  $region13: #{baseline_model_forward.25} parent=0 // pred_fallthru
    _
  // Predicated region
  $region14: #{baseline_model_forward.25} parent=0 // pred_check
    _
  $region15: #{baseline_model_forward.25} parent=0 // pred_check_branch
    %18 = sbr.rel (0) target = $region17
  $region16: #{baseline_model_forward.25} parent=0 // pred_region
    _
  $region17: #{baseline_model_forward.25} parent=0 // pred_fallthru
    _
  // Predicated region
  $region18: #{baseline_model_forward.25} parent=0 // pred_check
    _
  $region19: #{baseline_model_forward.25} parent=0 // pred_check_branch
    %20 = sbr.rel (0) target = $region21
  $region20: #{baseline_model_forward.25} parent=0 // pred_region
    _
  $region21: #{baseline_model_forward.25} parent=0 // pred_fallthru
    _
  // Predicated region
  $region22: #{baseline_model_forward.25} parent=0 // pred_check
    _
  $region23: #{baseline_model_forward.25} parent=0 // pred_check_branch
    %22 = sbr.rel (0) target = $region25
  $region24: #{baseline_model_forward.25} parent=0 // pred_region
    _
  $region25: #{baseline_model_forward.25} parent=0 // pred_fallthru
    _
  %v24 = vld [vmem:[%s0] sm:$0xf]
  %v25 = vld [vmem:[%s0 + $0x4] sm:$0xf]
  %v26 = vld [vmem:[%s1] sm:$0xf]
  %v27 = vld [vmem:[%s1 + $0x4] sm:$0xf]
  %v28 = vld [vmem:[%s1 + $0x8] sm:$0xf]
  %v29 = vld [vmem:[%s1 + $0xc] sm:$0xf]
  %v30 = vld [vmem:[%s1 + $0x10] sm:$0xf]
  %v31 = vld [vmem:[%s1 + $0x14] sm:$0xf]
  %v32 = vld [vmem:[%s1 + $0x18] sm:$0xf]
  %v33 = vld [vmem:[%s1 + $0x1c] sm:$0xf]
  %v34 = vld [vmem:[%s1 + $0x20] sm:$0xf]
  %v35 = vld [vmem:[%s1 + $0x24] sm:$0xf]
  %v36 = vld [vmem:[%s1 + $0x28] sm:$0xf]
  %v37 = vld [vmem:[%s1 + $0x2c] sm:$0xf]
  %v38 = vld [vmem:[%s1 + $0x30] sm:$0xf]
  %v39 = vld [vmem:[%s1 + $0x34] sm:$0xf]
  %v40 = vld [vmem:[%s1 + $0x38] sm:$0xf]
  %v41 = vld [vmem:[%s1 + $0x3c] sm:$0xf]
  %v42 = vld [vmem:[%s2] sm:$0x1]
  %v44 = vlaneseq
  %v45 = vshrl.u32 %v44, 7
  %v46 = vsub.s32 0, %v45
  %v47 = vrot.slane %v42, %v46
  %v51 = vunpack.c.l.b16 %v24
  %v52 = vunpack.c.l.b16 %v25
  %v53 = vpack.c.b16 %v52, %v51
  %v71 = vunpack.c.l.b16 %v26
  %v72 = vunpack.c.l.b16 %v27
  %v73 = vunpack.c.l.b16 %v28
  %v74 = vunpack.c.l.b16 %v29
  %v75 = vunpack.c.l.b16 %v30
  %v76 = vunpack.c.l.b16 %v31
  %v77 = vunpack.c.l.b16 %v32
  %v78 = vunpack.c.l.b16 %v33
  %v79 = vunpack.c.l.b16 %v34
  %v80 = vunpack.c.l.b16 %v35
  %v81 = vunpack.c.l.b16 %v36
  %v82 = vunpack.c.l.b16 %v37
  %v83 = vunpack.c.l.b16 %v38
  %v84 = vunpack.c.l.b16 %v39
  %v85 = vunpack.c.l.b16 %v40
  %v86 = vunpack.c.l.b16 %v41
  %v87 = vpack.c.b16 %v72, %v71
  %v88 = vpack.c.b16 %v74, %v73
  %v89 = vpack.c.b16 %v76, %v75
  %v90 = vpack.c.b16 %v78, %v77
  %v91 = vpack.c.b16 %v80, %v79
  %v92 = vpack.c.b16 %v82, %v81
  %v93 = vpack.c.b16 %v84, %v83
  %v94 = vpack.c.b16 %v86, %v85
  %103 = vmatprep.subr.bf16.mxu0 0
  %104 = vmatpush1.bf16.msra.mxu0 %v94
  %105 = vmatprep.subr.bf16.mxu0 0
  %106 = vmatpush1.bf16.msra.mxu0 %v93
  %107 = vmatprep.subr.bf16.mxu0 0
  %108 = vmatpush1.bf16.msra.mxu0 %v92
  %109 = vmatprep.subr.bf16.mxu0 0
  %110 = vmatpush1.bf16.msra.mxu0 %v91
  %111 = vmatprep.subr.bf16.mxu0 0
  %112 = vmatpush1.bf16.msra.mxu0 %v90
  %113 = vmatprep.subr.bf16.mxu0 0
  %114 = vmatpush1.bf16.msra.mxu0 %v89
  %115 = vmatprep.subr.bf16.mxu0 0
  %116 = vmatpush1.bf16.msra.mxu0 %v88
  %117 = vmatprep.subr.bf16.mxu0 0
  %118 = vmatpush1.bf16.msra.mxu0 %v87
  %119 = vmatprep.subr.bf16.mxu0 0
  %120 = vmatpush2.bf16.msra.mxu0 0
  %121 = vmatprep.subr.bf16.mxu0 0
  %122 = vmatpush2.bf16.msra.mxu0 0
  %123 = vmatprep.subr.bf16.mxu0 0
  %124 = vmatpush2.bf16.msra.mxu0 0
  %125 = vmatprep.subr.bf16.mxu0 0
  %126 = vmatpush2.bf16.msra.mxu0 0
  %127 = vmatprep.subr.bf16.mxu0 0
  %128 = vmatpush2.bf16.msra.mxu0 0
  %129 = vmatprep.subr.bf16.mxu0 0
  %130 = vmatpush2.bf16.msra.mxu0 0
  %131 = vmatprep.subr.bf16.mxu0 0
  %132 = vmatpush2.bf16.msra.mxu0 0
  %133 = vmatprep.subr.bf16.mxu0 0
  %134 = vmatpush2.bf16.msra.mxu0 0
  %135 = vmatprep.mubr.bf16.mxu0 0
  %136 = vmatmul.mubr.bf16.gmra.mxu0 %v53
  %v137 = vpop.f32.mrf.mxu0
  %v138 = vadd.f32 %v47, %v137
  %v139 = vpop.f32.mrf.mxu0
  %v140 = vpop.f32.mrf.mxu0
  %v141 = vadd.f32 %v47, %v140
  %v142 = vpop.f32.mrf.mxu0
  %143 = vdwg.mxu0
  %v144 = vld [vmem:[%s3] sm:$0xf]
  %v145 = vld [vmem:[%s3 + $0x4] sm:$0xf]
  %v146 = vunpack.c.l.bf16 %v144
  %v147 = vunpack.c.l.bf16 %v145
  %v148 = vadd.f32 %v138, %v146
  %v149 = vadd.f32 %v141, %v147
  %vm150 = vcmask 261120
  %v151 = vsel %vm150, %v148, 0.0
  %152 = vadd.xlane.f32.xlu0 %v151
  %v153 = vpop.xlane.xlu0 %152
  %v154 = vsel %vm150, %v149, 0.0
  %155 = vadd.xlane.f32.xlu0 %v154
  %v156 = vpop.xlane.xlu0 %155
  %v157 = vrcp.pop 32.0
  %v158 = vmul.f32 %v153, %v157
  %v159 = vmul.f32 %v156, %v157
  %v160 = vsub.f32 %v148, %v158
  %v161 = vsub.f32 %v149, %v159
  %v162 = vmul.f32 %v160, %v160
  %v163 = vmul.f32 %v161, %v161
  %v164 = vsel %vm150, %v162, 0.0
  %165 = vadd.xlane.f32.xlu0 %v164
  %v166 = vpop.xlane.xlu0 %165
  %v167 = vsel %vm150, %v163, 0.0
  %168 = vadd.xlane.f32.xlu0 %v167
  %v169 = vpop.xlane.xlu0 %168
  %v170 = vmul.f32 %v166, %v157
  %v171 = vmul.f32 %v169, %v157
  %v172 = vadd.f32 %v170, 1e-05
  %v173 = vadd.f32 %v171, 1e-05
  %v174 = vrsqrt.pop %v172
  %v175 = vrsqrt.pop %v173
  %v176 = vmul.f32 %v160, %v174
  %v177 = vmul.f32 %v161, %v175
  %v178 = vld [vmem:[%s4] sm:$0x1]
  %v180 = vlaneseq
  %v181 = vshrl.u32 %v180, 7
  %v182 = vsub.s32 0, %v181
  %v183 = vrot.slane %v178, %v182
  %v185 = vmul.f32 %v176, %v183
  %v186 = vmul.f32 %v177, %v183
  %v187 = vld [vmem:[%s5] sm:$0x1]
  %v189 = vlaneseq
  %v190 = vshrl.u32 %v189, 7
  %v191 = vsub.s32 0, %v190
  %v192 = vrot.slane %v187, %v191
  %v194 = vadd.f32 %v185, %v192
  %v195 = vadd.f32 %v186, %v192
  %196 = vst.msk [vmem:[%s6] sm:$0xff] %vm150, %v194
  %197 = vst.msk [vmem:[%s6 + $0x8] sm:$0xff] %vm150, %v195
  // Predicated region
  $region26: #{baseline_model_forward.25} parent=0 // pred_check
    _
  $region27: #{baseline_model_forward.25} parent=0 // pred_check_branch
    %199 = sbr.rel (0) target = $region29
  $region28: #{baseline_model_forward.25} parent=0 // pred_region
    _
  $region29: #{baseline_model_forward.25} parent=0 // pred_fallthru
    _
  // Predicated region
  $region30: #{baseline_model_forward.25} parent=0 // pred_check
    _
  $region31: #{baseline_model_forward.25} parent=0 // pred_check_branch
    %201 = sbr.rel (0) target = $region33
  $region32: #{baseline_model_forward.25} parent=0 // pred_region
    _
  $region33: #{baseline_model_forward.25} parent=0 // pred_fallthru
    _

// kernel: baseline_model_forward.14
$region0: #{baseline_model_forward.14}
  #allocation0 [shape = 'u32[]', space=smem, size = 0x4, offset = 0x4, fixed_abs, tag = 'smem constant byte address 0x4 - core index']
  #allocation1 [shape = 'u32[144,128]{1,0:T(1,128)}', space=vmem, size = 0x12000, scoped, tag = 'internal scratch']
  #allocation2 [shape = 'f32[128,128]{1,0:T(8,128)}', space=vmem, size = 0x10000, scoped, tag = 'scratch operand']
  %s0 = inlined_call_operand.vmem [shape: bf16[128,128], index: 0, kind: input, shape index: {}]
  %s1 = inlined_call_operand.vmem [shape: bf16[128,128], index: 1, kind: input, shape index: {}]
  %s2 = inlined_call_operand.vmem [shape: f32[1,128], index: 2, kind: input, shape index: {}]
  %s3 = inlined_call_operand.vmem [shape: bf16[128,128], index: 3, kind: output, shape index: {}]
  %s4 = sld [smem:[#allocation0]]
  $region30: #{baseline_model_forward.14} parent=0
    _
  %s6 = ssub.s32 1, %s4
  %s7 = scalar_select 0, %s6, %s4
  // Predicated region
  $region2: #{baseline_model_forward.14} parent=0 // pred_check
    _
  $region3: #{baseline_model_forward.14} parent=0 // pred_check_branch
    %9 = sbr.rel (0) target = $region5
  $region4: #{baseline_model_forward.14} parent=0 // pred_region
    _
  $region5: #{baseline_model_forward.14} parent=0 // pred_fallthru
    _
  // Predicated region
  $region6: #{baseline_model_forward.14} parent=0 // pred_check
    _
  $region7: #{baseline_model_forward.14} parent=0 // pred_check_branch
    %11 = sbr.rel (0) target = $region9
  $region8: #{baseline_model_forward.14} parent=0 // pred_region
    _
  $region9: #{baseline_model_forward.14} parent=0 // pred_fallthru
    _
  // Predicated region
  $region10: #{baseline_model_forward.14} parent=0 // pred_check
    _
  $region11: #{baseline_model_forward.14} parent=0 // pred_check_branch
    %13 = sbr.rel (0) target = $region13
  $region12: #{baseline_model_forward.14} parent=0 // pred_region
    _
  $region13: #{baseline_model_forward.14} parent=0 // pred_fallthru
    _
  %p15 = scmp.eq.s32.totalorder 0, 0
  // Predicated region
  $region14: #{baseline_model_forward.14} parent=0 // pred_check
    %p16 = pneg %p15
  $region15: #{baseline_model_forward.14} parent=0 // pred_check_branch
    %18 = sbr.rel (%p16) target = $region17
  $region16: #{baseline_model_forward.14} parent=0 // pred_region
    %19 = vst [vmem:[#allocation2] sm:$0xff] 0.0
    %20 = vst [vmem:[#allocation2 + $0x8] sm:$0xff] 0.0
    %21 = vst [vmem:[#allocation2 + $0x10] sm:$0xff] 0.0
    %22 = vst [vmem:[#allocation2 + $0x18] sm:$0xff] 0.0
    %23 = vst [vmem:[#allocation2 + $0x20] sm:$0xff] 0.0
    %24 = vst [vmem:[#allocation2 + $0x28] sm:$0xff] 0.0
    %25 = vst [vmem:[#allocation2 + $0x30] sm:$0xff] 0.0
    %26 = vst [vmem:[#allocation2 + $0x38] sm:$0xff] 0.0
    %27 = vst [vmem:[#allocation2 + $0x40] sm:$0xff] 0.0
    %28 = vst [vmem:[#allocation2 + $0x48] sm:$0xff] 0.0
    %29 = vst [vmem:[#allocation2 + $0x50] sm:$0xff] 0.0
    %30 = vst [vmem:[#allocation2 + $0x58] sm:$0xff] 0.0
    %31 = vst [vmem:[#allocation2 + $0x60] sm:$0xff] 0.0
    %32 = vst [vmem:[#allocation2 + $0x68] sm:$0xff] 0.0
    %33 = vst [vmem:[#allocation2 + $0x70] sm:$0xff] 0.0
    %34 = vst [vmem:[#allocation2 + $0x78] sm:$0xff] 0.0
  $region17: #{baseline_model_forward.14} parent=0 // pred_fallthru
    _
  %s35 = smul.u32 0, 128
  %v36 = vld [vmem:[#allocation2] sm:$0xff]
  %v37 = vld [vmem:[#allocation2 + $0x8] sm:$0xff]
  %v38 = vld [vmem:[#allocation2 + $0x10] sm:$0xff]
  %v39 = vld [vmem:[#allocation2 + $0x18] sm:$0xff]
  %v40 = vld [vmem:[#allocation2 + $0x20] sm:$0xff]
  %v41 = vld [vmem:[#allocation2 + $0x28] sm:$0xff]
  %v42 = vld [vmem:[#allocation2 + $0x30] sm:$0xff]
  %v43 = vld [vmem:[#allocation2 + $0x38] sm:$0xff]
  %v44 = vld [vmem:[#allocation2 + $0x40] sm:$0xff]
  %v45 = vld [vmem:[#allocation2 + $0x48] sm:$0xff]
  %v46 = vld [vmem:[#allocation2 + $0x50] sm:$0xff]
  %v47 = vld [vmem:[#allocation2 + $0x58] sm:$0xff]
  %v48 = vld [vmem:[#allocation2 + $0x60] sm:$0xff]
  %v49 = vld [vmem:[#allocation2 + $0x68] sm:$0xff]
  %v50 = vld [vmem:[#allocation2 + $0x70] sm:$0xff]
  %v51 = vld [vmem:[#allocation2 + $0x78] sm:$0xff]
  %v52 = vld [vmem:[%s0] sm:$0xf]
  %v53 = vld [vmem:[%s0 + $0x4] sm:$0xf]
  %v54 = vld [vmem:[%s0 + $0x8] sm:$0xf]
  %v55 = vld [vmem:[%s0 + $0xc] sm:$0xf]
  %v56 = vld [vmem:[%s0 + $0x10] sm:$0xf]
  %v57 = vld [vmem:[%s0 + $0x14] sm:$0xf]
  %v58 = vld [vmem:[%s0 + $0x18] sm:$0xf]
  %v59 = vld [vmem:[%s0 + $0x1c] sm:$0xf]
  %v60 = vld [vmem:[%s0 + $0x20] sm:$0xf]
  %v61 = vld [vmem:[%s0 + $0x24] sm:$0xf]
  %v62 = vld [vmem:[%s0 + $0x28] sm:$0xf]
  %v63 = vld [vmem:[%s0 + $0x2c] sm:$0xf]
  %v64 = vld [vmem:[%s0 + $0x30] sm:$0xf]
  %v65 = vld [vmem:[%s0 + $0x34] sm:$0xf]
  %v66 = vld [vmem:[%s0 + $0x38] sm:$0xf]
  %v67 = vld [vmem:[%s0 + $0x3c] sm:$0xf]
  %s68 = sshra.s32 %s35, 3
  %s69 = sand.u32 %s35, 7
  %s70 = smul.addr %s68, 4
  %s71 = scalar_lea.vmem %s1, %s70
  %v72 = vld [vmem:[%s71] sm:$0xf]
  %v73 = vld [vmem:[%s71 + $0x4] sm:$0xf]
  %v74 = vld [vmem:[%s71 + $0x8] sm:$0xf]
  %v75 = vld [vmem:[%s71 + $0xc] sm:$0xf]
  %v76 = vld [vmem:[%s71 + $0x10] sm:$0xf]
  %v77 = vld [vmem:[%s71 + $0x14] sm:$0xf]
  %v78 = vld [vmem:[%s71 + $0x18] sm:$0xf]
  %v79 = vld [vmem:[%s71 + $0x1c] sm:$0xf]
  %v80 = vld [vmem:[%s71 + $0x20] sm:$0xf]
  %v81 = vld [vmem:[%s71 + $0x24] sm:$0xf]
  %v82 = vld [vmem:[%s71 + $0x28] sm:$0xf]
  %v83 = vld [vmem:[%s71 + $0x2c] sm:$0xf]
  %v84 = vld [vmem:[%s71 + $0x30] sm:$0xf]
  %v85 = vld [vmem:[%s71 + $0x34] sm:$0xf]
  %v86 = vld [vmem:[%s71 + $0x38] sm:$0xf]
  %v87 = vld [vmem:[%s71 + $0x3c] sm:$0xf]
  %v104 = vunpack.c.l.b16 %v52
  %v105 = vunpack.c.l.b16 %v53
  %v106 = vunpack.c.l.b16 %v54
  %v107 = vunpack.c.l.b16 %v55
  %v108 = vunpack.c.l.b16 %v56
  %v109 = vunpack.c.l.b16 %v57
  %v110 = vunpack.c.l.b16 %v58
  %v111 = vunpack.c.l.b16 %v59
  %v112 = vunpack.c.l.b16 %v60
  %v113 = vunpack.c.l.b16 %v61
  %v114 = vunpack.c.l.b16 %v62
  %v115 = vunpack.c.l.b16 %v63
  %v116 = vunpack.c.l.b16 %v64
  %v117 = vunpack.c.l.b16 %v65
  %v118 = vunpack.c.l.b16 %v66
  %v119 = vunpack.c.l.b16 %v67
  %v120 = vpack.c.b16 %v105, %v104
  %v121 = vpack.c.b16 %v107, %v106
  %v122 = vpack.c.b16 %v109, %v108
  %v123 = vpack.c.b16 %v111, %v110
  %v124 = vpack.c.b16 %v113, %v112
  %v125 = vpack.c.b16 %v115, %v114
  %v126 = vpack.c.b16 %v117, %v116
  %v127 = vpack.c.b16 %v119, %v118
  %v152 = vunpack.c.l.b16 %v72
  %v153 = vunpack.c.l.b16 %v73
  %v154 = vunpack.c.l.b16 %v74
  %v155 = vunpack.c.l.b16 %v75
  %v156 = vunpack.c.l.b16 %v76
  %v157 = vunpack.c.l.b16 %v77
  %v158 = vunpack.c.l.b16 %v78
  %v159 = vunpack.c.l.b16 %v79
  %v160 = vunpack.c.l.b16 %v80
  %v161 = vunpack.c.l.b16 %v81
  %v162 = vunpack.c.l.b16 %v82
  %v163 = vunpack.c.l.b16 %v83
  %v164 = vunpack.c.l.b16 %v84
  %v165 = vunpack.c.l.b16 %v85
  %v166 = vunpack.c.l.b16 %v86
  %v167 = vunpack.c.l.b16 %v87
  %v168 = vpack.c.b16 %v153, %v152
  %v169 = vpack.c.b16 %v155, %v154
  %v170 = vpack.c.b16 %v157, %v156
  %v171 = vpack.c.b16 %v159, %v158
  %v172 = vpack.c.b16 %v161, %v160
  %v173 = vpack.c.b16 %v163, %v162
  %v174 = vpack.c.b16 %v165, %v164
  %v175 = vpack.c.b16 %v167, %v166
  %184 = vmatprep.subr.bf16.mxu0 0
  %185 = vmatpush1.bf16.msra.mxu0 %v175
  %186 = vmatprep.subr.bf16.mxu0 0
  %187 = vmatpush1.bf16.msra.mxu0 %v174
  %188 = vmatprep.subr.bf16.mxu0 0
  %189 = vmatpush1.bf16.msra.mxu0 %v173
  %190 = vmatprep.subr.bf16.mxu0 0
  %191 = vmatpush1.bf16.msra.mxu0 %v172
  %192 = vmatprep.subr.bf16.mxu0 0
  %193 = vmatpush1.bf16.msra.mxu0 %v171
  %194 = vmatprep.subr.bf16.mxu0 0
  %195 = vmatpush1.bf16.msra.mxu0 %v170
  %196 = vmatprep.subr.bf16.mxu0 0
  %197 = vmatpush1.bf16.msra.mxu0 %v169
  %198 = vmatprep.subr.bf16.mxu0 0
  %199 = vmatpush1.bf16.msra.mxu0 %v168
  %200 = vmatprep.subr.bf16.mxu0 0
  %201 = vmatpush2.bf16.msra.mxu0 0
  %202 = vmatprep.subr.bf16.mxu0 0
  %203 = vmatpush2.bf16.msra.mxu0 0
  %204 = vmatprep.subr.bf16.mxu0 0
  %205 = vmatpush2.bf16.msra.mxu0 0
  %206 = vmatprep.subr.bf16.mxu0 0
  %207 = vmatpush2.bf16.msra.mxu0 0
  %208 = vmatprep.subr.bf16.mxu0 0
  %209 = vmatpush2.bf16.msra.mxu0 0
  %210 = vmatprep.subr.bf16.mxu0 0
  %211 = vmatpush2.bf16.msra.mxu0 0
  %212 = vmatprep.subr.bf16.mxu0 0
  %213 = vmatpush2.bf16.msra.mxu0 0
  %214 = vmatprep.subr.bf16.mxu0 0
  %215 = vmatpush2.bf16.msra.mxu0 0
  %216 = vmatprep.mubr.bf16.mxu0 0
  %217 = vmatmul.mubr.bf16.gmra.mxu0 %v120
  %v218 = vpop.f32.mrf.mxu0
  %v219 = vadd.f32 0.0, %v218
  %v220 = vpop.f32.mrf.mxu0
  %v221 = vpop.f32.mrf.mxu0
  %v222 = vadd.f32 0.0, %v221
  %v223 = vpop.f32.mrf.mxu0
  %224 = vmatprep.mubr.bf16.mxu0 0
  %225 = vmatmul.mubr.bf16.gmra.mxu0 %v121
  %v226 = vpop.f32.mrf.mxu0
  %v227 = vadd.f32 0.0, %v226
  %v228 = vpop.f32.mrf.mxu0
  %v229 = vpop.f32.mrf.mxu0
  %v230 = vadd.f32 0.0, %v229
  %v231 = vpop.f32.mrf.mxu0
  %232 = vmatprep.mubr.bf16.mxu0 0
  %233 = vmatmul.mubr.bf16.gmra.mxu0 %v122
  %v234 = vpop.f32.mrf.mxu0
  %v235 = vadd.f32 0.0, %v234
  %v236 = vpop.f32.mrf.mxu0
  %v237 = vpop.f32.mrf.mxu0
  %v238 = vadd.f32 0.0, %v237
  %v239 = vpop.f32.mrf.mxu0
  %240 = vmatprep.mubr.bf16.mxu0 0
  %241 = vmatmul.mubr.bf16.gmra.mxu0 %v123
  %v242 = vpop.f32.mrf.mxu0
  %v243 = vadd.f32 0.0, %v242
  %v244 = vpop.f32.mrf.mxu0
  %v245 = vpop.f32.mrf.mxu0
  %v246 = vadd.f32 0.0, %v245
  %v247 = vpop.f32.mrf.mxu0
  %248 = vmatprep.mubr.bf16.mxu0 0
  %249 = vmatmul.mubr.bf16.gmra.mxu0 %v124
  %v250 = vpop.f32.mrf.mxu0
  %v251 = vadd.f32 0.0, %v250
  %v252 = vpop.f32.mrf.mxu0
  %v253 = vpop.f32.mrf.mxu0
  %v254 = vadd.f32 0.0, %v253
  %v255 = vpop.f32.mrf.mxu0
  %256 = vmatprep.mubr.bf16.mxu0 0
  %257 = vmatmul.mubr.bf16.gmra.mxu0 %v125
  %v258 = vpop.f32.mrf.mxu0
  %v259 = vadd.f32 0.0, %v258
  %v260 = vpop.f32.mrf.mxu0
  %v261 = vpop.f32.mrf.mxu0
  %v262 = vadd.f32 0.0, %v261
  %v263 = vpop.f32.mrf.mxu0
  %264 = vmatprep.mubr.bf16.mxu0 0
  %265 = vmatmul.mubr.bf16.gmra.mxu0 %v126
  %v266 = vpop.f32.mrf.mxu0
  %v267 = vadd.f32 0.0, %v266
  %v268 = vpop.f32.mrf.mxu0
  %v269 = vpop.f32.mrf.mxu0
  %v270 = vadd.f32 0.0, %v269
  %v271 = vpop.f32.mrf.mxu0
  %272 = vmatprep.mubr.bf16.mxu0 0
  %273 = vmatmul.mubr.bf16.gmra.mxu0 %v127
  %v274 = vpop.f32.mrf.mxu0
  %v275 = vadd.f32 0.0, %v274
  %v276 = vpop.f32.mrf.mxu0
  %v277 = vpop.f32.mrf.mxu0
  %v278 = vadd.f32 0.0, %v277
  %v279 = vpop.f32.mrf.mxu0
  %280 = vdwg.mxu0
  %v281 = vadd.f32 %v36, %v219
  %v282 = vadd.f32 %v37, %v222
  %v283 = vadd.f32 %v38, %v227
  %v284 = vadd.f32 %v39, %v230
  %v285 = vadd.f32 %v40, %v235
  %v286 = vadd.f32 %v41, %v238
  %v287 = vadd.f32 %v42, %v243
  %v288 = vadd.f32 %v43, %v246
  %v289 = vadd.f32 %v44, %v251
  %v290 = vadd.f32 %v45, %v254
  %v291 = vadd.f32 %v46, %v259
  %v292 = vadd.f32 %v47, %v262
  %v293 = vadd.f32 %v48, %v267
  %v294 = vadd.f32 %v49, %v270
  %v295 = vadd.f32 %v50, %v275
  %v296 = vadd.f32 %v51, %v278
  %297 = vst [vmem:[#allocation2] sm:$0xff] %v281
  %298 = vst [vmem:[#allocation2 + $0x8] sm:$0xff] %v282
  %299 = vst [vmem:[#allocation2 + $0x10] sm:$0xff] %v283
  %300 = vst [vmem:[#allocation2 + $0x18] sm:$0xff] %v284
  %301 = vst [vmem:[#allocation2 + $0x20] sm:$0xff] %v285
  %302 = vst [vmem:[#allocation2 + $0x28] sm:$0xff] %v286
  %303 = vst [vmem:[#allocation2 + $0x30] sm:$0xff] %v287
  %304 = vst [vmem:[#allocation2 + $0x38] sm:$0xff] %v288
  %305 = vst [vmem:[#allocation2 + $0x40] sm:$0xff] %v289
  %306 = vst [vmem:[#allocation2 + $0x48] sm:$0xff] %v290
  %307 = vst [vmem:[#allocation2 + $0x50] sm:$0xff] %v291
  %308 = vst [vmem:[#allocation2 + $0x58] sm:$0xff] %v292
  %309 = vst [vmem:[#allocation2 + $0x60] sm:$0xff] %v293
  %310 = vst [vmem:[#allocation2 + $0x68] sm:$0xff] %v294
  %311 = vst [vmem:[#allocation2 + $0x70] sm:$0xff] %v295
  %312 = vst [vmem:[#allocation2 + $0x78] sm:$0xff] %v296
  // Predicated region
  $region18: #{baseline_model_forward.14} parent=0 // pred_check
    %p313 = pneg %p15
  $region19: #{baseline_model_forward.14} parent=0 // pred_check_branch
    %315 = sbr.rel (%p313) target = $region21
  $region20: #{baseline_model_forward.14} parent=0 // pred_region
    %v316 = vld [vmem:[#allocation2] sm:$0xff]
    %v317 = vld [vmem:[#allocation2 + $0x8] sm:$0xff]
    %v318 = vld [vmem:[#allocation2 + $0x10] sm:$0xff]
    %v319 = vld [vmem:[#allocation2 + $0x18] sm:$0xff]
    %v320 = vld [vmem:[#allocation2 + $0x20] sm:$0xff]
    %v321 = vld [vmem:[#allocation2 + $0x28] sm:$0xff]
    %v322 = vld [vmem:[#allocation2 + $0x30] sm:$0xff]
    %v323 = vld [vmem:[#allocation2 + $0x38] sm:$0xff]
    %v324 = vld [vmem:[#allocation2 + $0x40] sm:$0xff]
    %v325 = vld [vmem:[#allocation2 + $0x48] sm:$0xff]
    %v326 = vld [vmem:[#allocation2 + $0x50] sm:$0xff]
    %v327 = vld [vmem:[#allocation2 + $0x58] sm:$0xff]
    %v328 = vld [vmem:[#allocation2 + $0x60] sm:$0xff]
    %v329 = vld [vmem:[#allocation2 + $0x68] sm:$0xff]
    %v330 = vld [vmem:[#allocation2 + $0x70] sm:$0xff]
    %v331 = vld [vmem:[#allocation2 + $0x78] sm:$0xff]
    %v332 = vld [vmem:[%s2] sm:$0x1]
    %v334 = vlaneseq
    %v335 = vshrl.u32 %v334, 7
    %v336 = vsub.s32 0, %v335
    %v337 = vrot.slane %v332, %v336
    %v339 = vadd.f32 %v316, %v337
    %v340 = vadd.f32 %v317, %v337
    %v341 = vadd.f32 %v318, %v337
    %v342 = vadd.f32 %v319, %v337
    %v343 = vadd.f32 %v320, %v337
    %v344 = vadd.f32 %v321, %v337
    %v345 = vadd.f32 %v322, %v337
    %v346 = vadd.f32 %v323, %v337
    %v347 = vadd.f32 %v324, %v337
    %v348 = vadd.f32 %v325, %v337
    %v349 = vadd.f32 %v326, %v337
    %v350 = vadd.f32 %v327, %v337
    %v351 = vadd.f32 %v328, %v337
    %v352 = vadd.f32 %v329, %v337
    %v353 = vadd.f32 %v330, %v337
    %v354 = vadd.f32 %v331, %v337
    %v355 = vmax.f32 %v339, 0.0
    %v356 = vmax.f32 %v340, 0.0
    %v357 = vmax.f32 %v341, 0.0
    %v358 = vmax.f32 %v342, 0.0
    %v359 = vmax.f32 %v343, 0.0
    %v360 = vmax.f32 %v344, 0.0
    %v361 = vmax.f32 %v345, 0.0
    %v362 = vmax.f32 %v346, 0.0
    %v363 = vmax.f32 %v347, 0.0
    %v364 = vmax.f32 %v348, 0.0
    %v365 = vmax.f32 %v349, 0.0
    %v366 = vmax.f32 %v350, 0.0
    %v367 = vmax.f32 %v351, 0.0
    %v368 = vmax.f32 %v352, 0.0
    %v369 = vmax.f32 %v353, 0.0
    %v370 = vmax.f32 %v354, 0.0
    %v371 = vpack.c.bf16 %v356, %v355
    %v372 = vpack.c.bf16 %v358, %v357
    %v373 = vpack.c.bf16 %v360, %v359
    %v374 = vpack.c.bf16 %v362, %v361
    %v375 = vpack.c.bf16 %v364, %v363
    %v376 = vpack.c.bf16 %v366, %v365
    %v377 = vpack.c.bf16 %v368, %v367
    %v378 = vpack.c.bf16 %v370, %v369
    %v387 = vunpack.c.l.b16 %v371
    %v388 = vunpack.c.h.b16 %v371
    %v389 = vunpack.c.l.b16 %v372
    %v390 = vunpack.c.h.b16 %v372
    %v391 = vunpack.c.l.b16 %v373
    %v392 = vunpack.c.h.b16 %v373
    %v393 = vunpack.c.l.b16 %v374
    %v394 = vunpack.c.h.b16 %v374
    %v395 = vunpack.c.l.b16 %v375
    %v396 = vunpack.c.h.b16 %v375
    %v397 = vunpack.c.l.b16 %v376
    %v398 = vunpack.c.h.b16 %v376
    %v399 = vunpack.c.l.b16 %v377
    %v400 = vunpack.c.h.b16 %v377
    %v401 = vunpack.c.l.b16 %v378
    %v402 = vunpack.c.h.b16 %v378
    %v403 = vpack.c.b16 %v387, %v387
    %v404 = vpack.c.b16 %v388, %v388
    %v405 = vpack.c.b16 %v389, %v389
    %v406 = vpack.c.b16 %v390, %v390
    %v407 = vpack.c.b16 %v391, %v391
    %v408 = vpack.c.b16 %v392, %v392
    %v409 = vpack.c.b16 %v393, %v393
    %v410 = vpack.c.b16 %v394, %v394
    %v411 = vpack.c.b16 %v395, %v395
    %v412 = vpack.c.b16 %v396, %v396
    %v413 = vpack.c.b16 %v397, %v397
    %v414 = vpack.c.b16 %v398, %v398
    %v415 = vpack.c.b16 %v399, %v399
    %v416 = vpack.c.b16 %v400, %v400
    %v417 = vpack.c.b16 %v401, %v401
    %v418 = vpack.c.b16 %v402, %v402
    %435 = vst [vmem:[%s3] sm:$0xf] %v403
    %436 = vst [vmem:[%s3 + $0x4] sm:$0xf] %v404
    %437 = vst [vmem:[%s3 + $0x8] sm:$0xf] %v405
    %438 = vst [vmem:[%s3 + $0xc] sm:$0xf] %v406
    %439 = vst [vmem:[%s3 + $0x10] sm:$0xf] %v407
    %440 = vst [vmem:[%s3 + $0x14] sm:$0xf] %v408
    %441 = vst [vmem:[%s3 + $0x18] sm:$0xf] %v409
    %442 = vst [vmem:[%s3 + $0x1c] sm:$0xf] %v410
    %443 = vst [vmem:[%s3 + $0x20] sm:$0xf] %v411
    %444 = vst [vmem:[%s3 + $0x24] sm:$0xf] %v412
    %445 = vst [vmem:[%s3 + $0x28] sm:$0xf] %v413
    %446 = vst [vmem:[%s3 + $0x2c] sm:$0xf] %v414
    %447 = vst [vmem:[%s3 + $0x30] sm:$0xf] %v415
    %448 = vst [vmem:[%s3 + $0x34] sm:$0xf] %v416
    %449 = vst [vmem:[%s3 + $0x38] sm:$0xf] %v417
    %450 = vst [vmem:[%s3 + $0x3c] sm:$0xf] %v418
  $region21: #{baseline_model_forward.14} parent=0 // pred_fallthru
    _
  // Predicated region
  $region22: #{baseline_model_forward.14} parent=0 // pred_check
    _
  $region23: #{baseline_model_forward.14} parent=0 // pred_check_branch
    %452 = sbr.rel (0) target = $region25
  $region24: #{baseline_model_forward.14} parent=0 // pred_region
    _
  $region25: #{baseline_model_forward.14} parent=0 // pred_fallthru
    _
  // Predicated region
  $region26: #{baseline_model_forward.14} parent=0 // pred_check
    _
  $region27: #{baseline_model_forward.14} parent=0 // pred_check_branch
    %454 = sbr.rel (0) target = $region29
  $region28: #{baseline_model_forward.14} parent=0 // pred_region
    _
  $region29: #{baseline_model_forward.14} parent=0 // pred_fallthru
    _

// kernel: baseline_model_forward.18
$region0: #{baseline_model_forward.18}
  #allocation0 [shape = 'u32[]', space=smem, size = 0x4, offset = 0x4, fixed_abs, tag = 'smem constant byte address 0x4 - core index']
  #allocation1 [shape = 'u32[144,128]{1,0:T(1,128)}', space=vmem, size = 0x12000, scoped, tag = 'internal scratch']
  #allocation2 [shape = 'f32[128,128]{1,0:T(8,128)}', space=vmem, size = 0x10000, scoped, tag = 'scratch operand']
  %s0 = inlined_call_operand.vmem [shape: bf16[128,128], index: 0, kind: input, shape index: {}]
  %s1 = inlined_call_operand.vmem [shape: bf16[128,128], index: 1, kind: input, shape index: {}]
  %s2 = inlined_call_operand.vmem [shape: f32[1,128], index: 2, kind: input, shape index: {}]
  %s3 = inlined_call_operand.vmem [shape: bf16[128,128], index: 3, kind: output, shape index: {}]
  %s4 = sld [smem:[#allocation0]]
  $region30: #{baseline_model_forward.18} parent=0
    _
  %s6 = ssub.s32 1, %s4
  %s7 = scalar_select 0, %s6, %s4
  // Predicated region
  $region2: #{baseline_model_forward.18} parent=0 // pred_check
    _
  $region3: #{baseline_model_forward.18} parent=0 // pred_check_branch
    %9 = sbr.rel (0) target = $region5
  $region4: #{baseline_model_forward.18} parent=0 // pred_region
    _
  $region5: #{baseline_model_forward.18} parent=0 // pred_fallthru
    _
  // Predicated region
  $region6: #{baseline_model_forward.18} parent=0 // pred_check
    _
  $region7: #{baseline_model_forward.18} parent=0 // pred_check_branch
    %11 = sbr.rel (0) target = $region9
  $region8: #{baseline_model_forward.18} parent=0 // pred_region
    _
  $region9: #{baseline_model_forward.18} parent=0 // pred_fallthru
    _
  // Predicated region
  $region10: #{baseline_model_forward.18} parent=0 // pred_check
    _
  $region11: #{baseline_model_forward.18} parent=0 // pred_check_branch
    %13 = sbr.rel (0) target = $region13
  $region12: #{baseline_model_forward.18} parent=0 // pred_region
    _
  $region13: #{baseline_model_forward.18} parent=0 // pred_fallthru
    _
  %p15 = scmp.eq.s32.totalorder 0, 0
  // Predicated region
  $region14: #{baseline_model_forward.18} parent=0 // pred_check
    %p16 = pneg %p15
  $region15: #{baseline_model_forward.18} parent=0 // pred_check_branch
    %18 = sbr.rel (%p16) target = $region17
  $region16: #{baseline_model_forward.18} parent=0 // pred_region
    %19 = vst [vmem:[#allocation2] sm:$0xff] 0.0
    %20 = vst [vmem:[#allocation2 + $0x8] sm:$0xff] 0.0
    %21 = vst [vmem:[#allocation2 + $0x10] sm:$0xff] 0.0
    %22 = vst [vmem:[#allocation2 + $0x18] sm:$0xff] 0.0
    %23 = vst [vmem:[#allocation2 + $0x20] sm:$0xff] 0.0
    %24 = vst [vmem:[#allocation2 + $0x28] sm:$0xff] 0.0
    %25 = vst [vmem:[#allocation2 + $0x30] sm:$0xff] 0.0
    %26 = vst [vmem:[#allocation2 + $0x38] sm:$0xff] 0.0
    %27 = vst [vmem:[#allocation2 + $0x40] sm:$0xff] 0.0
    %28 = vst [vmem:[#allocation2 + $0x48] sm:$0xff] 0.0
    %29 = vst [vmem:[#allocation2 + $0x50] sm:$0xff] 0.0
    %30 = vst [vmem:[#allocation2 + $0x58] sm:$0xff] 0.0
    %31 = vst [vmem:[#allocation2 + $0x60] sm:$0xff] 0.0
    %32 = vst [vmem:[#allocation2 + $0x68] sm:$0xff] 0.0
    %33 = vst [vmem:[#allocation2 + $0x70] sm:$0xff] 0.0
    %34 = vst [vmem:[#allocation2 + $0x78] sm:$0xff] 0.0
  $region17: #{baseline_model_forward.18} parent=0 // pred_fallthru
    _
  %s35 = smul.u32 0, 128
  %v36 = vld [vmem:[#allocation2] sm:$0xff]
  %v37 = vld [vmem:[#allocation2 + $0x8] sm:$0xff]
  %v38 = vld [vmem:[#allocation2 + $0x10] sm:$0xff]
  %v39 = vld [vmem:[#allocation2 + $0x18] sm:$0xff]
  %v40 = vld [vmem:[#allocation2 + $0x20] sm:$0xff]
  %v41 = vld [vmem:[#allocation2 + $0x28] sm:$0xff]
  %v42 = vld [vmem:[#allocation2 + $0x30] sm:$0xff]
  %v43 = vld [vmem:[#allocation2 + $0x38] sm:$0xff]
  %v44 = vld [vmem:[#allocation2 + $0x40] sm:$0xff]
  %v45 = vld [vmem:[#allocation2 + $0x48] sm:$0xff]
  %v46 = vld [vmem:[#allocation2 + $0x50] sm:$0xff]
  %v47 = vld [vmem:[#allocation2 + $0x58] sm:$0xff]
  %v48 = vld [vmem:[#allocation2 + $0x60] sm:$0xff]
  %v49 = vld [vmem:[#allocation2 + $0x68] sm:$0xff]
  %v50 = vld [vmem:[#allocation2 + $0x70] sm:$0xff]
  %v51 = vld [vmem:[#allocation2 + $0x78] sm:$0xff]
  %v52 = vld [vmem:[%s0] sm:$0xf]
  %v53 = vld [vmem:[%s0 + $0x4] sm:$0xf]
  %v54 = vld [vmem:[%s0 + $0x8] sm:$0xf]
  %v55 = vld [vmem:[%s0 + $0xc] sm:$0xf]
  %v56 = vld [vmem:[%s0 + $0x10] sm:$0xf]
  %v57 = vld [vmem:[%s0 + $0x14] sm:$0xf]
  %v58 = vld [vmem:[%s0 + $0x18] sm:$0xf]
  %v59 = vld [vmem:[%s0 + $0x1c] sm:$0xf]
  %v60 = vld [vmem:[%s0 + $0x20] sm:$0xf]
  %v61 = vld [vmem:[%s0 + $0x24] sm:$0xf]
  %v62 = vld [vmem:[%s0 + $0x28] sm:$0xf]
  %v63 = vld [vmem:[%s0 + $0x2c] sm:$0xf]
  %v64 = vld [vmem:[%s0 + $0x30] sm:$0xf]
  %v65 = vld [vmem:[%s0 + $0x34] sm:$0xf]
  %v66 = vld [vmem:[%s0 + $0x38] sm:$0xf]
  %v67 = vld [vmem:[%s0 + $0x3c] sm:$0xf]
  %s68 = sshra.s32 %s35, 3
  %s69 = sand.u32 %s35, 7
  %s70 = smul.addr %s68, 4
  %s71 = scalar_lea.vmem %s1, %s70
  %v72 = vld [vmem:[%s71] sm:$0xf]
  %v73 = vld [vmem:[%s71 + $0x4] sm:$0xf]
  %v74 = vld [vmem:[%s71 + $0x8] sm:$0xf]
  %v75 = vld [vmem:[%s71 + $0xc] sm:$0xf]
  %v76 = vld [vmem:[%s71 + $0x10] sm:$0xf]
  %v77 = vld [vmem:[%s71 + $0x14] sm:$0xf]
  %v78 = vld [vmem:[%s71 + $0x18] sm:$0xf]
  %v79 = vld [vmem:[%s71 + $0x1c] sm:$0xf]
  %v80 = vld [vmem:[%s71 + $0x20] sm:$0xf]
  %v81 = vld [vmem:[%s71 + $0x24] sm:$0xf]
  %v82 = vld [vmem:[%s71 + $0x28] sm:$0xf]
  %v83 = vld [vmem:[%s71 + $0x2c] sm:$0xf]
  %v84 = vld [vmem:[%s71 + $0x30] sm:$0xf]
  %v85 = vld [vmem:[%s71 + $0x34] sm:$0xf]
  %v86 = vld [vmem:[%s71 + $0x38] sm:$0xf]
  %v87 = vld [vmem:[%s71 + $0x3c] sm:$0xf]
  %v104 = vunpack.c.l.b16 %v52
  %v105 = vunpack.c.l.b16 %v53
  %v106 = vunpack.c.l.b16 %v54
  %v107 = vunpack.c.l.b16 %v55
  %v108 = vunpack.c.l.b16 %v56
  %v109 = vunpack.c.l.b16 %v57
  %v110 = vunpack.c.l.b16 %v58
  %v111 = vunpack.c.l.b16 %v59
  %v112 = vunpack.c.l.b16 %v60
  %v113 = vunpack.c.l.b16 %v61
  %v114 = vunpack.c.l.b16 %v62
  %v115 = vunpack.c.l.b16 %v63
  %v116 = vunpack.c.l.b16 %v64
  %v117 = vunpack.c.l.b16 %v65
  %v118 = vunpack.c.l.b16 %v66
  %v119 = vunpack.c.l.b16 %v67
  %v120 = vpack.c.b16 %v105, %v104
  %v121 = vpack.c.b16 %v107, %v106
  %v122 = vpack.c.b16 %v109, %v108
  %v123 = vpack.c.b16 %v111, %v110
  %v124 = vpack.c.b16 %v113, %v112
  %v125 = vpack.c.b16 %v115, %v114
  %v126 = vpack.c.b16 %v117, %v116
  %v127 = vpack.c.b16 %v119, %v118
  %v152 = vunpack.c.l.b16 %v72
  %v153 = vunpack.c.l.b16 %v73
  %v154 = vunpack.c.l.b16 %v74
  %v155 = vunpack.c.l.b16 %v75
  %v156 = vunpack.c.l.b16 %v76
  %v157 = vunpack.c.l.b16 %v77
  %v158 = vunpack.c.l.b16 %v78
  %v159 = vunpack.c.l.b16 %v79
  %v160 = vunpack.c.l.b16 %v80
  %v161 = vunpack.c.l.b16 %v81
  %v162 = vunpack.c.l.b16 %v82
  %v163 = vunpack.c.l.b16 %v83
  %v164 = vunpack.c.l.b16 %v84
  %v165 = vunpack.c.l.b16 %v85
  %v166 = vunpack.c.l.b16 %v86
  %v167 = vunpack.c.l.b16 %v87
  %v168 = vpack.c.b16 %v153, %v152
  %v169 = vpack.c.b16 %v155, %v154
  %v170 = vpack.c.b16 %v157, %v156
  %v171 = vpack.c.b16 %v159, %v158
  %v172 = vpack.c.b16 %v161, %v160
  %v173 = vpack.c.b16 %v163, %v162
  %v174 = vpack.c.b16 %v165, %v164
  %v175 = vpack.c.b16 %v167, %v166
  %184 = vmatprep.subr.bf16.mxu0 0
  %185 = vmatpush1.bf16.msra.mxu0 %v175
  %186 = vmatprep.subr.bf16.mxu0 0
  %187 = vmatpush1.bf16.msra.mxu0 %v174
  %188 = vmatprep.subr.bf16.mxu0 0
  %189 = vmatpush1.bf16.msra.mxu0 %v173
  %190 = vmatprep.subr.bf16.mxu0 0
  %191 = vmatpush1.bf16.msra.mxu0 %v172
  %192 = vmatprep.subr.bf16.mxu0 0
  %193 = vmatpush1.bf16.msra.mxu0 %v171
  %194 = vmatprep.subr.bf16.mxu0 0
  %195 = vmatpush1.bf16.msra.mxu0 %v170
  %196 = vmatprep.subr.bf16.mxu0 0
  %197 = vmatpush1.bf16.msra.mxu0 %v169
  %198 = vmatprep.subr.bf16.mxu0 0
  %199 = vmatpush1.bf16.msra.mxu0 %v168
  %200 = vmatprep.subr.bf16.mxu0 0
  %201 = vmatpush2.bf16.msra.mxu0 0
  %202 = vmatprep.subr.bf16.mxu0 0
  %203 = vmatpush2.bf16.msra.mxu0 0
  %204 = vmatprep.subr.bf16.mxu0 0
  %205 = vmatpush2.bf16.msra.mxu0 0
  %206 = vmatprep.subr.bf16.mxu0 0
  %207 = vmatpush2.bf16.msra.mxu0 0
  %208 = vmatprep.subr.bf16.mxu0 0
  %209 = vmatpush2.bf16.msra.mxu0 0
  %210 = vmatprep.subr.bf16.mxu0 0
  %211 = vmatpush2.bf16.msra.mxu0 0
  %212 = vmatprep.subr.bf16.mxu0 0
  %213 = vmatpush2.bf16.msra.mxu0 0
  %214 = vmatprep.subr.bf16.mxu0 0
  %215 = vmatpush2.bf16.msra.mxu0 0
  %216 = vmatprep.mubr.bf16.mxu0 0
  %217 = vmatmul.mubr.bf16.gmra.mxu0 %v120
  %v218 = vpop.f32.mrf.mxu0
  %v219 = vadd.f32 0.0, %v218
  %v220 = vpop.f32.mrf.mxu0
  %v221 = vpop.f32.mrf.mxu0
  %v222 = vadd.f32 0.0, %v221
  %v223 = vpop.f32.mrf.mxu0
  %224 = vmatprep.mubr.bf16.mxu0 0
  %225 = vmatmul.mubr.bf16.gmra.mxu0 %v121
  %v226 = vpop.f32.mrf.mxu0
  %v227 = vadd.f32 0.0, %v226
  %v228 = vpop.f32.mrf.mxu0
  %v229 = vpop.f32.mrf.mxu0
  %v230 = vadd.f32 0.0, %v229
  %v231 = vpop.f32.mrf.mxu0
  %232 = vmatprep.mubr.bf16.mxu0 0
  %233 = vmatmul.mubr.bf16.gmra.mxu0 %v122
  %v234 = vpop.f32.mrf.mxu0
  %v235 = vadd.f32 0.0, %v234
  %v236 = vpop.f32.mrf.mxu0
  %v237 = vpop.f32.mrf.mxu0
  %v238 = vadd.f32 0.0, %v237
  %v239 = vpop.f32.mrf.mxu0
  %240 = vmatprep.mubr.bf16.mxu0 0
  %241 = vmatmul.mubr.bf16.gmra.mxu0 %v123
  %v242 = vpop.f32.mrf.mxu0
  %v243 = vadd.f32 0.0, %v242
  %v244 = vpop.f32.mrf.mxu0
  %v245 = vpop.f32.mrf.mxu0
  %v246 = vadd.f32 0.0, %v245
  %v247 = vpop.f32.mrf.mxu0
  %248 = vmatprep.mubr.bf16.mxu0 0
  %249 = vmatmul.mubr.bf16.gmra.mxu0 %v124
  %v250 = vpop.f32.mrf.mxu0
  %v251 = vadd.f32 0.0, %v250
  %v252 = vpop.f32.mrf.mxu0
  %v253 = vpop.f32.mrf.mxu0
  %v254 = vadd.f32 0.0, %v253
  %v255 = vpop.f32.mrf.mxu0
  %256 = vmatprep.mubr.bf16.mxu0 0
  %257 = vmatmul.mubr.bf16.gmra.mxu0 %v125
  %v258 = vpop.f32.mrf.mxu0
  %v259 = vadd.f32 0.0, %v258
  %v260 = vpop.f32.mrf.mxu0
  %v261 = vpop.f32.mrf.mxu0
  %v262 = vadd.f32 0.0, %v261
  %v263 = vpop.f32.mrf.mxu0
  %264 = vmatprep.mubr.bf16.mxu0 0
  %265 = vmatmul.mubr.bf16.gmra.mxu0 %v126
  %v266 = vpop.f32.mrf.mxu0
  %v267 = vadd.f32 0.0, %v266
  %v268 = vpop.f32.mrf.mxu0
  %v269 = vpop.f32.mrf.mxu0
  %v270 = vadd.f32 0.0, %v269
  %v271 = vpop.f32.mrf.mxu0
  %272 = vmatprep.mubr.bf16.mxu0 0
  %273 = vmatmul.mubr.bf16.gmra.mxu0 %v127
  %v274 = vpop.f32.mrf.mxu0
  %v275 = vadd.f32 0.0, %v274
  %v276 = vpop.f32.mrf.mxu0
  %v277 = vpop.f32.mrf.mxu0
  %v278 = vadd.f32 0.0, %v277
  %v279 = vpop.f32.mrf.mxu0
  %280 = vdwg.mxu0
  %v281 = vadd.f32 %v36, %v219
  %v282 = vadd.f32 %v37, %v222
  %v283 = vadd.f32 %v38, %v227
  %v284 = vadd.f32 %v39, %v230
  %v285 = vadd.f32 %v40, %v235
  %v286 = vadd.f32 %v41, %v238
  %v287 = vadd.f32 %v42, %v243
  %v288 = vadd.f32 %v43, %v246
  %v289 = vadd.f32 %v44, %v251
  %v290 = vadd.f32 %v45, %v254
  %v291 = vadd.f32 %v46, %v259
  %v292 = vadd.f32 %v47, %v262
  %v293 = vadd.f32 %v48, %v267
  %v294 = vadd.f32 %v49, %v270
  %v295 = vadd.f32 %v50, %v275
  %v296 = vadd.f32 %v51, %v278
  %297 = vst [vmem:[#allocation2] sm:$0xff] %v281
  %298 = vst [vmem:[#allocation2 + $0x8] sm:$0xff] %v282
  %299 = vst [vmem:[#allocation2 + $0x10] sm:$0xff] %v283
  %300 = vst [vmem:[#allocation2 + $0x18] sm:$0xff] %v284
  %301 = vst [vmem:[#allocation2 + $0x20] sm:$0xff] %v285
  %302 = vst [vmem:[#allocation2 + $0x28] sm:$0xff] %v286
  %303 = vst [vmem:[#allocation2 + $0x30] sm:$0xff] %v287
  %304 = vst [vmem:[#allocation2 + $0x38] sm:$0xff] %v288
  %305 = vst [vmem:[#allocation2 + $0x40] sm:$0xff] %v289
  %306 = vst [vmem:[#allocation2 + $0x48] sm:$0xff] %v290
  %307 = vst [vmem:[#allocation2 + $0x50] sm:$0xff] %v291
  %308 = vst [vmem:[#allocation2 + $0x58] sm:$0xff] %v292
  %309 = vst [vmem:[#allocation2 + $0x60] sm:$0xff] %v293
  %310 = vst [vmem:[#allocation2 + $0x68] sm:$0xff] %v294
  %311 = vst [vmem:[#allocation2 + $0x70] sm:$0xff] %v295
  %312 = vst [vmem:[#allocation2 + $0x78] sm:$0xff] %v296
  // Predicated region
  $region18: #{baseline_model_forward.18} parent=0 // pred_check
    %p313 = pneg %p15
  $region19: #{baseline_model_forward.18} parent=0 // pred_check_branch
    %315 = sbr.rel (%p313) target = $region21
  $region20: #{baseline_model_forward.18} parent=0 // pred_region
    %v316 = vld [vmem:[#allocation2] sm:$0xff]
    %v317 = vld [vmem:[#allocation2 + $0x8] sm:$0xff]
    %v318 = vld [vmem:[#allocation2 + $0x10] sm:$0xff]
    %v319 = vld [vmem:[#allocation2 + $0x18] sm:$0xff]
    %v320 = vld [vmem:[#allocation2 + $0x20] sm:$0xff]
    %v321 = vld [vmem:[#allocation2 + $0x28] sm:$0xff]
    %v322 = vld [vmem:[#allocation2 + $0x30] sm:$0xff]
    %v323 = vld [vmem:[#allocation2 + $0x38] sm:$0xff]
    %v324 = vld [vmem:[#allocation2 + $0x40] sm:$0xff]
    %v325 = vld [vmem:[#allocation2 + $0x48] sm:$0xff]
    %v326 = vld [vmem:[#allocation2 + $0x50] sm:$0xff]
    %v327 = vld [vmem:[#allocation2 + $0x58] sm:$0xff]
    %v328 = vld [vmem:[#allocation2 + $0x60] sm:$0xff]
    %v329 = vld [vmem:[#allocation2 + $0x68] sm:$0xff]
    %v330 = vld [vmem:[#allocation2 + $0x70] sm:$0xff]
    %v331 = vld [vmem:[#allocation2 + $0x78] sm:$0xff]
    %v332 = vld [vmem:[%s2] sm:$0x1]
    %v334 = vlaneseq
    %v335 = vshrl.u32 %v334, 7
    %v336 = vsub.s32 0, %v335
    %v337 = vrot.slane %v332, %v336
    %v339 = vadd.f32 %v316, %v337
    %v340 = vadd.f32 %v317, %v337
    %v341 = vadd.f32 %v318, %v337
    %v342 = vadd.f32 %v319, %v337
    %v343 = vadd.f32 %v320, %v337
    %v344 = vadd.f32 %v321, %v337
    %v345 = vadd.f32 %v322, %v337
    %v346 = vadd.f32 %v323, %v337
    %v347 = vadd.f32 %v324, %v337
    %v348 = vadd.f32 %v325, %v337
    %v349 = vadd.f32 %v326, %v337
    %v350 = vadd.f32 %v327, %v337
    %v351 = vadd.f32 %v328, %v337
    %v352 = vadd.f32 %v329, %v337
    %v353 = vadd.f32 %v330, %v337
    %v354 = vadd.f32 %v331, %v337
    %v355 = vpack.c.bf16 %v340, %v339
    %v356 = vpack.c.bf16 %v342, %v341
    %v357 = vpack.c.bf16 %v344, %v343
    %v358 = vpack.c.bf16 %v346, %v345
    %v359 = vpack.c.bf16 %v348, %v347
    %v360 = vpack.c.bf16 %v350, %v349
    %v361 = vpack.c.bf16 %v352, %v351
    %v362 = vpack.c.bf16 %v354, %v353
    %v371 = vunpack.c.l.b16 %v355
    %v372 = vunpack.c.h.b16 %v355
    %v373 = vunpack.c.l.b16 %v356
    %v374 = vunpack.c.h.b16 %v356
    %v375 = vunpack.c.l.b16 %v357
    %v376 = vunpack.c.h.b16 %v357
    %v377 = vunpack.c.l.b16 %v358
    %v378 = vunpack.c.h.b16 %v358
    %v379 = vunpack.c.l.b16 %v359
    %v380 = vunpack.c.h.b16 %v359
    %v381 = vunpack.c.l.b16 %v360
    %v382 = vunpack.c.h.b16 %v360
    %v383 = vunpack.c.l.b16 %v361
    %v384 = vunpack.c.h.b16 %v361
    %v385 = vunpack.c.l.b16 %v362
    %v386 = vunpack.c.h.b16 %v362
    %v387 = vpack.c.b16 %v371, %v371
    %v388 = vpack.c.b16 %v372, %v372
    %v389 = vpack.c.b16 %v373, %v373
    %v390 = vpack.c.b16 %v374, %v374
    %v391 = vpack.c.b16 %v375, %v375
    %v392 = vpack.c.b16 %v376, %v376
    %v393 = vpack.c.b16 %v377, %v377
    %v394 = vpack.c.b16 %v378, %v378
    %v395 = vpack.c.b16 %v379, %v379
    %v396 = vpack.c.b16 %v380, %v380
    %v397 = vpack.c.b16 %v381, %v381
    %v398 = vpack.c.b16 %v382, %v382
    %v399 = vpack.c.b16 %v383, %v383
    %v400 = vpack.c.b16 %v384, %v384
    %v401 = vpack.c.b16 %v385, %v385
    %v402 = vpack.c.b16 %v386, %v386
    %419 = vst [vmem:[%s3] sm:$0xf] %v387
    %420 = vst [vmem:[%s3 + $0x4] sm:$0xf] %v388
    %421 = vst [vmem:[%s3 + $0x8] sm:$0xf] %v389
    %422 = vst [vmem:[%s3 + $0xc] sm:$0xf] %v390
    %423 = vst [vmem:[%s3 + $0x10] sm:$0xf] %v391
    %424 = vst [vmem:[%s3 + $0x14] sm:$0xf] %v392
    %425 = vst [vmem:[%s3 + $0x18] sm:$0xf] %v393
    %426 = vst [vmem:[%s3 + $0x1c] sm:$0xf] %v394
    %427 = vst [vmem:[%s3 + $0x20] sm:$0xf] %v395
    %428 = vst [vmem:[%s3 + $0x24] sm:$0xf] %v396
    %429 = vst [vmem:[%s3 + $0x28] sm:$0xf] %v397
    %430 = vst [vmem:[%s3 + $0x2c] sm:$0xf] %v398
    %431 = vst [vmem:[%s3 + $0x30] sm:$0xf] %v399
    %432 = vst [vmem:[%s3 + $0x34] sm:$0xf] %v400
    %433 = vst [vmem:[%s3 + $0x38] sm:$0xf] %v401
    %434 = vst [vmem:[%s3 + $0x3c] sm:$0xf] %v402
  $region21: #{baseline_model_forward.18} parent=0 // pred_fallthru
    _
  // Predicated region
  $region22: #{baseline_model_forward.18} parent=0 // pred_check
    _
  $region23: #{baseline_model_forward.18} parent=0 // pred_check_branch
    %436 = sbr.rel (0) target = $region25
  $region24: #{baseline_model_forward.18} parent=0 // pred_region
    _
  $region25: #{baseline_model_forward.18} parent=0 // pred_fallthru
    _
  // Predicated region
  $region26: #{baseline_model_forward.18} parent=0 // pred_check
    _
  $region27: #{baseline_model_forward.18} parent=0 // pred_check_branch
    %438 = sbr.rel (0) target = $region29
  $region28: #{baseline_model_forward.18} parent=0 // pred_region
    _
  $region29: #{baseline_model_forward.18} parent=0 // pred_fallthru
    _

// kernel: baseline_model_forward.19
$region0: #{baseline_model_forward.19}
  #allocation0 [shape = 'u32[]', space=smem, size = 0x4, offset = 0x4, fixed_abs, tag = 'smem constant byte address 0x4 - core index']
  #allocation1 [shape = 'u32[144,128]{1,0:T(1,128)}', space=vmem, size = 0x12000, scoped, tag = 'internal scratch']
  #allocation2 [shape = 'f32[8,128]{1,0:T(8,128)}', space=vmem, size = 0x1000, scoped, tag = 'scratch operand']
  %s0 = inlined_call_operand.vmem [shape: bf16[8,128], index: 0, kind: input, shape index: {}]
  %s1 = inlined_call_operand.vmem [shape: bf16[128,128], index: 1, kind: input, shape index: {}]
  %s2 = inlined_call_operand.vmem [shape: bf16[128,128], index: 2, kind: input, shape index: {}]
  %s3 = inlined_call_operand.vmem [shape: f32[1,128], index: 3, kind: input, shape index: {}]
  %s4 = inlined_call_operand.vmem [shape: bf16[128,128], index: 4, kind: input, shape index: {}]
  %s5 = inlined_call_operand.vmem [shape: f32[1,128], index: 5, kind: input, shape index: {}]
  %s6 = inlined_call_operand.vmem [shape: f32[8,128], index: 6, kind: output, shape index: {}]
  %s7 = sld [smem:[#allocation0]]
  $region42: #{baseline_model_forward.19} parent=0
    _
  %s9 = ssub.s32 1, %s7
  %s10 = scalar_select 0, %s9, %s7
  // Predicated region
  $region2: #{baseline_model_forward.19} parent=0 // pred_check
    _
  $region3: #{baseline_model_forward.19} parent=0 // pred_check_branch
    %12 = sbr.rel (0) target = $region5
  $region4: #{baseline_model_forward.19} parent=0 // pred_region
    _
  $region5: #{baseline_model_forward.19} parent=0 // pred_fallthru
    _
  // Predicated region
  $region6: #{baseline_model_forward.19} parent=0 // pred_check
    _
  $region7: #{baseline_model_forward.19} parent=0 // pred_check_branch
    %14 = sbr.rel (0) target = $region9
  $region8: #{baseline_model_forward.19} parent=0 // pred_region
    _
  $region9: #{baseline_model_forward.19} parent=0 // pred_fallthru
    _
  // Predicated region
  $region10: #{baseline_model_forward.19} parent=0 // pred_check
    _
  $region11: #{baseline_model_forward.19} parent=0 // pred_check_branch
    %16 = sbr.rel (0) target = $region13
  $region12: #{baseline_model_forward.19} parent=0 // pred_region
    _
  $region13: #{baseline_model_forward.19} parent=0 // pred_fallthru
    _
  // Predicated region
  $region14: #{baseline_model_forward.19} parent=0 // pred_check
    _
  $region15: #{baseline_model_forward.19} parent=0 // pred_check_branch
    %18 = sbr.rel (0) target = $region17
  $region16: #{baseline_model_forward.19} parent=0 // pred_region
    _
  $region17: #{baseline_model_forward.19} parent=0 // pred_fallthru
    _
  // Predicated region
  $region18: #{baseline_model_forward.19} parent=0 // pred_check
    _
  $region19: #{baseline_model_forward.19} parent=0 // pred_check_branch
    %20 = sbr.rel (0) target = $region21
  $region20: #{baseline_model_forward.19} parent=0 // pred_region
    _
  $region21: #{baseline_model_forward.19} parent=0 // pred_fallthru
    _
  // Predicated region
  $region22: #{baseline_model_forward.19} parent=0 // pred_check
    _
  $region23: #{baseline_model_forward.19} parent=0 // pred_check_branch
    %22 = sbr.rel (0) target = $region25
  $region24: #{baseline_model_forward.19} parent=0 // pred_region
    _
  $region25: #{baseline_model_forward.19} parent=0 // pred_fallthru
    _
  %p24 = scmp.eq.s32.totalorder 0, 0
  // Predicated region
  $region26: #{baseline_model_forward.19} parent=0 // pred_check
    %p25 = pneg %p24
  $region27: #{baseline_model_forward.19} parent=0 // pred_check_branch
    %27 = sbr.rel (%p25) target = $region29
  $region28: #{baseline_model_forward.19} parent=0 // pred_region
    %28 = vst [vmem:[#allocation2] sm:$0xff] 0.0
  $region29: #{baseline_model_forward.19} parent=0 // pred_fallthru
    _
  %v29 = vld [vmem:[#allocation2] sm:$0xff]
  %v30 = vld [vmem:[%s0] sm:$0xf]
  %v31 = vld [vmem:[%s1] sm:$0xf]
  %v32 = vld [vmem:[%s1 + $0x4] sm:$0xf]
  %v33 = vld [vmem:[%s1 + $0x8] sm:$0xf]
  %v34 = vld [vmem:[%s1 + $0xc] sm:$0xf]
  %v35 = vld [vmem:[%s1 + $0x10] sm:$0xf]
  %v36 = vld [vmem:[%s1 + $0x14] sm:$0xf]
  %v37 = vld [vmem:[%s1 + $0x18] sm:$0xf]
  %v38 = vld [vmem:[%s1 + $0x1c] sm:$0xf]
  %v39 = vld [vmem:[%s1 + $0x20] sm:$0xf]
  %v40 = vld [vmem:[%s1 + $0x24] sm:$0xf]
  %v41 = vld [vmem:[%s1 + $0x28] sm:$0xf]
  %v42 = vld [vmem:[%s1 + $0x2c] sm:$0xf]
  %v43 = vld [vmem:[%s1 + $0x30] sm:$0xf]
  %v44 = vld [vmem:[%s1 + $0x34] sm:$0xf]
  %v45 = vld [vmem:[%s1 + $0x38] sm:$0xf]
  %v46 = vld [vmem:[%s1 + $0x3c] sm:$0xf]
  %v63 = vunpack.c.l.b16 %v31
  %v64 = vunpack.c.l.b16 %v32
  %v65 = vunpack.c.l.b16 %v33
  %v66 = vunpack.c.l.b16 %v34
  %v67 = vunpack.c.l.b16 %v35
  %v68 = vunpack.c.l.b16 %v36
  %v69 = vunpack.c.l.b16 %v37
  %v70 = vunpack.c.l.b16 %v38
  %v71 = vunpack.c.l.b16 %v39
  %v72 = vunpack.c.l.b16 %v40
  %v73 = vunpack.c.l.b16 %v41
  %v74 = vunpack.c.l.b16 %v42
  %v75 = vunpack.c.l.b16 %v43
  %v76 = vunpack.c.l.b16 %v44
  %v77 = vunpack.c.l.b16 %v45
  %v78 = vunpack.c.l.b16 %v46
  %v79 = vpack.c.b16 %v64, %v63
  %v80 = vpack.c.b16 %v66, %v65
  %v81 = vpack.c.b16 %v68, %v67
  %v82 = vpack.c.b16 %v70, %v69
  %v83 = vpack.c.b16 %v72, %v71
  %v84 = vpack.c.b16 %v74, %v73
  %v85 = vpack.c.b16 %v76, %v75
  %v86 = vpack.c.b16 %v78, %v77
  %95 = vmatprep.subr.bf16.mxu0 0
  %96 = vmatpush1.bf16.msra.mxu0 %v86
  %97 = vmatprep.subr.bf16.mxu0 0
  %98 = vmatpush1.bf16.msra.mxu0 %v85
  %99 = vmatprep.subr.bf16.mxu0 0
  %100 = vmatpush1.bf16.msra.mxu0 %v84
  %101 = vmatprep.subr.bf16.mxu0 0
  %102 = vmatpush1.bf16.msra.mxu0 %v83
  %103 = vmatprep.subr.bf16.mxu0 0
  %104 = vmatpush1.bf16.msra.mxu0 %v82
  %105 = vmatprep.subr.bf16.mxu0 0
  %106 = vmatpush1.bf16.msra.mxu0 %v81
  %107 = vmatprep.subr.bf16.mxu0 0
  %108 = vmatpush1.bf16.msra.mxu0 %v80
  %109 = vmatprep.subr.bf16.mxu0 0
  %110 = vmatpush1.bf16.msra.mxu0 %v79
  %111 = vmatprep.subr.bf16.mxu0 0
  %112 = vmatpush2.bf16.msra.mxu0 0
  %113 = vmatprep.subr.bf16.mxu0 0
  %114 = vmatpush2.bf16.msra.mxu0 0
  %115 = vmatprep.subr.bf16.mxu0 0
  %116 = vmatpush2.bf16.msra.mxu0 0
  %117 = vmatprep.subr.bf16.mxu0 0
  %118 = vmatpush2.bf16.msra.mxu0 0
  %119 = vmatprep.subr.bf16.mxu0 0
  %120 = vmatpush2.bf16.msra.mxu0 0
  %121 = vmatprep.subr.bf16.mxu0 0
  %122 = vmatpush2.bf16.msra.mxu0 0
  %123 = vmatprep.subr.bf16.mxu0 0
  %124 = vmatpush2.bf16.msra.mxu0 0
  %125 = vmatprep.subr.bf16.mxu0 0
  %126 = vmatpush2.bf16.msra.mxu0 0
  %127 = vmatprep.mubr.bf16.mxu0 0
  %128 = vmatmul.mubr.bf16.gmra.mxu0 %v30
  %v129 = vpop.f32.mrf.mxu0
  %v130 = vadd.f32 0.0, %v129
  %v131 = vpop.f32.mrf.mxu0
  %v132 = vpop.f32.mrf.mxu0
  %v133 = vpop.f32.mrf.mxu0
  %134 = vdwg.mxu0
  %v135 = vadd.f32 %v29, %v130
  %136 = vst [vmem:[#allocation2] sm:$0xff] %v135
  // Predicated region
  $region30: #{baseline_model_forward.19} parent=0 // pred_check
    %p137 = pneg %p24
  $region31: #{baseline_model_forward.19} parent=0 // pred_check_branch
    %139 = sbr.rel (%p137) target = $region33
  $region32: #{baseline_model_forward.19} parent=0 // pred_region
    %v140 = vld [vmem:[#allocation2] sm:$0xff]
    %v141 = vpack.c.bf16 %v140, %v140
    %v142 = vld [vmem:[%s2] sm:$0xf]
    %v143 = vld [vmem:[%s2 + $0x4] sm:$0xf]
    %v144 = vld [vmem:[%s2 + $0x8] sm:$0xf]
    %v145 = vld [vmem:[%s2 + $0xc] sm:$0xf]
    %v146 = vld [vmem:[%s2 + $0x10] sm:$0xf]
    %v147 = vld [vmem:[%s2 + $0x14] sm:$0xf]
    %v148 = vld [vmem:[%s2 + $0x18] sm:$0xf]
    %v149 = vld [vmem:[%s2 + $0x1c] sm:$0xf]
    %v150 = vld [vmem:[%s2 + $0x20] sm:$0xf]
    %v151 = vld [vmem:[%s2 + $0x24] sm:$0xf]
    %v152 = vld [vmem:[%s2 + $0x28] sm:$0xf]
    %v153 = vld [vmem:[%s2 + $0x2c] sm:$0xf]
    %v154 = vld [vmem:[%s2 + $0x30] sm:$0xf]
    %v155 = vld [vmem:[%s2 + $0x34] sm:$0xf]
    %v156 = vld [vmem:[%s2 + $0x38] sm:$0xf]
    %v157 = vld [vmem:[%s2 + $0x3c] sm:$0xf]
    %v158 = vld [vmem:[%s3] sm:$0x1]
    %v160 = vlaneseq
    %v161 = vshrl.u32 %v160, 7
    %v162 = vsub.s32 0, %v161
    %v163 = vrot.slane %v158, %v162
    %v181 = vunpack.c.l.b16 %v142
    %v182 = vunpack.c.l.b16 %v143
    %v183 = vunpack.c.l.b16 %v144
    %v184 = vunpack.c.l.b16 %v145
    %v185 = vunpack.c.l.b16 %v146
    %v186 = vunpack.c.l.b16 %v147
    %v187 = vunpack.c.l.b16 %v148
    %v188 = vunpack.c.l.b16 %v149
    %v189 = vunpack.c.l.b16 %v150
    %v190 = vunpack.c.l.b16 %v151
    %v191 = vunpack.c.l.b16 %v152
    %v192 = vunpack.c.l.b16 %v153
    %v193 = vunpack.c.l.b16 %v154
    %v194 = vunpack.c.l.b16 %v155
    %v195 = vunpack.c.l.b16 %v156
    %v196 = vunpack.c.l.b16 %v157
    %v197 = vpack.c.b16 %v182, %v181
    %v198 = vpack.c.b16 %v184, %v183
    %v199 = vpack.c.b16 %v186, %v185
    %v200 = vpack.c.b16 %v188, %v187
    %v201 = vpack.c.b16 %v190, %v189
    %v202 = vpack.c.b16 %v192, %v191
    %v203 = vpack.c.b16 %v194, %v193
    %v204 = vpack.c.b16 %v196, %v195
    %213 = vmatprep.subr.bf16.mxu0 0
    %214 = vmatpush1.bf16.msra.mxu0 %v204
    %215 = vmatprep.subr.bf16.mxu0 0
    %216 = vmatpush1.bf16.msra.mxu0 %v203
    %217 = vmatprep.subr.bf16.mxu0 0
    %218 = vmatpush1.bf16.msra.mxu0 %v202
    %219 = vmatprep.subr.bf16.mxu0 0
    %220 = vmatpush1.bf16.msra.mxu0 %v201
    %221 = vmatprep.subr.bf16.mxu0 0
    %222 = vmatpush1.bf16.msra.mxu0 %v200
    %223 = vmatprep.subr.bf16.mxu0 0
    %224 = vmatpush1.bf16.msra.mxu0 %v199
    %225 = vmatprep.subr.bf16.mxu0 0
    %226 = vmatpush1.bf16.msra.mxu0 %v198
    %227 = vmatprep.subr.bf16.mxu0 0
    %228 = vmatpush1.bf16.msra.mxu0 %v197
    %229 = vmatprep.subr.bf16.mxu0 0
    %230 = vmatpush2.bf16.msra.mxu0 0
    %231 = vmatprep.subr.bf16.mxu0 0
    %232 = vmatpush2.bf16.msra.mxu0 0
    %233 = vmatprep.subr.bf16.mxu0 0
    %234 = vmatpush2.bf16.msra.mxu0 0
    %235 = vmatprep.subr.bf16.mxu0 0
    %236 = vmatpush2.bf16.msra.mxu0 0
    %237 = vmatprep.subr.bf16.mxu0 0
    %238 = vmatpush2.bf16.msra.mxu0 0
    %239 = vmatprep.subr.bf16.mxu0 0
    %240 = vmatpush2.bf16.msra.mxu0 0
    %241 = vmatprep.subr.bf16.mxu0 0
    %242 = vmatpush2.bf16.msra.mxu0 0
    %243 = vmatprep.subr.bf16.mxu0 0
    %244 = vmatpush2.bf16.msra.mxu0 0
    %245 = vmatprep.mubr.bf16.mxu0 0
    %246 = vmatmul.mubr.bf16.gmra.mxu0 %v141
    %v247 = vpop.f32.mrf.mxu0
    %v248 = vadd.f32 %v163, %v247
    %v249 = vpop.f32.mrf.mxu0
    %v250 = vpop.f32.mrf.mxu0
    %v251 = vpop.f32.mrf.mxu0
    %252 = vdwg.mxu0
    %v253 = vmax.f32 %v248, 0.0
    %v254 = vpack.c.bf16 %v253, %v253
    %v255 = vld [vmem:[%s4] sm:$0xf]
    %v256 = vld [vmem:[%s4 + $0x4] sm:$0xf]
    %v257 = vld [vmem:[%s4 + $0x8] sm:$0xf]
    %v258 = vld [vmem:[%s4 + $0xc] sm:$0xf]
    %v259 = vld [vmem:[%s4 + $0x10] sm:$0xf]
    %v260 = vld [vmem:[%s4 + $0x14] sm:$0xf]
    %v261 = vld [vmem:[%s4 + $0x18] sm:$0xf]
    %v262 = vld [vmem:[%s4 + $0x1c] sm:$0xf]
    %v263 = vld [vmem:[%s4 + $0x20] sm:$0xf]
    %v264 = vld [vmem:[%s4 + $0x24] sm:$0xf]
    %v265 = vld [vmem:[%s4 + $0x28] sm:$0xf]
    %v266 = vld [vmem:[%s4 + $0x2c] sm:$0xf]
    %v267 = vld [vmem:[%s4 + $0x30] sm:$0xf]
    %v268 = vld [vmem:[%s4 + $0x34] sm:$0xf]
    %v269 = vld [vmem:[%s4 + $0x38] sm:$0xf]
    %v270 = vld [vmem:[%s4 + $0x3c] sm:$0xf]
    %v271 = vld [vmem:[%s5] sm:$0x1]
    %v273 = vlaneseq
    %v274 = vshrl.u32 %v273, 7
    %v275 = vsub.s32 0, %v274
    %v276 = vrot.slane %v271, %v275
    %v294 = vunpack.c.l.b16 %v255
    %v295 = vunpack.c.l.b16 %v256
    %v296 = vunpack.c.l.b16 %v257
    %v297 = vunpack.c.l.b16 %v258
    %v298 = vunpack.c.l.b16 %v259
    %v299 = vunpack.c.l.b16 %v260
    %v300 = vunpack.c.l.b16 %v261
    %v301 = vunpack.c.l.b16 %v262
    %v302 = vunpack.c.l.b16 %v263
    %v303 = vunpack.c.l.b16 %v264
    %v304 = vunpack.c.l.b16 %v265
    %v305 = vunpack.c.l.b16 %v266
    %v306 = vunpack.c.l.b16 %v267
    %v307 = vunpack.c.l.b16 %v268
    %v308 = vunpack.c.l.b16 %v269
    %v309 = vunpack.c.l.b16 %v270
    %v310 = vpack.c.b16 %v295, %v294
    %v311 = vpack.c.b16 %v297, %v296
    %v312 = vpack.c.b16 %v299, %v298
    %v313 = vpack.c.b16 %v301, %v300
    %v314 = vpack.c.b16 %v303, %v302
    %v315 = vpack.c.b16 %v305, %v304
    %v316 = vpack.c.b16 %v307, %v306
    %v317 = vpack.c.b16 %v309, %v308
    %326 = vmatprep.subr.bf16.mxu0 0
    %327 = vmatpush1.bf16.msra.mxu0 %v317
    %328 = vmatprep.subr.bf16.mxu0 0
    %329 = vmatpush1.bf16.msra.mxu0 %v316
    %330 = vmatprep.subr.bf16.mxu0 0
    %331 = vmatpush1.bf16.msra.mxu0 %v315
    %332 = vmatprep.subr.bf16.mxu0 0
    %333 = vmatpush1.bf16.msra.mxu0 %v314
    %334 = vmatprep.subr.bf16.mxu0 0
    %335 = vmatpush1.bf16.msra.mxu0 %v313
    %336 = vmatprep.subr.bf16.mxu0 0
    %337 = vmatpush1.bf16.msra.mxu0 %v312
    %338 = vmatprep.subr.bf16.mxu0 0
    %339 = vmatpush1.bf16.msra.mxu0 %v311
    %340 = vmatprep.subr.bf16.mxu0 0
    %341 = vmatpush1.bf16.msra.mxu0 %v310
    %342 = vmatprep.subr.bf16.mxu0 0
    %343 = vmatpush2.bf16.msra.mxu0 0
    %344 = vmatprep.subr.bf16.mxu0 0
    %345 = vmatpush2.bf16.msra.mxu0 0
    %346 = vmatprep.subr.bf16.mxu0 0
    %347 = vmatpush2.bf16.msra.mxu0 0
    %348 = vmatprep.subr.bf16.mxu0 0
    %349 = vmatpush2.bf16.msra.mxu0 0
    %350 = vmatprep.subr.bf16.mxu0 0
    %351 = vmatpush2.bf16.msra.mxu0 0
    %352 = vmatprep.subr.bf16.mxu0 0
    %353 = vmatpush2.bf16.msra.mxu0 0
    %354 = vmatprep.subr.bf16.mxu0 0
    %355 = vmatpush2.bf16.msra.mxu0 0
    %356 = vmatprep.subr.bf16.mxu0 0
    %357 = vmatpush2.bf16.msra.mxu0 0
    %358 = vmatprep.mubr.bf16.mxu0 0
    %359 = vmatmul.mubr.bf16.gmra.mxu0 %v254
    %v360 = vpop.f32.mrf.mxu0
    %v361 = vadd.f32 %v276, %v360
    %v362 = vpop.f32.mrf.mxu0
    %v363 = vpop.f32.mrf.mxu0
    %v364 = vpop.f32.mrf.mxu0
    %365 = vdwg.mxu0
    %366 = vst [vmem:[%s6] sm:$0xff] %v361
  $region33: #{baseline_model_forward.19} parent=0 // pred_fallthru
    _
  // Predicated region
  $region34: #{baseline_model_forward.19} parent=0 // pred_check
    _
  $region35: #{baseline_model_forward.19} parent=0 // pred_check_branch
    %368 = sbr.rel (0) target = $region37
  $region36: #{baseline_model_forward.19} parent=0 // pred_region
    _
  $region37: #{baseline_model_forward.19} parent=0 // pred_fallthru
    _
  // Predicated region
  $region38: #{baseline_model_forward.19} parent=0 // pred_check
    _
  $region39: #{baseline_model_forward.19} parent=0 // pred_check_branch
    %370 = sbr.rel (0) target = $region41
  $region40: #{baseline_model_forward.19} parent=0 // pred_region
    _
  $region41: #{baseline_model_forward.19} parent=0 // pred_fallthru
    _

</llo_original>
